<compile_context>
chip_gen: v7x
topology: tpu7x:2x2x1
jax: 0.10.0
libtpu: 0.0.40
codegen_flags: <defaults>
</compile_context>

<pallas_src>
import functools

import jax
import jax.numpy as jnp
from jax import lax
from jax.experimental import pallas as pl
from jax.experimental.pallas import tpu as pltpu


# ----------------------------------------------------------------------------
# helpers
# ----------------------------------------------------------------------------
def _round_up(x, m):
    return (x + m - 1) // m * m


def _pick_tiles(M, K, C):
    """Lane-dense, generation-safe tile sizes (fit v7x's 64 MiB VMEM)."""
    tn = 128 if C <= 128 else 256          # 128-lane multiples; 256 feeds v6e/v7x MXU
    tk = 128 if K <= 128 else 256
    tm = 512 if M >= 512 else _round_up(max(M, 8), 8)
    return tm, tk, tn


def _compiler_params(semantics, est_vmem_bytes):
    limit = int(min(60 * 2**20, max(32 * 2**20, 4 * est_vmem_bytes)))
    return pltpu.CompilerParams(dimension_semantics=semantics,
                                vmem_limit_bytes=limit)


# ----------------------------------------------------------------------------
# pass 1: tiled matmul (conv after im2col) + in-kernel BN statistics
# ----------------------------------------------------------------------------
def _conv_matmul_stats_kernel(x_ref, w_ref, y_ref, sum_ref, sq_ref, acc_ref):
    m = pl.program_id(1)
    k = pl.program_id(2)
    last_m = pl.num_programs(1) - 1
    last_k = pl.num_programs(2) - 1

    @pl.when(k == 0)
    def _init_acc():
        acc_ref[...] = jnp.zeros_like(acc_ref)

    @pl.when((m == 0) & (k == 0))
    def _init_stats():
        sum_ref[...] = jnp.zeros_like(sum_ref)
        sq_ref[...] = jnp.zeros_like(sq_ref)

    acc_ref[...] += jnp.dot(x_ref[...], w_ref[...],
                            preferred_element_type=jnp.float32)

    @pl.when(k == last_k)
    def _finalize_tile():
        acc = acc_ref[...]
        y_ref[...] = acc.astype(y_ref.dtype)
        # per-channel BN statistics, f32, accumulated across the M sweep
        sum_ref[...] += jnp.sum(acc, axis=0, keepdims=True)
        sq_ref[...] += jnp.sum(acc * acc, axis=0, keepdims=True)

    del last_m  # stats outputs are written back when the channel tile changes


def conv_matmul_stats(x2d, w2d):
    """y = x2d @ w2d (bias-free) plus per-channel sum / sum-of-squares.

    Inputs are cast to bf16 (MXU), accumulation and statistics stay f32.
    Returns (y_pad (M_pad, C_pad) f32, sum (1, C_pad) f32, sumsq (1, C_pad) f32,
             tiles = (tm, tn, M_pad, C_pad)).
    """
    M, K = x2d.shape
    Kw, C = w2d.shape
    assert K == Kw
    tm, tk, tn = _pick_tiles(M, K, C)
    M_pad, K_pad, C_pad = _round_up(M, tm), _round_up(K, tk), _round_up(C, tn)

    xb = jnp.pad(x2d.astype(jnp.bfloat16), ((0, M_pad - M), (0, K_pad - K)))
    wb = jnp.pad(w2d.astype(jnp.bfloat16), ((0, K_pad - K), (0, C_pad - C)))

    est = 2 * (tm * tk * 2 + tk * tn * 2 + tm * tn * 4) + tm * tn * 4
    grid = (C_pad // tn, M_pad // tm, K_pad // tk)   # K innermost (reduction)

    y, ssum, ssq = pl.pallas_call(
        _conv_matmul_stats_kernel,
        out_shape=(jax.ShapeDtypeStruct((M_pad, C_pad), jnp.float32),
                   jax.ShapeDtypeStruct((1, C_pad), jnp.float32),
                   jax.ShapeDtypeStruct((1, C_pad), jnp.float32)),
        grid=grid,
        in_specs=[pl.BlockSpec((tm, tk), lambda n, m, k: (m, k)),
                  pl.BlockSpec((tk, tn), lambda n, m, k: (k, n))],
        out_specs=(pl.BlockSpec((tm, tn), lambda n, m, k: (m, n)),
                   pl.BlockSpec((1, tn), lambda n, m, k: (0, n)),
                   pl.BlockSpec((1, tn), lambda n, m, k: (0, n))),
        scratch_shapes=[pltpu.VMEM((tm, tn), jnp.float32)],
        # channel tiles are independent -> "parallel" (v7x megacore);
        # M and K are accumulation axes for stats/acc -> "arbitrary".
        compiler_params=_compiler_params(("parallel", "arbitrary", "arbitrary"),
                                         est),
    )(xb, wb)
    return y, ssum, ssq, (tm, tn, M_pad, C_pad)


# ----------------------------------------------------------------------------
# pass 2: fused BatchNorm + affine (+ residual [+ residual BN]) + ReLU
# ----------------------------------------------------------------------------
def _bn_res_relu_kernel(*refs, m_count, eps, has_residual, residual_bn):
    if has_residual and residual_bn:
        (y_ref, s_ref, q_ref, g_ref, b_ref,
         r_ref, rs_ref, rq_ref, rg_ref, rb_ref, o_ref) = refs
    elif has_residual:
        y_ref, s_ref, q_ref, g_ref, b_ref, r_ref, o_ref = refs
    else:
        y_ref, s_ref, q_ref, g_ref, b_ref, o_ref = refs

    inv_m = 1.0 / m_count

    def normalize(v, sum_ref, sq_ref, gamma_ref, beta_ref):
        mean = sum_ref[...] * inv_m
        var = sq_ref[...] * inv_m - mean * mean
        return (v - mean) * lax.rsqrt(var + eps) * gamma_ref[...] + beta_ref[...]

    out = normalize(y_ref[...].astype(jnp.float32), s_ref, q_ref, g_ref, b_ref)
    if has_residual:
        r = r_ref[...].astype(jnp.float32)
        if residual_bn:
            r = normalize(r, rs_ref, rq_ref, rg_ref, rb_ref)
        out = out + r
    o_ref[...] = jnp.maximum(out, 0.0).astype(o_ref.dtype)


def bn_relu_epilogue(y, ssum, ssq, gamma, beta, m_count, tiles, out_dtype,
                     residual=None, res_sum=None, res_sq=None,
                     res_gamma=None, res_beta=None, eps=1e-5):
    tm, tn, M_pad, C_pad = tiles
    C = gamma.shape[0]

    def pad_row(v):
        return jnp.pad(v.astype(jnp.float32).reshape(1, C),
                       ((0, 0), (0, C_pad - C)))

    row_spec = lambda: pl.BlockSpec((1, tn), lambda i, j: (0, j))
    tile_spec = lambda: pl.BlockSpec((tm, tn), lambda i, j: (i, j))

    args = [y, ssum, ssq, pad_row(gamma), pad_row(beta)]
    in_specs = [tile_spec(), row_spec(), row_spec(), row_spec(), row_spec()]

    has_res = residual is not None
    res_bn = res_sum is not None
    if has_res:
        args.append(residual)
        in_specs.append(tile_spec())
        if res_bn:
            args += [res_sum, res_sq, pad_row(res_gamma), pad_row(res_beta)]
            in_specs += [row_spec(), row_spec(), row_spec(), row_spec()]

    kern = functools.partial(_bn_res_relu_kernel, m_count=float(m_count),
                             eps=eps, has_residual=has_res, residual_bn=res_bn)
    est = 3 * tm * tn * 4
    return pl.pallas_call(
        kern,
        out_shape=jax.ShapeDtypeStruct((M_pad, C_pad), out_dtype),
        grid=(M_pad // tm, C_pad // tn),
        in_specs=in_specs,
        out_specs=pl.BlockSpec((tm, tn), lambda i, j: (i, j)),
        compiler_params=_compiler_params(("parallel", "parallel"), est),
    )(*args)


# ----------------------------------------------------------------------------
# plain-JAX layout glue
# ----------------------------------------------------------------------------
def _im2col(x_nhwc, ksize, stride, pad):
    N, H, W, C = x_nhwc.shape
    xp = jnp.pad(x_nhwc, ((0, 0), (pad, pad), (pad, pad), (0, 0)))
    Ho = (H + 2 * pad - ksize) // stride + 1
    Wo = (W + 2 * pad - ksize) // stride + 1
    cols = []
    for kh in range(ksize):
        for kw in range(ksize):
            cols.append(xp[:, kh:kh + stride * Ho:stride,
                           kw:kw + stride * Wo:stride, :])
    col = jnp.concatenate(cols, axis=-1)            # (N, Ho, Wo, k*k*C)
    return col.reshape(N * Ho * Wo, ksize * ksize * C), (Ho, Wo)


def _conv_weight_to_mat(w_oihw):
    """PyTorch (Cout, Cin, kh, kw) -> im2col matmul weight (kh*kw*Cin, Cout)."""
    cout = w_oihw.shape[0]
    return jnp.transpose(w_oihw, (2, 3, 1, 0)).reshape(-1, cout)


# ----------------------------------------------------------------------------
# BasicBlock forward (NCHW in / NCHW out, matching the PyTorch module)
# ----------------------------------------------------------------------------
def basic_block_forward(x_nchw, p, *, stride, down_sample):
    x = jnp.transpose(x_nchw, (0, 2, 3, 1)).astype(jnp.float32)   # NCHW -> NHWC
    N, H, W, Cin = x.shape
    Cout = p['w1'].shape[0]

    if not down_sample:
        assert stride == 1 and Cin == Cout, \
            "identity residual requires stride==1 and in_channels==out_channels"

    # conv1 (3x3, s=1, p=1) + in-kernel BN stats, then fused bn1 + relu1
    col1, (H1, W1) = _im2col(x.astype(jnp.bfloat16), 3, 1, 1)
    M1 = N * H1 * W1
    y1, s1, q1, t1 = conv_matmul_stats(col1, _conv_weight_to_mat(p['w1']))
    a1 = bn_relu_epilogue(y1, s1, q1, p['g1'], p['be1'], M1, t1, jnp.bfloat16)
    a1 = a1[:M1, :Cout].reshape(N, H1, W1, Cout)

    # conv2 (3x3, s=stride, p=1) + in-kernel BN stats
    col2, (H2, W2) = _im2col(a1, 3, stride, 1)
    M2 = N * H2 * W2
    y2, s2, q2, t2 = conv_matmul_stats(col2, _conv_weight_to_mat(p['w2']))
    _, _, M2_pad, C_pad = t2

    # residual branch + fused bn2 (+ downsample BN) + add + relu2
    if down_sample:
        # DownSample module: 1x1 conv, stride (2,2), pad 0, then BatchNorm.
        xs = x[:, ::2, ::2, :]
        Hd, Wd = xs.shape[1], xs.shape[2]
        assert (Hd, Wd) == (H2, W2), "DownSample (stride 2) must match conv2 output"
        rd, sd, qd, td = conv_matmul_stats(
            xs.reshape(N * Hd * Wd, Cin), jnp.transpose(p['wd'][:, :, 0, 0]))
        assert rd.shape == y2.shape and td[:2] == t2[:2]
        out = bn_relu_epilogue(y2, s2, q2, p['g2'], p['be2'], M2, t2, jnp.float32,
                               residual=rd, res_sum=sd, res_sq=qd,
                               res_gamma=p['gd'], res_beta=p['bed'])
    else:
        res = jnp.pad(x.reshape(M2, Cin), ((0, M2_pad - M2), (0, C_pad - Cin)))
        out = bn_relu_epilogue(y2, s2, q2, p['g2'], p['be2'], M2, t2, jnp.float32,
                               residual=res)

    out = out[:M2, :Cout].reshape(N, H2, W2, Cout)
    return jnp.transpose(out, (0, 3, 1, 2))                        # NHWC -> NCHW


# ----------------------------------------------------------------------------
# pure-JAX f32 reference (includes the conv biases -- validates that dropping
# them before train-mode BatchNorm is exact)
# ----------------------------------------------------------------------------
def ref_forward(x, p, stride, down_sample):
    def conv(x, w, b, s, pad):
        y = lax.conv_general_dilated(
            x, w, window_strides=(s, s), padding=[(pad, pad), (pad, pad)],
            dimension_numbers=('NCHW', 'OIHW', 'NCHW'))
        return y + b[None, :, None, None]

    def bn(x, g, be):
        mean = jnp.mean(x, axis=(0, 2, 3), keepdims=True)
        var = jnp.mean((x - mean) ** 2, axis=(0, 2, 3), keepdims=True)
        return ((x - mean) * lax.rsqrt(var + 1e-5)
                * g[None, :, None, None] + be[None, :, None, None])

    out = conv(x, p['w1'], p['b1'], 1, 1)
    out = jnp.maximum(bn(out, p['g1'], p['be1']), 0.0)
    out = conv(out, p['w2'], p['b2'], stride, 1)
    out = bn(out, p['g2'], p['be2'])
    xres = x
    if down_sample:
        xres = conv(x, p['wd'], p['bd'], 2, 0)
        xres = bn(xres, p['gd'], p['bed'])
    return jnp.maximum(out + xres, 0.0)


# ----------------------------------------------------------------------------
if __name__ == "__main__":
    key = jax.random.PRNGKey(0)
    ks = jax.random.split(key, 26)

    # --- case 1: down_sample=True, stride=2, Cin != Cout ---------------------
    N, Cin, H, W = 2, 4, 16, 16
    Cout, stride, down_sample = 8, 2, True
    x = jax.random.normal(ks[0], (N, Cin, H, W), jnp.float32)
    p = {
        'w1': 0.1 * jax.random.normal(ks[1], (Cout, Cin, 3, 3), jnp.float32),
        'b1': 0.1 * jax.random.normal(ks[2], (Cout,), jnp.float32),
        'g1': 1.0 + 0.1 * jax.random.normal(ks[3], (Cout,), jnp.float32),
        'be1': 0.1 * jax.random.normal(ks[4], (Cout,), jnp.float32),
        'w2': 0.1 * jax.random.normal(ks[5], (Cout, Cout, 3, 3), jnp.float32),
        'b2': 0.1 * jax.random.normal(ks[6], (Cout,), jnp.float32),
        'g2': 1.0 + 0.1 * jax.random.normal(ks[7], (Cout,), jnp.float32),
        'be2': 0.1 * jax.random.normal(ks[8], (Cout,), jnp.float32),
        'wd': 0.1 * jax.random.normal(ks[9], (Cout, Cin, 1, 1), jnp.float32),
        'bd': 0.1 * jax.random.normal(ks[10], (Cout,), jnp.float32),
        'gd': 1.0 + 0.1 * jax.random.normal(ks[11], (Cout,), jnp.float32),
        'bed': 0.1 * jax.random.normal(ks[12], (Cout,), jnp.float32),
    }
    fwd = jax.jit(functools.partial(basic_block_forward,
                                    stride=stride, down_sample=down_sample))
    out = jax.block_until_ready(fwd(x, p))
    ref = jax.block_until_ready(ref_forward(x, p, stride, down_sample))
    assert out.shape == ref.shape == (N, Cout, H // stride, W // stride), out.shape
    err1 = float(jnp.max(jnp.abs(out - ref)))
    assert jnp.allclose(out, ref, rtol=2e-2, atol=5e-2), err1   # bf16 MXU inputs

    # --- case 2: identity residual (down_sample=False, stride=1) -------------
    C2 = 8
    x2 = jax.random.normal(ks[13], (N, C2, H, W), jnp.float32)
    p2 = {
        'w1': 0.1 * jax.random.normal(ks[14], (C2, C2, 3, 3), jnp.float32),
        'b1': 0.1 * jax.random.normal(ks[15], (C2,), jnp.float32),
        'g1': 1.0 + 0.1 * jax.random.normal(ks[16], (C2,), jnp.float32),
        'be1': 0.1 * jax.random.normal(ks[17], (C2,), jnp.float32),
        'w2': 0.1 * jax.random.normal(ks[18], (C2, C2, 3, 3), jnp.float32),
        'b2': 0.1 * jax.random.normal(ks[19], (C2,), jnp.float32),
        'g2': 1.0 + 0.1 * jax.random.normal(ks[20], (C2,), jnp.float32),
        'be2': 0.1 * jax.random.normal(ks[21], (C2,), jnp.float32),
    }
    fwd2 = jax.jit(functools.partial(basic_block_forward,
                                     stride=1, down_sample=False))
    out2 = jax.block_until_ready(fwd2(x2, p2))
    ref2 = jax.block_until_ready(ref_forward(x2, p2, 1, False))
    assert out2.shape == ref2.shape == (N, C2, H, W), out2.shape
    err2 = float(jnp.max(jnp.abs(out2 - ref2)))
    assert jnp.allclose(out2, ref2, rtol=2e-2, atol=5e-2), err2

    print("KERNEL_OK")
</pallas_src>

<mosaic_0001>
module attributes {stable_mosaic.version = 11 : i64} {
  func.func @_bn_res_relu_kernel(%arg0: i32, %arg1: i32, %arg2: memref<512x128xf32, #tpu.memory_space<vmem>>, %arg3: memref<1x128xf32, #tpu.memory_space<vmem>>, %arg4: memref<1x128xf32, #tpu.memory_space<vmem>>, %arg5: memref<1x128xf32, #tpu.memory_space<vmem>>, %arg6: memref<1x128xf32, #tpu.memory_space<vmem>>, %arg7: memref<512x128xbf16, #tpu.memory_space<vmem>>) attributes {dimension_semantics = [#tpu.dimension_semantics<parallel>, #tpu.dimension_semantics<parallel>], iteration_bounds = array<i64: 1, 1>, scalar_prefetch = 0 : i64, scratch_operands = 0 : i64, tpu.core_type = #tpu.core_type<tc>, window_params = [{transform_indices = @transform_0, window_bounds = array<i64: 512, 128>}, {transform_indices = @transform_1, window_bounds = array<i64: 1, 128>}, {transform_indices = @transform_2, window_bounds = array<i64: 1, 128>}, {transform_indices = @transform_3, window_bounds = array<i64: 1, 128>}, {transform_indices = @transform_4, window_bounds = array<i64: 1, 128>}, {transform_indices = @transform_5, window_bounds = array<i64: 512, 128>}]} {
    %c0 = arith.constant 0 : index
    %c0_0 = arith.constant 0 : index
    %0 = vector.load %arg2[%c0, %c0_0] : memref<512x128xf32, #tpu.memory_space<vmem>>, vector<512x128xf32>
    %c0_1 = arith.constant 0 : index
    %c0_2 = arith.constant 0 : index
    %1 = vector.load %arg3[%c0_1, %c0_2] : memref<1x128xf32, #tpu.memory_space<vmem>>, vector<1x128xf32>
    %cst = arith.constant 0.001953125 : f32
    %2 = vector.broadcast %cst : f32 to vector<1x128xf32>
    %3 = arith.mulf %1, %2 : vector<1x128xf32>
    %c0_3 = arith.constant 0 : index
    %c0_4 = arith.constant 0 : index
    %4 = vector.load %arg4[%c0_3, %c0_4] : memref<1x128xf32, #tpu.memory_space<vmem>>, vector<1x128xf32>
    %cst_5 = arith.constant 0.001953125 : f32
    %5 = vector.broadcast %cst_5 : f32 to vector<1x128xf32>
    %6 = arith.mulf %4, %5 : vector<1x128xf32>
    %7 = arith.mulf %3, %3 : vector<1x128xf32>
    %8 = arith.subf %6, %7 : vector<1x128xf32>
    %9 = vector.broadcast %3 : vector<1x128xf32> to vector<512x128xf32>
    %10 = arith.subf %0, %9 : vector<512x128xf32>
    %cst_6 = arith.constant 9.99999974E-6 : f32
    %11 = vector.broadcast %cst_6 : f32 to vector<1x128xf32>
    %12 = arith.addf %8, %11 : vector<1x128xf32>
    %13 = math.rsqrt %12 : vector<1x128xf32>
    %14 = vector.broadcast %13 : vector<1x128xf32> to vector<512x128xf32>
    %15 = arith.mulf %10, %14 : vector<512x128xf32>
    %c0_7 = arith.constant 0 : index
    %c0_8 = arith.constant 0 : index
    %16 = vector.load %arg5[%c0_7, %c0_8] : memref<1x128xf32, #tpu.memory_space<vmem>>, vector<1x128xf32>
    %17 = vector.broadcast %16 : vector<1x128xf32> to vector<512x128xf32>
    %18 = arith.mulf %15, %17 : vector<512x128xf32>
    %c0_9 = arith.constant 0 : index
    %c0_10 = arith.constant 0 : index
    %19 = vector.load %arg6[%c0_9, %c0_10] : memref<1x128xf32, #tpu.memory_space<vmem>>, vector<1x128xf32>
    %20 = vector.broadcast %19 : vector<1x128xf32> to vector<512x128xf32>
    %21 = arith.addf %18, %20 : vector<512x128xf32>
    %cst_11 = arith.constant 0.000000e+00 : f32
    %22 = vector.broadcast %cst_11 : f32 to vector<512x128xf32>
    %23 = arith.maximumf %21, %22 : vector<512x128xf32>
    %24 = arith.truncf %23 : vector<512x128xf32> to vector<512x128xbf16>
    %c0_12 = arith.constant 0 : index
    %c0_13 = arith.constant 0 : index
    %25 = vector.load %arg7[%c0_12, %c0_13] : memref<512x128xbf16, #tpu.memory_space<vmem>>, vector<512x128xbf16>
    tpu.vector_store %arg7[%c0_12, %c0_13], %24 {strides = array<i32>} : memref<512x128xbf16, #tpu.memory_space<vmem>>, vector<512x128xbf16>,
    return
  }
  func.func @transform_0(%arg0: i32, %arg1: i32) -> (i32, i32) {
    %c0_i32 = arith.constant 0 : i32
    return %arg0, %arg1 : i32, i32
  }
  func.func @transform_1(%arg0: i32, %arg1: i32) -> (i32, i32) {
    %c0_i32 = arith.constant 0 : i32
    %c0_i32_0 = arith.constant 0 : i32
    return %c0_i32, %arg1 : i32, i32
  }
  func.func @transform_2(%arg0: i32, %arg1: i32) -> (i32, i32) {
    %c0_i32 = arith.constant 0 : i32
    %c0_i32_0 = arith.constant 0 : i32
    return %c0_i32, %arg1 : i32, i32
  }
  func.func @transform_3(%arg0: i32, %arg1: i32) -> (i32, i32) {
    %c0_i32 = arith.constant 0 : i32
    %c0_i32_0 = arith.constant 0 : i32
    return %c0_i32, %arg1 : i32, i32
  }
  func.func @transform_4(%arg0: i32, %arg1: i32) -> (i32, i32) {
    %c0_i32 = arith.constant 0 : i32
    %c0_i32_0 = arith.constant 0 : i32
    return %c0_i32, %arg1 : i32, i32
  }
  func.func @transform_5(%arg0: i32, %arg1: i32) -> (i32, i32) {
    %c0_i32 = arith.constant 0 : i32
    return %arg0, %arg1 : i32, i32
  }
}

module attributes {stable_mosaic.version = 11 : i64} {
  func.func @_conv_matmul_stats_kernel(%arg0: i32, %arg1: i32, %arg2: i32, %arg3: memref<512x128xbf16, #tpu.memory_space<vmem>>, %arg4: memref<128x128xbf16, #tpu.memory_space<vmem>>, %arg5: memref<512x128xf32, #tpu.memory_space<vmem>>, %arg6: memref<1x128xf32, #tpu.memory_space<vmem>>, %arg7: memref<1x128xf32, #tpu.memory_space<vmem>>, %arg8: memref<512x128xf32, #tpu.memory_space<vmem>>) attributes {dimension_semantics = [#tpu.dimension_semantics<parallel>, #tpu.dimension_semantics<arbitrary>, #tpu.dimension_semantics<arbitrary>], iteration_bounds = array<i64: 1, 1, 1>, scalar_prefetch = 0 : i64, scratch_operands = 1 : i64, tpu.core_type = #tpu.core_type<tc>, window_params = [{transform_indices = @transform_0, window_bounds = array<i64: 512, 128>}, {transform_indices = @transform_1, window_bounds = array<i64: 128, 128>}, {transform_indices = @transform_2, window_bounds = array<i64: 512, 128>}, {transform_indices = @transform_3, window_bounds = array<i64: 1, 128>}, {transform_indices = @transform_4, window_bounds = array<i64: 1, 128>}]} {
    %c0_i32 = arith.constant 0 : i32
    %0 = arith.cmpi eq, %arg2, %c0_i32 : i32
    %1 = arith.extui %0 : i1 to i32
    %c0_i32_0 = arith.constant 0 : i32
    %2 = arith.cmpi ne, %1, %c0_i32_0 : i32
    scf.if %2 {
      %cst_13 = arith.constant 0.000000e+00 : f32
      %17 = vector.broadcast %cst_13 : f32 to vector<512x128xf32>
      %c0_14 = arith.constant 0 : index
      %c0_15 = arith.constant 0 : index
      %18 = vector.load %arg8[%c0_14, %c0_15] : memref<512x128xf32, #tpu.memory_space<vmem>>, vector<512x128xf32>
      tpu.vector_store %arg8[%c0_14, %c0_15], %17 {strides = array<i32>} : memref<512x128xf32, #tpu.memory_space<vmem>>, vector<512x128xf32>,
    } else {
    }
    %c0_i32_1 = arith.constant 0 : i32
    %3 = arith.cmpi eq, %arg1, %c0_i32_1 : i32
    %c0_i32_2 = arith.constant 0 : i32
    %4 = arith.cmpi eq, %arg2, %c0_i32_2 : i32
    %5 = arith.andi %3, %4 : i1
    %6 = arith.extui %5 : i1 to i32
    %c0_i32_3 = arith.constant 0 : i32
    %7 = arith.cmpi ne, %6, %c0_i32_3 : i32
    scf.if %7 {
      %cst_13 = arith.constant 0.000000e+00 : f32
      %17 = vector.broadcast %cst_13 : f32 to vector<1x128xf32>
      %c0_14 = arith.constant 0 : index
      %c0_15 = arith.constant 0 : index
      %18 = vector.load %arg6[%c0_14, %c0_15] : memref<1x128xf32, #tpu.memory_space<vmem>>, vector<1x128xf32>
      tpu.vector_store %arg6[%c0_14, %c0_15], %17 {strides = array<i32>} : memref<1x128xf32, #tpu.memory_space<vmem>>, vector<1x128xf32>,
      %cst_16 = arith.constant 0.000000e+00 : f32
      %19 = vector.broadcast %cst_16 : f32 to vector<1x128xf32>
      %c0_17 = arith.constant 0 : index
      %c0_18 = arith.constant 0 : index
      %20 = vector.load %arg7[%c0_17, %c0_18] : memref<1x128xf32, #tpu.memory_space<vmem>>, vector<1x128xf32>
      tpu.vector_store %arg7[%c0_17, %c0_18], %19 {strides = array<i32>} : memref<1x128xf32, #tpu.memory_space<vmem>>, vector<1x128xf32>,
    } else {
    }
    %c0 = arith.constant 0 : index
    %c0_4 = arith.constant 0 : index
    %8 = vector.load %arg8[%c0, %c0_4] : memref<512x128xf32, #tpu.memory_space<vmem>>, vector<512x128xf32>
    %c0_5 = arith.constant 0 : index
    %c0_6 = arith.constant 0 : index
    %9 = vector.load %arg3[%c0_5, %c0_6] : memref<512x128xbf16, #tpu.memory_space<vmem>>, vector<512x128xbf16>
    %c0_7 = arith.constant 0 : index
    %c0_8 = arith.constant 0 : index
    %10 = vector.load %arg4[%c0_7, %c0_8] : memref<128x128xbf16, #tpu.memory_space<vmem>>, vector<128x128xbf16>
    %cst = arith.constant dense<0.000000e+00> : vector<512x128xf32>
    %11 = tpu.matmul %9, %10, %cst {dimension_numbers = #tpu.dot_dimension_numbers<[1], [0], [0], [1], [0, 0, 1, 1], [], []>} : vector<512x128xbf16>, vector<128x128xbf16>, vector<512x128xf32> -> vector<512x128xf32>
    %12 = arith.addf %8, %11 : vector<512x128xf32>
    %c0_9 = arith.constant 0 : index
    %c0_10 = arith.constant 0 : index
    %13 = vector.load %arg8[%c0_9, %c0_10] : memref<512x128xf32, #tpu.memory_space<vmem>>, vector<512x128xf32>
    tpu.vector_store %arg8[%c0_9, %c0_10], %12 {strides = array<i32>} : memref<512x128xf32, #tpu.memory_space<vmem>>, vector<512x128xf32>,
    %c0_i32_11 = arith.constant 0 : i32
    %14 = arith.cmpi eq, %arg2, %c0_i32_11 : i32
    %15 = arith.extui %14 : i1 to i32
    %c0_i32_12 = arith.constant 0 : i32
    %16 = arith.cmpi ne, %15, %c0_i32_12 : i32
    scf.if %16 {
      %c0_13 = arith.constant 0 : index
      %c0_14 = arith.constant 0 : index
      %17 = vector.load %arg8[%c0_13, %c0_14] : memref<512x128xf32, #tpu.memory_space<vmem>>, vector<512x128xf32>
      %c0_15 = arith.constant 0 : index
      %c0_16 = arith.constant 0 : index
      %18 = vector.load %arg5[%c0_15, %c0_16] : memref<512x128xf32, #tpu.memory_space<vmem>>, vector<512x128xf32>
      tpu.vector_store %arg5[%c0_15, %c0_16], %17 {strides = array<i32>} : memref<512x128xf32, #tpu.memory_space<vmem>>, vector<512x128xf32>,
      %c0_17 = arith.constant 0 : index
      %c0_18 = arith.constant 0 : index
      %19 = vector.load %arg6[%c0_17, %c0_18] : memref<1x128xf32, #tpu.memory_space<vmem>>, vector<1x128xf32>
      %cst_19 = arith.constant dense<0.000000e+00> : vector<128xf32>
      %20 = vector.multi_reduction <add>, %17, %cst_19 [0] : vector<512x128xf32> to vector<128xf32>
      %21 = vector.shape_cast %20 : vector<128xf32> to vector<1x128xf32>
      %22 = arith.addf %19, %21 : vector<1x128xf32>
      %c0_20 = arith.constant 0 : index
      %c0_21 = arith.constant 0 : index
      %23 = vector.load %arg6[%c0_20, %c0_21] : memref<1x128xf32, #tpu.memory_space<vmem>>, vector<1x128xf32>
      tpu.vector_store %arg6[%c0_20, %c0_21], %22 {strides = array<i32>} : memref<1x128xf32, #tpu.memory_space<vmem>>, vector<1x128xf32>,
      %c0_22 = arith.constant 0 : index
      %c0_23 = arith.constant 0 : index
      %24 = vector.load %arg7[%c0_22, %c0_23] : memref<1x128xf32, #tpu.memory_space<vmem>>, vector<1x128xf32>
      %25 = arith.mulf %17, %17 : vector<512x128xf32>
      %cst_24 = arith.constant dense<0.000000e+00> : vector<128xf32>
      %26 = vector.multi_reduction <add>, %25, %cst_24 [0] : vector<512x128xf32> to vector<128xf32>
      %27 = vector.shape_cast %26 : vector<128xf32> to vector<1x128xf32>
      %28 = arith.addf %24, %27 : vector<1x128xf32>
      %c0_25 = arith.constant 0 : index
      %c0_26 = arith.constant 0 : index
      %29 = vector.load %arg7[%c0_25, %c0_26] : memref<1x128xf32, #tpu.memory_space<vmem>>, vector<1x128xf32>
      tpu.vector_store %arg7[%c0_25, %c0_26], %28 {strides = array<i32>} : memref<1x128xf32, #tpu.memory_space<vmem>>, vector<1x128xf32>,
    } else {
    }
    return
  }
  func.func @transform_0(%arg0: i32, %arg1: i32, %arg2: i32) -> (i32, i32) {
    %c0_i32 = arith.constant 0 : i32
    return %arg1, %arg2 : i32, i32
  }
  func.func @transform_1(%arg0: i32, %arg1: i32, %arg2: i32) -> (i32, i32) {
    %c0_i32 = arith.constant 0 : i32
    return %arg2, %arg0 : i32, i32
  }
  func.func @transform_2(%arg0: i32, %arg1: i32, %arg2: i32) -> (i32, i32) {
    %c0_i32 = arith.constant 0 : i32
    return %arg1, %arg0 : i32, i32
  }
  func.func @transform_3(%arg0: i32, %arg1: i32, %arg2: i32) -> (i32, i32) {
    %c0_i32 = arith.constant 0 : i32
    %c0_i32_0 = arith.constant 0 : i32
    return %c0_i32, %arg0 : i32, i32
  }
  func.func @transform_4(%arg0: i32, %arg1: i32, %arg2: i32) -> (i32, i32) {
    %c0_i32 = arith.constant 0 : i32
    %c0_i32_0 = arith.constant 0 : i32
    return %c0_i32, %arg0 : i32, i32
  }
}

module attributes {stable_mosaic.version = 11 : i64} {
  func.func @_conv_matmul_stats_kernel(%arg0: i32, %arg1: i32, %arg2: i32, %arg3: memref<128x128xbf16, #tpu.memory_space<vmem>>, %arg4: memref<128x128xbf16, #tpu.memory_space<vmem>>, %arg5: memref<128x128xf32, #tpu.memory_space<vmem>>, %arg6: memref<1x128xf32, #tpu.memory_space<vmem>>, %arg7: memref<1x128xf32, #tpu.memory_space<vmem>>, %arg8: memref<128x128xf32, #tpu.memory_space<vmem>>) attributes {dimension_semantics = [#tpu.dimension_semantics<parallel>, #tpu.dimension_semantics<arbitrary>, #tpu.dimension_semantics<arbitrary>], iteration_bounds = array<i64: 1, 1, 1>, scalar_prefetch = 0 : i64, scratch_operands = 1 : i64, tpu.core_type = #tpu.core_type<tc>, window_params = [{transform_indices = @transform_0, window_bounds = array<i64: 128, 128>}, {transform_indices = @transform_1, window_bounds = array<i64: 128, 128>}, {transform_indices = @transform_2, window_bounds = array<i64: 128, 128>}, {transform_indices = @transform_3, window_bounds = array<i64: 1, 128>}, {transform_indices = @transform_4, window_bounds = array<i64: 1, 128>}]} {
    %c0_i32 = arith.constant 0 : i32
    %0 = arith.cmpi eq, %arg2, %c0_i32 : i32
    %1 = arith.extui %0 : i1 to i32
    %c0_i32_0 = arith.constant 0 : i32
    %2 = arith.cmpi ne, %1, %c0_i32_0 : i32
    scf.if %2 {
      %cst_13 = arith.constant 0.000000e+00 : f32
      %17 = vector.broadcast %cst_13 : f32 to vector<128x128xf32>
      %c0_14 = arith.constant 0 : index
      %c0_15 = arith.constant 0 : index
      %18 = vector.load %arg8[%c0_14, %c0_15] : memref<128x128xf32, #tpu.memory_space<vmem>>, vector<128x128xf32>
      tpu.vector_store %arg8[%c0_14, %c0_15], %17 {strides = array<i32>} : memref<128x128xf32, #tpu.memory_space<vmem>>, vector<128x128xf32>,
    } else {
    }
    %c0_i32_1 = arith.constant 0 : i32
    %3 = arith.cmpi eq, %arg1, %c0_i32_1 : i32
    %c0_i32_2 = arith.constant 0 : i32
    %4 = arith.cmpi eq, %arg2, %c0_i32_2 : i32
    %5 = arith.andi %3, %4 : i1
    %6 = arith.extui %5 : i1 to i32
    %c0_i32_3 = arith.constant 0 : i32
    %7 = arith.cmpi ne, %6, %c0_i32_3 : i32
    scf.if %7 {
      %cst_13 = arith.constant 0.000000e+00 : f32
      %17 = vector.broadcast %cst_13 : f32 to vector<1x128xf32>
      %c0_14 = arith.constant 0 : index
      %c0_15 = arith.constant 0 : index
      %18 = vector.load %arg6[%c0_14, %c0_15] : memref<1x128xf32, #tpu.memory_space<vmem>>, vector<1x128xf32>
      tpu.vector_store %arg6[%c0_14, %c0_15], %17 {strides = array<i32>} : memref<1x128xf32, #tpu.memory_space<vmem>>, vector<1x128xf32>,
      %cst_16 = arith.constant 0.000000e+00 : f32
      %19 = vector.broadcast %cst_16 : f32 to vector<1x128xf32>
      %c0_17 = arith.constant 0 : index
      %c0_18 = arith.constant 0 : index
      %20 = vector.load %arg7[%c0_17, %c0_18] : memref<1x128xf32, #tpu.memory_space<vmem>>, vector<1x128xf32>
      tpu.vector_store %arg7[%c0_17, %c0_18], %19 {strides = array<i32>} : memref<1x128xf32, #tpu.memory_space<vmem>>, vector<1x128xf32>,
    } else {
    }
    %c0 = arith.constant 0 : index
    %c0_4 = arith.constant 0 : index
    %8 = vector.load %arg8[%c0, %c0_4] : memref<128x128xf32, #tpu.memory_space<vmem>>, vector<128x128xf32>
    %c0_5 = arith.constant 0 : index
    %c0_6 = arith.constant 0 : index
    %9 = vector.load %arg3[%c0_5, %c0_6] : memref<128x128xbf16, #tpu.memory_space<vmem>>, vector<128x128xbf16>
    %c0_7 = arith.constant 0 : index
    %c0_8 = arith.constant 0 : index
    %10 = vector.load %arg4[%c0_7, %c0_8] : memref<128x128xbf16, #tpu.memory_space<vmem>>, vector<128x128xbf16>
    %cst = arith.constant dense<0.000000e+00> : vector<128x128xf32>
    %11 = tpu.matmul %9, %10, %cst {dimension_numbers = #tpu.dot_dimension_numbers<[1], [0], [0], [1], [0, 0, 1, 1], [], []>} : vector<128x128xbf16>, vector<128x128xbf16>, vector<128x128xf32> -> vector<128x128xf32>
    %12 = arith.addf %8, %11 : vector<128x128xf32>
    %c0_9 = arith.constant 0 : index
    %c0_10 = arith.constant 0 : index
    %13 = vector.load %arg8[%c0_9, %c0_10] : memref<128x128xf32, #tpu.memory_space<vmem>>, vector<128x128xf32>
    tpu.vector_store %arg8[%c0_9, %c0_10], %12 {strides = array<i32>} : memref<128x128xf32, #tpu.memory_space<vmem>>, vector<128x128xf32>,
    %c0_i32_11 = arith.constant 0 : i32
    %14 = arith.cmpi eq, %arg2, %c0_i32_11 : i32
    %15 = arith.extui %14 : i1 to i32
    %c0_i32_12 = arith.constant 0 : i32
    %16 = arith.cmpi ne, %15, %c0_i32_12 : i32
    scf.if %16 {
      %c0_13 = arith.constant 0 : index
      %c0_14 = arith.constant 0 : index
      %17 = vector.load %arg8[%c0_13, %c0_14] : memref<128x128xf32, #tpu.memory_space<vmem>>, vector<128x128xf32>
      %c0_15 = arith.constant 0 : index
      %c0_16 = arith.constant 0 : index
      %18 = vector.load %arg5[%c0_15, %c0_16] : memref<128x128xf32, #tpu.memory_space<vmem>>, vector<128x128xf32>
      tpu.vector_store %arg5[%c0_15, %c0_16], %17 {strides = array<i32>} : memref<128x128xf32, #tpu.memory_space<vmem>>, vector<128x128xf32>,
      %c0_17 = arith.constant 0 : index
      %c0_18 = arith.constant 0 : index
      %19 = vector.load %arg6[%c0_17, %c0_18] : memref<1x128xf32, #tpu.memory_space<vmem>>, vector<1x128xf32>
      %cst_19 = arith.constant dense<0.000000e+00> : vector<128xf32>
      %20 = vector.multi_reduction <add>, %17, %cst_19 [0] : vector<128x128xf32> to vector<128xf32>
      %21 = vector.shape_cast %20 : vector<128xf32> to vector<1x128xf32>
      %22 = arith.addf %19, %21 : vector<1x128xf32>
      %c0_20 = arith.constant 0 : index
      %c0_21 = arith.constant 0 : index
      %23 = vector.load %arg6[%c0_20, %c0_21] : memref<1x128xf32, #tpu.memory_space<vmem>>, vector<1x128xf32>
      tpu.vector_store %arg6[%c0_20, %c0_21], %22 {strides = array<i32>} : memref<1x128xf32, #tpu.memory_space<vmem>>, vector<1x128xf32>,
      %c0_22 = arith.constant 0 : index
      %c0_23 = arith.constant 0 : index
      %24 = vector.load %arg7[%c0_22, %c0_23] : memref<1x128xf32, #tpu.memory_space<vmem>>, vector<1x128xf32>
      %25 = arith.mulf %17, %17 : vector<128x128xf32>
      %cst_24 = arith.constant dense<0.000000e+00> : vector<128xf32>
      %26 = vector.multi_reduction <add>, %25, %cst_24 [0] : vector<128x128xf32> to vector<128xf32>
      %27 = vector.shape_cast %26 : vector<128xf32> to vector<1x128xf32>
      %28 = arith.addf %24, %27 : vector<1x128xf32>
      %c0_25 = arith.constant 0 : index
      %c0_26 = arith.constant 0 : index
      %29 = vector.load %arg7[%c0_25, %c0_26] : memref<1x128xf32, #tpu.memory_space<vmem>>, vector<1x128xf32>
      tpu.vector_store %arg7[%c0_25, %c0_26], %28 {strides = array<i32>} : memref<1x128xf32, #tpu.memory_space<vmem>>, vector<1x128xf32>,
    } else {
    }
    return
  }
  func.func @transform_0(%arg0: i32, %arg1: i32, %arg2: i32) -> (i32, i32) {
    %c0_i32 = arith.constant 0 : i32
    return %arg1, %arg2 : i32, i32
  }
  func.func @transform_1(%arg0: i32, %arg1: i32, %arg2: i32) -> (i32, i32) {
    %c0_i32 = arith.constant 0 : i32
    return %arg2, %arg0 : i32, i32
  }
  func.func @transform_2(%arg0: i32, %arg1: i32, %arg2: i32) -> (i32, i32) {
    %c0_i32 = arith.constant 0 : i32
    return %arg1, %arg0 : i32, i32
  }
  func.func @transform_3(%arg0: i32, %arg1: i32, %arg2: i32) -> (i32, i32) {
    %c0_i32 = arith.constant 0 : i32
    %c0_i32_0 = arith.constant 0 : i32
    return %c0_i32, %arg0 : i32, i32
  }
  func.func @transform_4(%arg0: i32, %arg1: i32, %arg2: i32) -> (i32, i32) {
    %c0_i32 = arith.constant 0 : i32
    %c0_i32_0 = arith.constant 0 : i32
    return %c0_i32, %arg0 : i32, i32
  }
}

module attributes {stable_mosaic.version = 11 : i64} {
  func.func @_bn_res_relu_kernel(%arg0: i32, %arg1: i32, %arg2: memref<128x128xf32, #tpu.memory_space<vmem>>, %arg3: memref<1x128xf32, #tpu.memory_space<vmem>>, %arg4: memref<1x128xf32, #tpu.memory_space<vmem>>, %arg5: memref<1x128xf32, #tpu.memory_space<vmem>>, %arg6: memref<1x128xf32, #tpu.memory_space<vmem>>, %arg7: memref<128x128xf32, #tpu.memory_space<vmem>>, %arg8: memref<1x128xf32, #tpu.memory_space<vmem>>, %arg9: memref<1x128xf32, #tpu.memory_space<vmem>>, %arg10: memref<1x128xf32, #tpu.memory_space<vmem>>, %arg11: memref<1x128xf32, #tpu.memory_space<vmem>>, %arg12: memref<128x128xf32, #tpu.memory_space<vmem>>) attributes {dimension_semantics = [#tpu.dimension_semantics<parallel>, #tpu.dimension_semantics<parallel>], iteration_bounds = array<i64: 1, 1>, scalar_prefetch = 0 : i64, scratch_operands = 0 : i64, tpu.core_type = #tpu.core_type<tc>, window_params = [{transform_indices = @transform_0, window_bounds = array<i64: 128, 128>}, {transform_indices = @transform_1, window_bounds = array<i64: 1, 128>}, {transform_indices = @transform_2, window_bounds = array<i64: 1, 128>}, {transform_indices = @transform_3, window_bounds = array<i64: 1, 128>}, {transform_indices = @transform_4, window_bounds = array<i64: 1, 128>}, {transform_indices = @transform_5, window_bounds = array<i64: 128, 128>}, {transform_indices = @transform_6, window_bounds = array<i64: 1, 128>}, {transform_indices = @transform_7, window_bounds = array<i64: 1, 128>}, {transform_indices = @transform_8, window_bounds = array<i64: 1, 128>}, {transform_indices = @transform_9, window_bounds = array<i64: 1, 128>}, {transform_indices = @transform_10, window_bounds = array<i64: 128, 128>}]} {
    %c0 = arith.constant 0 : index
    %c0_0 = arith.constant 0 : index
    %0 = vector.load %arg2[%c0, %c0_0] : memref<128x128xf32, #tpu.memory_space<vmem>>, vector<128x128xf32>
    %c0_1 = arith.constant 0 : index
    %c0_2 = arith.constant 0 : index
    %1 = vector.load %arg3[%c0_1, %c0_2] : memref<1x128xf32, #tpu.memory_space<vmem>>, vector<1x128xf32>
    %cst = arith.constant 7.812500e-03 : f32
    %2 = vector.broadcast %cst : f32 to vector<1x128xf32>
    %3 = arith.mulf %1, %2 : vector<1x128xf32>
    %c0_3 = arith.constant 0 : index
    %c0_4 = arith.constant 0 : index
    %4 = vector.load %arg4[%c0_3, %c0_4] : memref<1x128xf32, #tpu.memory_space<vmem>>, vector<1x128xf32>
    %cst_5 = arith.constant 7.812500e-03 : f32
    %5 = vector.broadcast %cst_5 : f32 to vector<1x128xf32>
    %6 = arith.mulf %4, %5 : vector<1x128xf32>
    %7 = arith.mulf %3, %3 : vector<1x128xf32>
    %8 = arith.subf %6, %7 : vector<1x128xf32>
    %9 = vector.broadcast %3 : vector<1x128xf32> to vector<128x128xf32>
    %10 = arith.subf %0, %9 : vector<128x128xf32>
    %cst_6 = arith.constant 9.99999974E-6 : f32
    %11 = vector.broadcast %cst_6 : f32 to vector<1x128xf32>
    %12 = arith.addf %8, %11 : vector<1x128xf32>
    %13 = math.rsqrt %12 : vector<1x128xf32>
    %14 = vector.broadcast %13 : vector<1x128xf32> to vector<128x128xf32>
    %15 = arith.mulf %10, %14 : vector<128x128xf32>
    %c0_7 = arith.constant 0 : index
    %c0_8 = arith.constant 0 : index
    %16 = vector.load %arg5[%c0_7, %c0_8] : memref<1x128xf32, #tpu.memory_space<vmem>>, vector<1x128xf32>
    %17 = vector.broadcast %16 : vector<1x128xf32> to vector<128x128xf32>
    %18 = arith.mulf %15, %17 : vector<128x128xf32>
    %c0_9 = arith.constant 0 : index
    %c0_10 = arith.constant 0 : index
    %19 = vector.load %arg6[%c0_9, %c0_10] : memref<1x128xf32, #tpu.memory_space<vmem>>, vector<1x128xf32>
    %20 = vector.broadcast %19 : vector<1x128xf32> to vector<128x128xf32>
    %21 = arith.addf %18, %20 : vector<128x128xf32>
    %c0_11 = arith.constant 0 : index
    %c0_12 = arith.constant 0 : index
    %22 = vector.load %arg7[%c0_11, %c0_12] : memref<128x128xf32, #tpu.memory_space<vmem>>, vector<128x128xf32>
    %c0_13 = arith.constant 0 : index
    %c0_14 = arith.constant 0 : index
    %23 = vector.load %arg8[%c0_13, %c0_14] : memref<1x128xf32, #tpu.memory_space<vmem>>, vector<1x128xf32>
    %cst_15 = arith.constant 7.812500e-03 : f32
    %24 = vector.broadcast %cst_15 : f32 to vector<1x128xf32>
    %25 = arith.mulf %23, %24 : vector<1x128xf32>
    %c0_16 = arith.constant 0 : index
    %c0_17 = arith.constant 0 : index
    %26 = vector.load %arg9[%c0_16, %c0_17] : memref<1x128xf32, #tpu.memory_space<vmem>>, vector<1x128xf32>
    %cst_18 = arith.constant 7.812500e-03 : f32
    %27 = vector.broadcast %cst_18 : f32 to vector<1x128xf32>
    %28 = arith.mulf %26, %27 : vector<1x128xf32>
    %29 = arith.mulf %25, %25 : vector<1x128xf32>
    %30 = arith.subf %28, %29 : vector<1x128xf32>
    %31 = vector.broadcast %25 : vector<1x128xf32> to vector<128x128xf32>
    %32 = arith.subf %22, %31 : vector<128x128xf32>
    %cst_19 = arith.constant 9.99999974E-6 : f32
    %33 = vector.broadcast %cst_19 : f32 to vector<1x128xf32>
    %34 = arith.addf %30, %33 : vector<1x128xf32>
    %35 = math.rsqrt %34 : vector<1x128xf32>
    %36 = vector.broadcast %35 : vector<1x128xf32> to vector<128x128xf32>
    %37 = arith.mulf %32, %36 : vector<128x128xf32>
    %c0_20 = arith.constant 0 : index
    %c0_21 = arith.constant 0 : index
    %38 = vector.load %arg10[%c0_20, %c0_21] : memref<1x128xf32, #tpu.memory_space<vmem>>, vector<1x128xf32>
    %39 = vector.broadcast %38 : vector<1x128xf32> to vector<128x128xf32>
    %40 = arith.mulf %37, %39 : vector<128x128xf32>
    %c0_22 = arith.constant 0 : index
    %c0_23 = arith.constant 0 : index
    %41 = vector.load %arg11[%c0_22, %c0_23] : memref<1x128xf32, #tpu.memory_space<vmem>>, vector<1x128xf32>
    %42 = vector.broadcast %41 : vector<1x128xf32> to vector<128x128xf32>
    %43 = arith.addf %40, %42 : vector<128x128xf32>
    %44 = arith.addf %21, %43 : vector<128x128xf32>
    %cst_24 = arith.constant 0.000000e+00 : f32
    %45 = vector.broadcast %cst_24 : f32 to vector<128x128xf32>
    %46 = arith.maximumf %44, %45 : vector<128x128xf32>
    %c0_25 = arith.constant 0 : index
    %c0_26 = arith.constant 0 : index
    %47 = vector.load %arg12[%c0_25, %c0_26] : memref<128x128xf32, #tpu.memory_space<vmem>>, vector<128x128xf32>
    tpu.vector_store %arg12[%c0_25, %c0_26], %46 {strides = array<i32>} : memref<128x128xf32, #tpu.memory_space<vmem>>, vector<128x128xf32>,
    return
  }
  func.func @transform_0(%arg0: i32, %arg1: i32) -> (i32, i32) {
    %c0_i32 = arith.constant 0 : i32
    return %arg0, %arg1 : i32, i32
  }
  func.func @transform_1(%arg0: i32, %arg1: i32) -> (i32, i32) {
    %c0_i32 = arith.constant 0 : i32
    %c0_i32_0 = arith.constant 0 : i32
    return %c0_i32, %arg1 : i32, i32
  }
  func.func @transform_2(%arg0: i32, %arg1: i32) -> (i32, i32) {
    %c0_i32 = arith.constant 0 : i32
    %c0_i32_0 = arith.constant 0 : i32
    return %c0_i32, %arg1 : i32, i32
  }
  func.func @transform_3(%arg0: i32, %arg1: i32) -> (i32, i32) {
    %c0_i32 = arith.constant 0 : i32
    %c0_i32_0 = arith.constant 0 : i32
    return %c0_i32, %arg1 : i32, i32
  }
  func.func @transform_4(%arg0: i32, %arg1: i32) -> (i32, i32) {
    %c0_i32 = arith.constant 0 : i32
    %c0_i32_0 = arith.constant 0 : i32
    return %c0_i32, %arg1 : i32, i32
  }
  func.func @transform_5(%arg0: i32, %arg1: i32) -> (i32, i32) {
    %c0_i32 = arith.constant 0 : i32
    return %arg0, %arg1 : i32, i32
  }
  func.func @transform_6(%arg0: i32, %arg1: i32) -> (i32, i32) {
    %c0_i32 = arith.constant 0 : i32
    %c0_i32_0 = arith.constant 0 : i32
    return %c0_i32, %arg1 : i32, i32
  }
  func.func @transform_7(%arg0: i32, %arg1: i32) -> (i32, i32) {
    %c0_i32 = arith.constant 0 : i32
    %c0_i32_0 = arith.constant 0 : i32
    return %c0_i32, %arg1 : i32, i32
  }
  func.func @transform_8(%arg0: i32, %arg1: i32) -> (i32, i32) {
    %c0_i32 = arith.constant 0 : i32
    %c0_i32_0 = arith.constant 0 : i32
    return %c0_i32, %arg1 : i32, i32
  }
  func.func @transform_9(%arg0: i32, %arg1: i32) -> (i32, i32) {
    %c0_i32 = arith.constant 0 : i32
    %c0_i32_0 = arith.constant 0 : i32
    return %c0_i32, %arg1 : i32, i32
  }
  func.func @transform_10(%arg0: i32, %arg1: i32) -> (i32, i32) {
    %c0_i32 = arith.constant 0 : i32
    return %arg0, %arg1 : i32, i32
  }
}

</mosaic_0001>

<llo_original>
// kernel: basic_block_forward.6
$region0: #{basic_block_forward.6}
  #allocation0 [shape = 'u32[]', space=smem, size = 0x4, offset = 0x4, fixed_abs, tag = 'smem constant byte address 0x4 - core index']
  #allocation1 [shape = 'u32[144,128]{1,0:T(1,128)}', space=vmem, size = 0x12000, scoped, tag = 'internal scratch']
  %s0 = inlined_call_operand.vmem [shape: f32[512,128], index: 0, kind: input, shape index: {}]
  %s1 = inlined_call_operand.vmem [shape: f32[1,128], index: 1, kind: input, shape index: {}]
  %s2 = inlined_call_operand.vmem [shape: f32[1,128], index: 2, kind: input, shape index: {}]
  %s3 = inlined_call_operand.vmem [shape: f32[1,128], index: 3, kind: input, shape index: {}]
  %s4 = inlined_call_operand.vmem [shape: f32[1,128], index: 4, kind: input, shape index: {}]
  %s5 = inlined_call_operand.vmem [shape: bf16[512,128], index: 5, kind: output, shape index: {}]
  %s6 = sld [smem:[#allocation0]]
  $region30: #{basic_block_forward.6} parent=0
    _
  %s8 = ssub.s32 1, %s6
  %s9 = scalar_select 0, %s8, %s6
  // Predicated region
  $region2: #{basic_block_forward.6} parent=0 // pred_check
    _
  $region3: #{basic_block_forward.6} parent=0 // pred_check_branch
    %11 = sbr.rel (0) target = $region5
  $region4: #{basic_block_forward.6} parent=0 // pred_region
    _
  $region5: #{basic_block_forward.6} parent=0 // pred_fallthru
    _
  // Predicated region
  $region6: #{basic_block_forward.6} parent=0 // pred_check
    _
  $region7: #{basic_block_forward.6} parent=0 // pred_check_branch
    %13 = sbr.rel (0) target = $region9
  $region8: #{basic_block_forward.6} parent=0 // pred_region
    _
  $region9: #{basic_block_forward.6} parent=0 // pred_fallthru
    _
  // Predicated region
  $region10: #{basic_block_forward.6} parent=0 // pred_check
    _
  $region11: #{basic_block_forward.6} parent=0 // pred_check_branch
    %15 = sbr.rel (0) target = $region13
  $region12: #{basic_block_forward.6} parent=0 // pred_region
    _
  $region13: #{basic_block_forward.6} parent=0 // pred_fallthru
    _
  // Predicated region
  $region14: #{basic_block_forward.6} parent=0 // pred_check
    _
  $region15: #{basic_block_forward.6} parent=0 // pred_check_branch
    %17 = sbr.rel (0) target = $region17
  $region16: #{basic_block_forward.6} parent=0 // pred_region
    _
  $region17: #{basic_block_forward.6} parent=0 // pred_fallthru
    _
  // Predicated region
  $region18: #{basic_block_forward.6} parent=0 // pred_check
    _
  $region19: #{basic_block_forward.6} parent=0 // pred_check_branch
    %19 = sbr.rel (0) target = $region21
  $region20: #{basic_block_forward.6} parent=0 // pred_region
    _
  $region21: #{basic_block_forward.6} parent=0 // pred_fallthru
    _
  %v20 = vld [vmem:[%s0] sm:$0xff]
  %v21 = vld [vmem:[%s0 + $0x8] sm:$0xff]
  %v22 = vld [vmem:[%s0 + $0x10] sm:$0xff]
  %v23 = vld [vmem:[%s0 + $0x18] sm:$0xff]
  %v24 = vld [vmem:[%s0 + $0x20] sm:$0xff]
  %v25 = vld [vmem:[%s0 + $0x28] sm:$0xff]
  %v26 = vld [vmem:[%s0 + $0x30] sm:$0xff]
  %v27 = vld [vmem:[%s0 + $0x38] sm:$0xff]
  %v28 = vld [vmem:[%s0 + $0x40] sm:$0xff]
  %v29 = vld [vmem:[%s0 + $0x48] sm:$0xff]
  %v30 = vld [vmem:[%s0 + $0x50] sm:$0xff]
  %v31 = vld [vmem:[%s0 + $0x58] sm:$0xff]
  %v32 = vld [vmem:[%s0 + $0x60] sm:$0xff]
  %v33 = vld [vmem:[%s0 + $0x68] sm:$0xff]
  %v34 = vld [vmem:[%s0 + $0x70] sm:$0xff]
  %v35 = vld [vmem:[%s0 + $0x78] sm:$0xff]
  %v36 = vld [vmem:[%s0 + $0x80] sm:$0xff]
  %v37 = vld [vmem:[%s0 + $0x88] sm:$0xff]
  %v38 = vld [vmem:[%s0 + $0x90] sm:$0xff]
  %v39 = vld [vmem:[%s0 + $0x98] sm:$0xff]
  %v40 = vld [vmem:[%s0 + $0xa0] sm:$0xff]
  %v41 = vld [vmem:[%s0 + $0xa8] sm:$0xff]
  %v42 = vld [vmem:[%s0 + $0xb0] sm:$0xff]
  %v43 = vld [vmem:[%s0 + $0xb8] sm:$0xff]
  %v44 = vld [vmem:[%s0 + $0xc0] sm:$0xff]
  %v45 = vld [vmem:[%s0 + $0xc8] sm:$0xff]
  %v46 = vld [vmem:[%s0 + $0xd0] sm:$0xff]
  %v47 = vld [vmem:[%s0 + $0xd8] sm:$0xff]
  %v48 = vld [vmem:[%s0 + $0xe0] sm:$0xff]
  %v49 = vld [vmem:[%s0 + $0xe8] sm:$0xff]
  %v50 = vld [vmem:[%s0 + $0xf0] sm:$0xff]
  %v51 = vld [vmem:[%s0 + $0xf8] sm:$0xff]
  %v52 = vld [vmem:[%s0 + $0x100] sm:$0xff]
  %v53 = vld [vmem:[%s0 + $0x108] sm:$0xff]
  %v54 = vld [vmem:[%s0 + $0x110] sm:$0xff]
  %v55 = vld [vmem:[%s0 + $0x118] sm:$0xff]
  %v56 = vld [vmem:[%s0 + $0x120] sm:$0xff]
  %v57 = vld [vmem:[%s0 + $0x128] sm:$0xff]
  %v58 = vld [vmem:[%s0 + $0x130] sm:$0xff]
  %v59 = vld [vmem:[%s0 + $0x138] sm:$0xff]
  %v60 = vld [vmem:[%s0 + $0x140] sm:$0xff]
  %v61 = vld [vmem:[%s0 + $0x148] sm:$0xff]
  %v62 = vld [vmem:[%s0 + $0x150] sm:$0xff]
  %v63 = vld [vmem:[%s0 + $0x158] sm:$0xff]
  %v64 = vld [vmem:[%s0 + $0x160] sm:$0xff]
  %v65 = vld [vmem:[%s0 + $0x168] sm:$0xff]
  %v66 = vld [vmem:[%s0 + $0x170] sm:$0xff]
  %v67 = vld [vmem:[%s0 + $0x178] sm:$0xff]
  %v68 = vld [vmem:[%s0 + $0x180] sm:$0xff]
  %v69 = vld [vmem:[%s0 + $0x188] sm:$0xff]
  %v70 = vld [vmem:[%s0 + $0x190] sm:$0xff]
  %v71 = vld [vmem:[%s0 + $0x198] sm:$0xff]
  %v72 = vld [vmem:[%s0 + $0x1a0] sm:$0xff]
  %v73 = vld [vmem:[%s0 + $0x1a8] sm:$0xff]
  %v74 = vld [vmem:[%s0 + $0x1b0] sm:$0xff]
  %v75 = vld [vmem:[%s0 + $0x1b8] sm:$0xff]
  %v76 = vld [vmem:[%s0 + $0x1c0] sm:$0xff]
  %v77 = vld [vmem:[%s0 + $0x1c8] sm:$0xff]
  %v78 = vld [vmem:[%s0 + $0x1d0] sm:$0xff]
  %v79 = vld [vmem:[%s0 + $0x1d8] sm:$0xff]
  %v80 = vld [vmem:[%s0 + $0x1e0] sm:$0xff]
  %v81 = vld [vmem:[%s0 + $0x1e8] sm:$0xff]
  %v82 = vld [vmem:[%s0 + $0x1f0] sm:$0xff]
  %v83 = vld [vmem:[%s0 + $0x1f8] sm:$0xff]
  %v84 = vld [vmem:[%s1] sm:$0x1]
  %v85 = vmul.f32 %v84, 0.001953125
  %v86 = vld [vmem:[%s2] sm:$0x1]
  %v87 = vmul.f32 %v86, 0.001953125
  %v88 = vmul.f32 %v85, %v85
  %v89 = vsub.f32 %v87, %v88
  %v91 = vlaneseq
  %v92 = vshrl.u32 %v91, 7
  %v93 = vsub.s32 0, %v92
  %v94 = vrot.slane %v85, %v93
  %v96 = vsub.f32 %v20, %v94
  %v97 = vsub.f32 %v21, %v94
  %v98 = vsub.f32 %v22, %v94
  %v99 = vsub.f32 %v23, %v94
  %v100 = vsub.f32 %v24, %v94
  %v101 = vsub.f32 %v25, %v94
  %v102 = vsub.f32 %v26, %v94
  %v103 = vsub.f32 %v27, %v94
  %v104 = vsub.f32 %v28, %v94
  %v105 = vsub.f32 %v29, %v94
  %v106 = vsub.f32 %v30, %v94
  %v107 = vsub.f32 %v31, %v94
  %v108 = vsub.f32 %v32, %v94
  %v109 = vsub.f32 %v33, %v94
  %v110 = vsub.f32 %v34, %v94
  %v111 = vsub.f32 %v35, %v94
  %v112 = vsub.f32 %v36, %v94
  %v113 = vsub.f32 %v37, %v94
  %v114 = vsub.f32 %v38, %v94
  %v115 = vsub.f32 %v39, %v94
  %v116 = vsub.f32 %v40, %v94
  %v117 = vsub.f32 %v41, %v94
  %v118 = vsub.f32 %v42, %v94
  %v119 = vsub.f32 %v43, %v94
  %v120 = vsub.f32 %v44, %v94
  %v121 = vsub.f32 %v45, %v94
  %v122 = vsub.f32 %v46, %v94
  %v123 = vsub.f32 %v47, %v94
  %v124 = vsub.f32 %v48, %v94
  %v125 = vsub.f32 %v49, %v94
  %v126 = vsub.f32 %v50, %v94
  %v127 = vsub.f32 %v51, %v94
  %v128 = vsub.f32 %v52, %v94
  %v129 = vsub.f32 %v53, %v94
  %v130 = vsub.f32 %v54, %v94
  %v131 = vsub.f32 %v55, %v94
  %v132 = vsub.f32 %v56, %v94
  %v133 = vsub.f32 %v57, %v94
  %v134 = vsub.f32 %v58, %v94
  %v135 = vsub.f32 %v59, %v94
  %v136 = vsub.f32 %v60, %v94
  %v137 = vsub.f32 %v61, %v94
  %v138 = vsub.f32 %v62, %v94
  %v139 = vsub.f32 %v63, %v94
  %v140 = vsub.f32 %v64, %v94
  %v141 = vsub.f32 %v65, %v94
  %v142 = vsub.f32 %v66, %v94
  %v143 = vsub.f32 %v67, %v94
  %v144 = vsub.f32 %v68, %v94
  %v145 = vsub.f32 %v69, %v94
  %v146 = vsub.f32 %v70, %v94
  %v147 = vsub.f32 %v71, %v94
  %v148 = vsub.f32 %v72, %v94
  %v149 = vsub.f32 %v73, %v94
  %v150 = vsub.f32 %v74, %v94
  %v151 = vsub.f32 %v75, %v94
  %v152 = vsub.f32 %v76, %v94
  %v153 = vsub.f32 %v77, %v94
  %v154 = vsub.f32 %v78, %v94
  %v155 = vsub.f32 %v79, %v94
  %v156 = vsub.f32 %v80, %v94
  %v157 = vsub.f32 %v81, %v94
  %v158 = vsub.f32 %v82, %v94
  %v159 = vsub.f32 %v83, %v94
  %v160 = vadd.f32 %v89, 1e-05
  %v161 = vrsqrt.pop %v160
  %v163 = vlaneseq
  %v164 = vshrl.u32 %v163, 7
  %v165 = vsub.s32 0, %v164
  %v166 = vrot.slane %v161, %v165
  %v168 = vmul.f32 %v96, %v166
  %v169 = vmul.f32 %v97, %v166
  %v170 = vmul.f32 %v98, %v166
  %v171 = vmul.f32 %v99, %v166
  %v172 = vmul.f32 %v100, %v166
  %v173 = vmul.f32 %v101, %v166
  %v174 = vmul.f32 %v102, %v166
  %v175 = vmul.f32 %v103, %v166
  %v176 = vmul.f32 %v104, %v166
  %v177 = vmul.f32 %v105, %v166
  %v178 = vmul.f32 %v106, %v166
  %v179 = vmul.f32 %v107, %v166
  %v180 = vmul.f32 %v108, %v166
  %v181 = vmul.f32 %v109, %v166
  %v182 = vmul.f32 %v110, %v166
  %v183 = vmul.f32 %v111, %v166
  %v184 = vmul.f32 %v112, %v166
  %v185 = vmul.f32 %v113, %v166
  %v186 = vmul.f32 %v114, %v166
  %v187 = vmul.f32 %v115, %v166
  %v188 = vmul.f32 %v116, %v166
  %v189 = vmul.f32 %v117, %v166
  %v190 = vmul.f32 %v118, %v166
  %v191 = vmul.f32 %v119, %v166
  %v192 = vmul.f32 %v120, %v166
  %v193 = vmul.f32 %v121, %v166
  %v194 = vmul.f32 %v122, %v166
  %v195 = vmul.f32 %v123, %v166
  %v196 = vmul.f32 %v124, %v166
  %v197 = vmul.f32 %v125, %v166
  %v198 = vmul.f32 %v126, %v166
  %v199 = vmul.f32 %v127, %v166
  %v200 = vmul.f32 %v128, %v166
  %v201 = vmul.f32 %v129, %v166
  %v202 = vmul.f32 %v130, %v166
  %v203 = vmul.f32 %v131, %v166
  %v204 = vmul.f32 %v132, %v166
  %v205 = vmul.f32 %v133, %v166
  %v206 = vmul.f32 %v134, %v166
  %v207 = vmul.f32 %v135, %v166
  %v208 = vmul.f32 %v136, %v166
  %v209 = vmul.f32 %v137, %v166
  %v210 = vmul.f32 %v138, %v166
  %v211 = vmul.f32 %v139, %v166
  %v212 = vmul.f32 %v140, %v166
  %v213 = vmul.f32 %v141, %v166
  %v214 = vmul.f32 %v142, %v166
  %v215 = vmul.f32 %v143, %v166
  %v216 = vmul.f32 %v144, %v166
  %v217 = vmul.f32 %v145, %v166
  %v218 = vmul.f32 %v146, %v166
  %v219 = vmul.f32 %v147, %v166
  %v220 = vmul.f32 %v148, %v166
  %v221 = vmul.f32 %v149, %v166
  %v222 = vmul.f32 %v150, %v166
  %v223 = vmul.f32 %v151, %v166
  %v224 = vmul.f32 %v152, %v166
  %v225 = vmul.f32 %v153, %v166
  %v226 = vmul.f32 %v154, %v166
  %v227 = vmul.f32 %v155, %v166
  %v228 = vmul.f32 %v156, %v166
  %v229 = vmul.f32 %v157, %v166
  %v230 = vmul.f32 %v158, %v166
  %v231 = vmul.f32 %v159, %v166
  %v232 = vld [vmem:[%s3] sm:$0x1]
  %v234 = vlaneseq
  %v235 = vshrl.u32 %v234, 7
  %v236 = vsub.s32 0, %v235
  %v237 = vrot.slane %v232, %v236
  %v239 = vmul.f32 %v168, %v237
  %v240 = vmul.f32 %v169, %v237
  %v241 = vmul.f32 %v170, %v237
  %v242 = vmul.f32 %v171, %v237
  %v243 = vmul.f32 %v172, %v237
  %v244 = vmul.f32 %v173, %v237
  %v245 = vmul.f32 %v174, %v237
  %v246 = vmul.f32 %v175, %v237
  %v247 = vmul.f32 %v176, %v237
  %v248 = vmul.f32 %v177, %v237
  %v249 = vmul.f32 %v178, %v237
  %v250 = vmul.f32 %v179, %v237
  %v251 = vmul.f32 %v180, %v237
  %v252 = vmul.f32 %v181, %v237
  %v253 = vmul.f32 %v182, %v237
  %v254 = vmul.f32 %v183, %v237
  %v255 = vmul.f32 %v184, %v237
  %v256 = vmul.f32 %v185, %v237
  %v257 = vmul.f32 %v186, %v237
  %v258 = vmul.f32 %v187, %v237
  %v259 = vmul.f32 %v188, %v237
  %v260 = vmul.f32 %v189, %v237
  %v261 = vmul.f32 %v190, %v237
  %v262 = vmul.f32 %v191, %v237
  %v263 = vmul.f32 %v192, %v237
  %v264 = vmul.f32 %v193, %v237
  %v265 = vmul.f32 %v194, %v237
  %v266 = vmul.f32 %v195, %v237
  %v267 = vmul.f32 %v196, %v237
  %v268 = vmul.f32 %v197, %v237
  %v269 = vmul.f32 %v198, %v237
  %v270 = vmul.f32 %v199, %v237
  %v271 = vmul.f32 %v200, %v237
  %v272 = vmul.f32 %v201, %v237
  %v273 = vmul.f32 %v202, %v237
  %v274 = vmul.f32 %v203, %v237
  %v275 = vmul.f32 %v204, %v237
  %v276 = vmul.f32 %v205, %v237
  %v277 = vmul.f32 %v206, %v237
  %v278 = vmul.f32 %v207, %v237
  %v279 = vmul.f32 %v208, %v237
  %v280 = vmul.f32 %v209, %v237
  %v281 = vmul.f32 %v210, %v237
  %v282 = vmul.f32 %v211, %v237
  %v283 = vmul.f32 %v212, %v237
  %v284 = vmul.f32 %v213, %v237
  %v285 = vmul.f32 %v214, %v237
  %v286 = vmul.f32 %v215, %v237
  %v287 = vmul.f32 %v216, %v237
  %v288 = vmul.f32 %v217, %v237
  %v289 = vmul.f32 %v218, %v237
  %v290 = vmul.f32 %v219, %v237
  %v291 = vmul.f32 %v220, %v237
  %v292 = vmul.f32 %v221, %v237
  %v293 = vmul.f32 %v222, %v237
  %v294 = vmul.f32 %v223, %v237
  %v295 = vmul.f32 %v224, %v237
  %v296 = vmul.f32 %v225, %v237
  %v297 = vmul.f32 %v226, %v237
  %v298 = vmul.f32 %v227, %v237
  %v299 = vmul.f32 %v228, %v237
  %v300 = vmul.f32 %v229, %v237
  %v301 = vmul.f32 %v230, %v237
  %v302 = vmul.f32 %v231, %v237
  %v303 = vld [vmem:[%s4] sm:$0x1]
  %v305 = vlaneseq
  %v306 = vshrl.u32 %v305, 7
  %v307 = vsub.s32 0, %v306
  %v308 = vrot.slane %v303, %v307
  %v310 = vadd.f32 %v239, %v308
  %v311 = vadd.f32 %v240, %v308
  %v312 = vadd.f32 %v241, %v308
  %v313 = vadd.f32 %v242, %v308
  %v314 = vadd.f32 %v243, %v308
  %v315 = vadd.f32 %v244, %v308
  %v316 = vadd.f32 %v245, %v308
  %v317 = vadd.f32 %v246, %v308
  %v318 = vadd.f32 %v247, %v308
  %v319 = vadd.f32 %v248, %v308
  %v320 = vadd.f32 %v249, %v308
  %v321 = vadd.f32 %v250, %v308
  %v322 = vadd.f32 %v251, %v308
  %v323 = vadd.f32 %v252, %v308
  %v324 = vadd.f32 %v253, %v308
  %v325 = vadd.f32 %v254, %v308
  %v326 = vadd.f32 %v255, %v308
  %v327 = vadd.f32 %v256, %v308
  %v328 = vadd.f32 %v257, %v308
  %v329 = vadd.f32 %v258, %v308
  %v330 = vadd.f32 %v259, %v308
  %v331 = vadd.f32 %v260, %v308
  %v332 = vadd.f32 %v261, %v308
  %v333 = vadd.f32 %v262, %v308
  %v334 = vadd.f32 %v263, %v308
  %v335 = vadd.f32 %v264, %v308
  %v336 = vadd.f32 %v265, %v308
  %v337 = vadd.f32 %v266, %v308
  %v338 = vadd.f32 %v267, %v308
  %v339 = vadd.f32 %v268, %v308
  %v340 = vadd.f32 %v269, %v308
  %v341 = vadd.f32 %v270, %v308
  %v342 = vadd.f32 %v271, %v308
  %v343 = vadd.f32 %v272, %v308
  %v344 = vadd.f32 %v273, %v308
  %v345 = vadd.f32 %v274, %v308
  %v346 = vadd.f32 %v275, %v308
  %v347 = vadd.f32 %v276, %v308
  %v348 = vadd.f32 %v277, %v308
  %v349 = vadd.f32 %v278, %v308
  %v350 = vadd.f32 %v279, %v308
  %v351 = vadd.f32 %v280, %v308
  %v352 = vadd.f32 %v281, %v308
  %v353 = vadd.f32 %v282, %v308
  %v354 = vadd.f32 %v283, %v308
  %v355 = vadd.f32 %v284, %v308
  %v356 = vadd.f32 %v285, %v308
  %v357 = vadd.f32 %v286, %v308
  %v358 = vadd.f32 %v287, %v308
  %v359 = vadd.f32 %v288, %v308
  %v360 = vadd.f32 %v289, %v308
  %v361 = vadd.f32 %v290, %v308
  %v362 = vadd.f32 %v291, %v308
  %v363 = vadd.f32 %v292, %v308
  %v364 = vadd.f32 %v293, %v308
  %v365 = vadd.f32 %v294, %v308
  %v366 = vadd.f32 %v295, %v308
  %v367 = vadd.f32 %v296, %v308
  %v368 = vadd.f32 %v297, %v308
  %v369 = vadd.f32 %v298, %v308
  %v370 = vadd.f32 %v299, %v308
  %v371 = vadd.f32 %v300, %v308
  %v372 = vadd.f32 %v301, %v308
  %v373 = vadd.f32 %v302, %v308
  %v374 = vmax.f32 %v310, 0.0
  %v375 = vmax.f32 %v311, 0.0
  %v376 = vmax.f32 %v312, 0.0
  %v377 = vmax.f32 %v313, 0.0
  %v378 = vmax.f32 %v314, 0.0
  %v379 = vmax.f32 %v315, 0.0
  %v380 = vmax.f32 %v316, 0.0
  %v381 = vmax.f32 %v317, 0.0
  %v382 = vmax.f32 %v318, 0.0
  %v383 = vmax.f32 %v319, 0.0
  %v384 = vmax.f32 %v320, 0.0
  %v385 = vmax.f32 %v321, 0.0
  %v386 = vmax.f32 %v322, 0.0
  %v387 = vmax.f32 %v323, 0.0
  %v388 = vmax.f32 %v324, 0.0
  %v389 = vmax.f32 %v325, 0.0
  %v390 = vmax.f32 %v326, 0.0
  %v391 = vmax.f32 %v327, 0.0
  %v392 = vmax.f32 %v328, 0.0
  %v393 = vmax.f32 %v329, 0.0
  %v394 = vmax.f32 %v330, 0.0
  %v395 = vmax.f32 %v331, 0.0
  %v396 = vmax.f32 %v332, 0.0
  %v397 = vmax.f32 %v333, 0.0
  %v398 = vmax.f32 %v334, 0.0
  %v399 = vmax.f32 %v335, 0.0
  %v400 = vmax.f32 %v336, 0.0
  %v401 = vmax.f32 %v337, 0.0
  %v402 = vmax.f32 %v338, 0.0
  %v403 = vmax.f32 %v339, 0.0
  %v404 = vmax.f32 %v340, 0.0
  %v405 = vmax.f32 %v341, 0.0
  %v406 = vmax.f32 %v342, 0.0
  %v407 = vmax.f32 %v343, 0.0
  %v408 = vmax.f32 %v344, 0.0
  %v409 = vmax.f32 %v345, 0.0
  %v410 = vmax.f32 %v346, 0.0
  %v411 = vmax.f32 %v347, 0.0
  %v412 = vmax.f32 %v348, 0.0
  %v413 = vmax.f32 %v349, 0.0
  %v414 = vmax.f32 %v350, 0.0
  %v415 = vmax.f32 %v351, 0.0
  %v416 = vmax.f32 %v352, 0.0
  %v417 = vmax.f32 %v353, 0.0
  %v418 = vmax.f32 %v354, 0.0
  %v419 = vmax.f32 %v355, 0.0
  %v420 = vmax.f32 %v356, 0.0
  %v421 = vmax.f32 %v357, 0.0
  %v422 = vmax.f32 %v358, 0.0
  %v423 = vmax.f32 %v359, 0.0
  %v424 = vmax.f32 %v360, 0.0
  %v425 = vmax.f32 %v361, 0.0
  %v426 = vmax.f32 %v362, 0.0
  %v427 = vmax.f32 %v363, 0.0
  %v428 = vmax.f32 %v364, 0.0
  %v429 = vmax.f32 %v365, 0.0
  %v430 = vmax.f32 %v366, 0.0
  %v431 = vmax.f32 %v367, 0.0
  %v432 = vmax.f32 %v368, 0.0
  %v433 = vmax.f32 %v369, 0.0
  %v434 = vmax.f32 %v370, 0.0
  %v435 = vmax.f32 %v371, 0.0
  %v436 = vmax.f32 %v372, 0.0
  %v437 = vmax.f32 %v373, 0.0
  %v438 = vpack.c.bf16 %v375, %v374
  %v439 = vpack.c.bf16 %v377, %v376
  %v440 = vpack.c.bf16 %v379, %v378
  %v441 = vpack.c.bf16 %v381, %v380
  %v442 = vpack.c.bf16 %v383, %v382
  %v443 = vpack.c.bf16 %v385, %v384
  %v444 = vpack.c.bf16 %v387, %v386
  %v445 = vpack.c.bf16 %v389, %v388
  %v446 = vpack.c.bf16 %v391, %v390
  %v447 = vpack.c.bf16 %v393, %v392
  %v448 = vpack.c.bf16 %v395, %v394
  %v449 = vpack.c.bf16 %v397, %v396
  %v450 = vpack.c.bf16 %v399, %v398
  %v451 = vpack.c.bf16 %v401, %v400
  %v452 = vpack.c.bf16 %v403, %v402
  %v453 = vpack.c.bf16 %v405, %v404
  %v454 = vpack.c.bf16 %v407, %v406
  %v455 = vpack.c.bf16 %v409, %v408
  %v456 = vpack.c.bf16 %v411, %v410
  %v457 = vpack.c.bf16 %v413, %v412
  %v458 = vpack.c.bf16 %v415, %v414
  %v459 = vpack.c.bf16 %v417, %v416
  %v460 = vpack.c.bf16 %v419, %v418
  %v461 = vpack.c.bf16 %v421, %v420
  %v462 = vpack.c.bf16 %v423, %v422
  %v463 = vpack.c.bf16 %v425, %v424
  %v464 = vpack.c.bf16 %v427, %v426
  %v465 = vpack.c.bf16 %v429, %v428
  %v466 = vpack.c.bf16 %v431, %v430
  %v467 = vpack.c.bf16 %v433, %v432
  %v468 = vpack.c.bf16 %v435, %v434
  %v469 = vpack.c.bf16 %v437, %v436
  %v502 = vunpack.c.l.b16 %v438
  %v503 = vunpack.c.h.b16 %v438
  %v504 = vunpack.c.l.b16 %v439
  %v505 = vunpack.c.h.b16 %v439
  %v506 = vunpack.c.l.b16 %v440
  %v507 = vunpack.c.h.b16 %v440
  %v508 = vunpack.c.l.b16 %v441
  %v509 = vunpack.c.h.b16 %v441
  %v510 = vunpack.c.l.b16 %v442
  %v511 = vunpack.c.h.b16 %v442
  %v512 = vunpack.c.l.b16 %v443
  %v513 = vunpack.c.h.b16 %v443
  %v514 = vunpack.c.l.b16 %v444
  %v515 = vunpack.c.h.b16 %v444
  %v516 = vunpack.c.l.b16 %v445
  %v517 = vunpack.c.h.b16 %v445
  %v518 = vunpack.c.l.b16 %v446
  %v519 = vunpack.c.h.b16 %v446
  %v520 = vunpack.c.l.b16 %v447
  %v521 = vunpack.c.h.b16 %v447
  %v522 = vunpack.c.l.b16 %v448
  %v523 = vunpack.c.h.b16 %v448
  %v524 = vunpack.c.l.b16 %v449
  %v525 = vunpack.c.h.b16 %v449
  %v526 = vunpack.c.l.b16 %v450
  %v527 = vunpack.c.h.b16 %v450
  %v528 = vunpack.c.l.b16 %v451
  %v529 = vunpack.c.h.b16 %v451
  %v530 = vunpack.c.l.b16 %v452
  %v531 = vunpack.c.h.b16 %v452
  %v532 = vunpack.c.l.b16 %v453
  %v533 = vunpack.c.h.b16 %v453
  %v534 = vunpack.c.l.b16 %v454
  %v535 = vunpack.c.h.b16 %v454
  %v536 = vunpack.c.l.b16 %v455
  %v537 = vunpack.c.h.b16 %v455
  %v538 = vunpack.c.l.b16 %v456
  %v539 = vunpack.c.h.b16 %v456
  %v540 = vunpack.c.l.b16 %v457
  %v541 = vunpack.c.h.b16 %v457
  %v542 = vunpack.c.l.b16 %v458
  %v543 = vunpack.c.h.b16 %v458
  %v544 = vunpack.c.l.b16 %v459
  %v545 = vunpack.c.h.b16 %v459
  %v546 = vunpack.c.l.b16 %v460
  %v547 = vunpack.c.h.b16 %v460
  %v548 = vunpack.c.l.b16 %v461
  %v549 = vunpack.c.h.b16 %v461
  %v550 = vunpack.c.l.b16 %v462
  %v551 = vunpack.c.h.b16 %v462
  %v552 = vunpack.c.l.b16 %v463
  %v553 = vunpack.c.h.b16 %v463
  %v554 = vunpack.c.l.b16 %v464
  %v555 = vunpack.c.h.b16 %v464
  %v556 = vunpack.c.l.b16 %v465
  %v557 = vunpack.c.h.b16 %v465
  %v558 = vunpack.c.l.b16 %v466
  %v559 = vunpack.c.h.b16 %v466
  %v560 = vunpack.c.l.b16 %v467
  %v561 = vunpack.c.h.b16 %v467
  %v562 = vunpack.c.l.b16 %v468
  %v563 = vunpack.c.h.b16 %v468
  %v564 = vunpack.c.l.b16 %v469
  %v565 = vunpack.c.h.b16 %v469
  %v566 = vpack.c.b16 %v502, %v502
  %v567 = vpack.c.b16 %v503, %v503
  %v568 = vpack.c.b16 %v504, %v504
  %v569 = vpack.c.b16 %v505, %v505
  %v570 = vpack.c.b16 %v506, %v506
  %v571 = vpack.c.b16 %v507, %v507
  %v572 = vpack.c.b16 %v508, %v508
  %v573 = vpack.c.b16 %v509, %v509
  %v574 = vpack.c.b16 %v510, %v510
  %v575 = vpack.c.b16 %v511, %v511
  %v576 = vpack.c.b16 %v512, %v512
  %v577 = vpack.c.b16 %v513, %v513
  %v578 = vpack.c.b16 %v514, %v514
  %v579 = vpack.c.b16 %v515, %v515
  %v580 = vpack.c.b16 %v516, %v516
  %v581 = vpack.c.b16 %v517, %v517
  %v582 = vpack.c.b16 %v518, %v518
  %v583 = vpack.c.b16 %v519, %v519
  %v584 = vpack.c.b16 %v520, %v520
  %v585 = vpack.c.b16 %v521, %v521
  %v586 = vpack.c.b16 %v522, %v522
  %v587 = vpack.c.b16 %v523, %v523
  %v588 = vpack.c.b16 %v524, %v524
  %v589 = vpack.c.b16 %v525, %v525
  %v590 = vpack.c.b16 %v526, %v526
  %v591 = vpack.c.b16 %v527, %v527
  %v592 = vpack.c.b16 %v528, %v528
  %v593 = vpack.c.b16 %v529, %v529
  %v594 = vpack.c.b16 %v530, %v530
  %v595 = vpack.c.b16 %v531, %v531
  %v596 = vpack.c.b16 %v532, %v532
  %v597 = vpack.c.b16 %v533, %v533
  %v598 = vpack.c.b16 %v534, %v534
  %v599 = vpack.c.b16 %v535, %v535
  %v600 = vpack.c.b16 %v536, %v536
  %v601 = vpack.c.b16 %v537, %v537
  %v602 = vpack.c.b16 %v538, %v538
  %v603 = vpack.c.b16 %v539, %v539
  %v604 = vpack.c.b16 %v540, %v540
  %v605 = vpack.c.b16 %v541, %v541
  %v606 = vpack.c.b16 %v542, %v542
  %v607 = vpack.c.b16 %v543, %v543
  %v608 = vpack.c.b16 %v544, %v544
  %v609 = vpack.c.b16 %v545, %v545
  %v610 = vpack.c.b16 %v546, %v546
  %v611 = vpack.c.b16 %v547, %v547
  %v612 = vpack.c.b16 %v548, %v548
  %v613 = vpack.c.b16 %v549, %v549
  %v614 = vpack.c.b16 %v550, %v550
  %v615 = vpack.c.b16 %v551, %v551
  %v616 = vpack.c.b16 %v552, %v552
  %v617 = vpack.c.b16 %v553, %v553
  %v618 = vpack.c.b16 %v554, %v554
  %v619 = vpack.c.b16 %v555, %v555
  %v620 = vpack.c.b16 %v556, %v556
  %v621 = vpack.c.b16 %v557, %v557
  %v622 = vpack.c.b16 %v558, %v558
  %v623 = vpack.c.b16 %v559, %v559
  %v624 = vpack.c.b16 %v560, %v560
  %v625 = vpack.c.b16 %v561, %v561
  %v626 = vpack.c.b16 %v562, %v562
  %v627 = vpack.c.b16 %v563, %v563
  %v628 = vpack.c.b16 %v564, %v564
  %v629 = vpack.c.b16 %v565, %v565
  %694 = vst [vmem:[%s5] sm:$0xf] %v566
  %695 = vst [vmem:[%s5 + $0x4] sm:$0xf] %v567
  %696 = vst [vmem:[%s5 + $0x8] sm:$0xf] %v568
  %697 = vst [vmem:[%s5 + $0xc] sm:$0xf] %v569
  %698 = vst [vmem:[%s5 + $0x10] sm:$0xf] %v570
  %699 = vst [vmem:[%s5 + $0x14] sm:$0xf] %v571
  %700 = vst [vmem:[%s5 + $0x18] sm:$0xf] %v572
  %701 = vst [vmem:[%s5 + $0x1c] sm:$0xf] %v573
  %702 = vst [vmem:[%s5 + $0x20] sm:$0xf] %v574
  %703 = vst [vmem:[%s5 + $0x24] sm:$0xf] %v575
  %704 = vst [vmem:[%s5 + $0x28] sm:$0xf] %v576
  %705 = vst [vmem:[%s5 + $0x2c] sm:$0xf] %v577
  %706 = vst [vmem:[%s5 + $0x30] sm:$0xf] %v578
  %707 = vst [vmem:[%s5 + $0x34] sm:$0xf] %v579
  %708 = vst [vmem:[%s5 + $0x38] sm:$0xf] %v580
  %709 = vst [vmem:[%s5 + $0x3c] sm:$0xf] %v581
  %710 = vst [vmem:[%s5 + $0x40] sm:$0xf] %v582
  %711 = vst [vmem:[%s5 + $0x44] sm:$0xf] %v583
  %712 = vst [vmem:[%s5 + $0x48] sm:$0xf] %v584
  %713 = vst [vmem:[%s5 + $0x4c] sm:$0xf] %v585
  %714 = vst [vmem:[%s5 + $0x50] sm:$0xf] %v586
  %715 = vst [vmem:[%s5 + $0x54] sm:$0xf] %v587
  %716 = vst [vmem:[%s5 + $0x58] sm:$0xf] %v588
  %717 = vst [vmem:[%s5 + $0x5c] sm:$0xf] %v589
  %718 = vst [vmem:[%s5 + $0x60] sm:$0xf] %v590
  %719 = vst [vmem:[%s5 + $0x64] sm:$0xf] %v591
  %720 = vst [vmem:[%s5 + $0x68] sm:$0xf] %v592
  %721 = vst [vmem:[%s5 + $0x6c] sm:$0xf] %v593
  %722 = vst [vmem:[%s5 + $0x70] sm:$0xf] %v594
  %723 = vst [vmem:[%s5 + $0x74] sm:$0xf] %v595
  %724 = vst [vmem:[%s5 + $0x78] sm:$0xf] %v596
  %725 = vst [vmem:[%s5 + $0x7c] sm:$0xf] %v597
  %726 = vst [vmem:[%s5 + $0x80] sm:$0xf] %v598
  %727 = vst [vmem:[%s5 + $0x84] sm:$0xf] %v599
  %728 = vst [vmem:[%s5 + $0x88] sm:$0xf] %v600
  %729 = vst [vmem:[%s5 + $0x8c] sm:$0xf] %v601
  %730 = vst [vmem:[%s5 + $0x90] sm:$0xf] %v602
  %731 = vst [vmem:[%s5 + $0x94] sm:$0xf] %v603
  %732 = vst [vmem:[%s5 + $0x98] sm:$0xf] %v604
  %733 = vst [vmem:[%s5 + $0x9c] sm:$0xf] %v605
  %734 = vst [vmem:[%s5 + $0xa0] sm:$0xf] %v606
  %735 = vst [vmem:[%s5 + $0xa4] sm:$0xf] %v607
  %736 = vst [vmem:[%s5 + $0xa8] sm:$0xf] %v608
  %737 = vst [vmem:[%s5 + $0xac] sm:$0xf] %v609
  %738 = vst [vmem:[%s5 + $0xb0] sm:$0xf] %v610
  %739 = vst [vmem:[%s5 + $0xb4] sm:$0xf] %v611
  %740 = vst [vmem:[%s5 + $0xb8] sm:$0xf] %v612
  %741 = vst [vmem:[%s5 + $0xbc] sm:$0xf] %v613
  %742 = vst [vmem:[%s5 + $0xc0] sm:$0xf] %v614
  %743 = vst [vmem:[%s5 + $0xc4] sm:$0xf] %v615
  %744 = vst [vmem:[%s5 + $0xc8] sm:$0xf] %v616
  %745 = vst [vmem:[%s5 + $0xcc] sm:$0xf] %v617
  %746 = vst [vmem:[%s5 + $0xd0] sm:$0xf] %v618
  %747 = vst [vmem:[%s5 + $0xd4] sm:$0xf] %v619
  %748 = vst [vmem:[%s5 + $0xd8] sm:$0xf] %v620
  %749 = vst [vmem:[%s5 + $0xdc] sm:$0xf] %v621
  %750 = vst [vmem:[%s5 + $0xe0] sm:$0xf] %v622
  %751 = vst [vmem:[%s5 + $0xe4] sm:$0xf] %v623
  %752 = vst [vmem:[%s5 + $0xe8] sm:$0xf] %v624
  %753 = vst [vmem:[%s5 + $0xec] sm:$0xf] %v625
  %754 = vst [vmem:[%s5 + $0xf0] sm:$0xf] %v626
  %755 = vst [vmem:[%s5 + $0xf4] sm:$0xf] %v627
  %756 = vst [vmem:[%s5 + $0xf8] sm:$0xf] %v628
  %757 = vst [vmem:[%s5 + $0xfc] sm:$0xf] %v629
  // Predicated region
  $region22: #{basic_block_forward.6} parent=0 // pred_check
    _
  $region23: #{basic_block_forward.6} parent=0 // pred_check_branch
    %759 = sbr.rel (0) target = $region25
  $region24: #{basic_block_forward.6} parent=0 // pred_region
    _
  $region25: #{basic_block_forward.6} parent=0 // pred_fallthru
    _
  // Predicated region
  $region26: #{basic_block_forward.6} parent=0 // pred_check
    _
  $region27: #{basic_block_forward.6} parent=0 // pred_check_branch
    %761 = sbr.rel (0) target = $region29
  $region28: #{basic_block_forward.6} parent=0 // pred_region
    _
  $region29: #{basic_block_forward.6} parent=0 // pred_fallthru
    _

// kernel: basic_block_forward.5
$region0: #{basic_block_forward.5}
  #allocation0 [shape = 'u32[]', space=smem, size = 0x4, offset = 0x4, fixed_abs, tag = 'smem constant byte address 0x4 - core index']
  #allocation1 [shape = 'u32[144,128]{1,0:T(1,128)}', space=vmem, size = 0x12000, scoped, tag = 'internal scratch']
  #allocation2 [shape = 'f32[512,128]{1,0:T(8,128)}', space=vmem, size = 0x40000, scoped, tag = 'scratch operand']
  %s0 = inlined_call_operand.vmem [shape: bf16[512,128], index: 0, kind: input, shape index: {}]
  %s1 = inlined_call_operand.vmem [shape: bf16[128,128], index: 1, kind: input, shape index: {}]
  %s2 = inlined_call_operand.vmem [shape: f32[512,128], index: 2, kind: output, shape index: {0}]
  %s3 = inlined_call_operand.vmem [shape: f32[1,128], index: 3, kind: output, shape index: {1}]
  %s4 = inlined_call_operand.vmem [shape: f32[1,128], index: 4, kind: output, shape index: {2}]
  %5 = xla_tuple %s2, %s3, %s4
  %s6 = sld [smem:[#allocation0]]
  $region46: #{basic_block_forward.5} parent=0
    _
  %s8 = ssub.s32 1, %s6
  %s9 = scalar_select 0, %s8, %s6
  // Predicated region
  $region2: #{basic_block_forward.5} parent=0 // pred_check
    _
  $region3: #{basic_block_forward.5} parent=0 // pred_check_branch
    %11 = sbr.rel (0) target = $region5
  $region4: #{basic_block_forward.5} parent=0 // pred_region
    _
  $region5: #{basic_block_forward.5} parent=0 // pred_fallthru
    _
  // Predicated region
  $region6: #{basic_block_forward.5} parent=0 // pred_check
    _
  $region7: #{basic_block_forward.5} parent=0 // pred_check_branch
    %13 = sbr.rel (0) target = $region9
  $region8: #{basic_block_forward.5} parent=0 // pred_region
    _
  $region9: #{basic_block_forward.5} parent=0 // pred_fallthru
    _
  %p15 = scmp.eq.s32.totalorder 0, 0
  // Predicated region
  $region10: #{basic_block_forward.5} parent=0 // pred_check
    %p16 = pneg %p15
  $region11: #{basic_block_forward.5} parent=0 // pred_check_branch
    %18 = sbr.rel (%p16) target = $region13
  $region12: #{basic_block_forward.5} parent=0 // pred_region
    %19 = vst [vmem:[#allocation2] sm:$0xff] 0.0
    %20 = vst [vmem:[#allocation2 + $0x8] sm:$0xff] 0.0
    %21 = vst [vmem:[#allocation2 + $0x10] sm:$0xff] 0.0
    %22 = vst [vmem:[#allocation2 + $0x18] sm:$0xff] 0.0
    %23 = vst [vmem:[#allocation2 + $0x20] sm:$0xff] 0.0
    %24 = vst [vmem:[#allocation2 + $0x28] sm:$0xff] 0.0
    %25 = vst [vmem:[#allocation2 + $0x30] sm:$0xff] 0.0
    %26 = vst [vmem:[#allocation2 + $0x38] sm:$0xff] 0.0
    %27 = vst [vmem:[#allocation2 + $0x40] sm:$0xff] 0.0
    %28 = vst [vmem:[#allocation2 + $0x48] sm:$0xff] 0.0
    %29 = vst [vmem:[#allocation2 + $0x50] sm:$0xff] 0.0
    %30 = vst [vmem:[#allocation2 + $0x58] sm:$0xff] 0.0
    %31 = vst [vmem:[#allocation2 + $0x60] sm:$0xff] 0.0
    %32 = vst [vmem:[#allocation2 + $0x68] sm:$0xff] 0.0
    %33 = vst [vmem:[#allocation2 + $0x70] sm:$0xff] 0.0
    %34 = vst [vmem:[#allocation2 + $0x78] sm:$0xff] 0.0
    %35 = vst [vmem:[#allocation2 + $0x80] sm:$0xff] 0.0
    %36 = vst [vmem:[#allocation2 + $0x88] sm:$0xff] 0.0
    %37 = vst [vmem:[#allocation2 + $0x90] sm:$0xff] 0.0
    %38 = vst [vmem:[#allocation2 + $0x98] sm:$0xff] 0.0
    %39 = vst [vmem:[#allocation2 + $0xa0] sm:$0xff] 0.0
    %40 = vst [vmem:[#allocation2 + $0xa8] sm:$0xff] 0.0
    %41 = vst [vmem:[#allocation2 + $0xb0] sm:$0xff] 0.0
    %42 = vst [vmem:[#allocation2 + $0xb8] sm:$0xff] 0.0
    %43 = vst [vmem:[#allocation2 + $0xc0] sm:$0xff] 0.0
    %44 = vst [vmem:[#allocation2 + $0xc8] sm:$0xff] 0.0
    %45 = vst [vmem:[#allocation2 + $0xd0] sm:$0xff] 0.0
    %46 = vst [vmem:[#allocation2 + $0xd8] sm:$0xff] 0.0
    %47 = vst [vmem:[#allocation2 + $0xe0] sm:$0xff] 0.0
    %48 = vst [vmem:[#allocation2 + $0xe8] sm:$0xff] 0.0
    %49 = vst [vmem:[#allocation2 + $0xf0] sm:$0xff] 0.0
    %50 = vst [vmem:[#allocation2 + $0xf8] sm:$0xff] 0.0
    %51 = vst [vmem:[#allocation2 + $0x100] sm:$0xff] 0.0
    %52 = vst [vmem:[#allocation2 + $0x108] sm:$0xff] 0.0
    %53 = vst [vmem:[#allocation2 + $0x110] sm:$0xff] 0.0
    %54 = vst [vmem:[#allocation2 + $0x118] sm:$0xff] 0.0
    %55 = vst [vmem:[#allocation2 + $0x120] sm:$0xff] 0.0
    %56 = vst [vmem:[#allocation2 + $0x128] sm:$0xff] 0.0
    %57 = vst [vmem:[#allocation2 + $0x130] sm:$0xff] 0.0
    %58 = vst [vmem:[#allocation2 + $0x138] sm:$0xff] 0.0
    %59 = vst [vmem:[#allocation2 + $0x140] sm:$0xff] 0.0
    %60 = vst [vmem:[#allocation2 + $0x148] sm:$0xff] 0.0
    %61 = vst [vmem:[#allocation2 + $0x150] sm:$0xff] 0.0
    %62 = vst [vmem:[#allocation2 + $0x158] sm:$0xff] 0.0
    %63 = vst [vmem:[#allocation2 + $0x160] sm:$0xff] 0.0
    %64 = vst [vmem:[#allocation2 + $0x168] sm:$0xff] 0.0
    %65 = vst [vmem:[#allocation2 + $0x170] sm:$0xff] 0.0
    %66 = vst [vmem:[#allocation2 + $0x178] sm:$0xff] 0.0
    %67 = vst [vmem:[#allocation2 + $0x180] sm:$0xff] 0.0
    %68 = vst [vmem:[#allocation2 + $0x188] sm:$0xff] 0.0
    %69 = vst [vmem:[#allocation2 + $0x190] sm:$0xff] 0.0
    %70 = vst [vmem:[#allocation2 + $0x198] sm:$0xff] 0.0
    %71 = vst [vmem:[#allocation2 + $0x1a0] sm:$0xff] 0.0
    %72 = vst [vmem:[#allocation2 + $0x1a8] sm:$0xff] 0.0
    %73 = vst [vmem:[#allocation2 + $0x1b0] sm:$0xff] 0.0
    %74 = vst [vmem:[#allocation2 + $0x1b8] sm:$0xff] 0.0
    %75 = vst [vmem:[#allocation2 + $0x1c0] sm:$0xff] 0.0
    %76 = vst [vmem:[#allocation2 + $0x1c8] sm:$0xff] 0.0
    %77 = vst [vmem:[#allocation2 + $0x1d0] sm:$0xff] 0.0
    %78 = vst [vmem:[#allocation2 + $0x1d8] sm:$0xff] 0.0
    %79 = vst [vmem:[#allocation2 + $0x1e0] sm:$0xff] 0.0
    %80 = vst [vmem:[#allocation2 + $0x1e8] sm:$0xff] 0.0
    %81 = vst [vmem:[#allocation2 + $0x1f0] sm:$0xff] 0.0
    %82 = vst [vmem:[#allocation2 + $0x1f8] sm:$0xff] 0.0
  $region13: #{basic_block_forward.5} parent=0 // pred_fallthru
    _
  %p83 = scmp.eq.s32.totalorder 0, 0
  %p84 = pnand %p83, %p15
  %p85 = pneg %p84
  // Predicated region
  $region14: #{basic_block_forward.5} parent=0 // pred_check
    _
  $region15: #{basic_block_forward.5} parent=0 // pred_check_branch
    %87 = sbr.rel (%p84) target = $region17
  $region16: #{basic_block_forward.5} parent=0 // pred_region
    %88 = vst [vmem:[%s3] sm:$0x1] 0.0
    %89 = vst [vmem:[%s4] sm:$0x1] 0.0
  $region17: #{basic_block_forward.5} parent=0 // pred_fallthru
    _
  %v90 = vld [vmem:[#allocation2] sm:$0xff]
  %v91 = vld [vmem:[#allocation2 + $0x8] sm:$0xff]
  %v92 = vld [vmem:[#allocation2 + $0x10] sm:$0xff]
  %v93 = vld [vmem:[#allocation2 + $0x18] sm:$0xff]
  %v94 = vld [vmem:[#allocation2 + $0x20] sm:$0xff]
  %v95 = vld [vmem:[#allocation2 + $0x28] sm:$0xff]
  %v96 = vld [vmem:[#allocation2 + $0x30] sm:$0xff]
  %v97 = vld [vmem:[#allocation2 + $0x38] sm:$0xff]
  %v98 = vld [vmem:[#allocation2 + $0x40] sm:$0xff]
  %v99 = vld [vmem:[#allocation2 + $0x48] sm:$0xff]
  %v100 = vld [vmem:[#allocation2 + $0x50] sm:$0xff]
  %v101 = vld [vmem:[#allocation2 + $0x58] sm:$0xff]
  %v102 = vld [vmem:[#allocation2 + $0x60] sm:$0xff]
  %v103 = vld [vmem:[#allocation2 + $0x68] sm:$0xff]
  %v104 = vld [vmem:[#allocation2 + $0x70] sm:$0xff]
  %v105 = vld [vmem:[#allocation2 + $0x78] sm:$0xff]
  %v106 = vld [vmem:[#allocation2 + $0x80] sm:$0xff]
  %v107 = vld [vmem:[#allocation2 + $0x88] sm:$0xff]
  %v108 = vld [vmem:[#allocation2 + $0x90] sm:$0xff]
  %v109 = vld [vmem:[#allocation2 + $0x98] sm:$0xff]
  %v110 = vld [vmem:[#allocation2 + $0xa0] sm:$0xff]
  %v111 = vld [vmem:[#allocation2 + $0xa8] sm:$0xff]
  %v112 = vld [vmem:[#allocation2 + $0xb0] sm:$0xff]
  %v113 = vld [vmem:[#allocation2 + $0xb8] sm:$0xff]
  %v114 = vld [vmem:[#allocation2 + $0xc0] sm:$0xff]
  %v115 = vld [vmem:[#allocation2 + $0xc8] sm:$0xff]
  %v116 = vld [vmem:[#allocation2 + $0xd0] sm:$0xff]
  %v117 = vld [vmem:[#allocation2 + $0xd8] sm:$0xff]
  %v118 = vld [vmem:[#allocation2 + $0xe0] sm:$0xff]
  %v119 = vld [vmem:[#allocation2 + $0xe8] sm:$0xff]
  %v120 = vld [vmem:[#allocation2 + $0xf0] sm:$0xff]
  %v121 = vld [vmem:[#allocation2 + $0xf8] sm:$0xff]
  %v122 = vld [vmem:[#allocation2 + $0x100] sm:$0xff]
  %v123 = vld [vmem:[#allocation2 + $0x108] sm:$0xff]
  %v124 = vld [vmem:[#allocation2 + $0x110] sm:$0xff]
  %v125 = vld [vmem:[#allocation2 + $0x118] sm:$0xff]
  %v126 = vld [vmem:[#allocation2 + $0x120] sm:$0xff]
  %v127 = vld [vmem:[#allocation2 + $0x128] sm:$0xff]
  %v128 = vld [vmem:[#allocation2 + $0x130] sm:$0xff]
  %v129 = vld [vmem:[#allocation2 + $0x138] sm:$0xff]
  %v130 = vld [vmem:[#allocation2 + $0x140] sm:$0xff]
  %v131 = vld [vmem:[#allocation2 + $0x148] sm:$0xff]
  %v132 = vld [vmem:[#allocation2 + $0x150] sm:$0xff]
  %v133 = vld [vmem:[#allocation2 + $0x158] sm:$0xff]
  %v134 = vld [vmem:[#allocation2 + $0x160] sm:$0xff]
  %v135 = vld [vmem:[#allocation2 + $0x168] sm:$0xff]
  %v136 = vld [vmem:[#allocation2 + $0x170] sm:$0xff]
  %v137 = vld [vmem:[#allocation2 + $0x178] sm:$0xff]
  %v138 = vld [vmem:[#allocation2 + $0x180] sm:$0xff]
  %v139 = vld [vmem:[#allocation2 + $0x188] sm:$0xff]
  %v140 = vld [vmem:[#allocation2 + $0x190] sm:$0xff]
  %v141 = vld [vmem:[#allocation2 + $0x198] sm:$0xff]
  %v142 = vld [vmem:[#allocation2 + $0x1a0] sm:$0xff]
  %v143 = vld [vmem:[#allocation2 + $0x1a8] sm:$0xff]
  %v144 = vld [vmem:[#allocation2 + $0x1b0] sm:$0xff]
  %v145 = vld [vmem:[#allocation2 + $0x1b8] sm:$0xff]
  %v146 = vld [vmem:[#allocation2 + $0x1c0] sm:$0xff]
  %v147 = vld [vmem:[#allocation2 + $0x1c8] sm:$0xff]
  %v148 = vld [vmem:[#allocation2 + $0x1d0] sm:$0xff]
  %v149 = vld [vmem:[#allocation2 + $0x1d8] sm:$0xff]
  %v150 = vld [vmem:[#allocation2 + $0x1e0] sm:$0xff]
  %v151 = vld [vmem:[#allocation2 + $0x1e8] sm:$0xff]
  %v152 = vld [vmem:[#allocation2 + $0x1f0] sm:$0xff]
  %v153 = vld [vmem:[#allocation2 + $0x1f8] sm:$0xff]
  %v154 = vld [vmem:[%s0] sm:$0xf]
  %v155 = vld [vmem:[%s0 + $0x4] sm:$0xf]
  %v156 = vld [vmem:[%s0 + $0x8] sm:$0xf]
  %v157 = vld [vmem:[%s0 + $0xc] sm:$0xf]
  %v158 = vld [vmem:[%s0 + $0x10] sm:$0xf]
  %v159 = vld [vmem:[%s0 + $0x14] sm:$0xf]
  %v160 = vld [vmem:[%s0 + $0x18] sm:$0xf]
  %v161 = vld [vmem:[%s0 + $0x1c] sm:$0xf]
  %v162 = vld [vmem:[%s0 + $0x20] sm:$0xf]
  %v163 = vld [vmem:[%s0 + $0x24] sm:$0xf]
  %v164 = vld [vmem:[%s0 + $0x28] sm:$0xf]
  %v165 = vld [vmem:[%s0 + $0x2c] sm:$0xf]
  %v166 = vld [vmem:[%s0 + $0x30] sm:$0xf]
  %v167 = vld [vmem:[%s0 + $0x34] sm:$0xf]
  %v168 = vld [vmem:[%s0 + $0x38] sm:$0xf]
  %v169 = vld [vmem:[%s0 + $0x3c] sm:$0xf]
  %v170 = vld [vmem:[%s0 + $0x40] sm:$0xf]
  %v171 = vld [vmem:[%s0 + $0x44] sm:$0xf]
  %v172 = vld [vmem:[%s0 + $0x48] sm:$0xf]
  %v173 = vld [vmem:[%s0 + $0x4c] sm:$0xf]
  %v174 = vld [vmem:[%s0 + $0x50] sm:$0xf]
  %v175 = vld [vmem:[%s0 + $0x54] sm:$0xf]
  %v176 = vld [vmem:[%s0 + $0x58] sm:$0xf]
  %v177 = vld [vmem:[%s0 + $0x5c] sm:$0xf]
  %v178 = vld [vmem:[%s0 + $0x60] sm:$0xf]
  %v179 = vld [vmem:[%s0 + $0x64] sm:$0xf]
  %v180 = vld [vmem:[%s0 + $0x68] sm:$0xf]
  %v181 = vld [vmem:[%s0 + $0x6c] sm:$0xf]
  %v182 = vld [vmem:[%s0 + $0x70] sm:$0xf]
  %v183 = vld [vmem:[%s0 + $0x74] sm:$0xf]
  %v184 = vld [vmem:[%s0 + $0x78] sm:$0xf]
  %v185 = vld [vmem:[%s0 + $0x7c] sm:$0xf]
  %v186 = vld [vmem:[%s0 + $0x80] sm:$0xf]
  %v187 = vld [vmem:[%s0 + $0x84] sm:$0xf]
  %v188 = vld [vmem:[%s0 + $0x88] sm:$0xf]
  %v189 = vld [vmem:[%s0 + $0x8c] sm:$0xf]
  %v190 = vld [vmem:[%s0 + $0x90] sm:$0xf]
  %v191 = vld [vmem:[%s0 + $0x94] sm:$0xf]
  %v192 = vld [vmem:[%s0 + $0x98] sm:$0xf]
  %v193 = vld [vmem:[%s0 + $0x9c] sm:$0xf]
  %v194 = vld [vmem:[%s0 + $0xa0] sm:$0xf]
  %v195 = vld [vmem:[%s0 + $0xa4] sm:$0xf]
  %v196 = vld [vmem:[%s0 + $0xa8] sm:$0xf]
  %v197 = vld [vmem:[%s0 + $0xac] sm:$0xf]
  %v198 = vld [vmem:[%s0 + $0xb0] sm:$0xf]
  %v199 = vld [vmem:[%s0 + $0xb4] sm:$0xf]
  %v200 = vld [vmem:[%s0 + $0xb8] sm:$0xf]
  %v201 = vld [vmem:[%s0 + $0xbc] sm:$0xf]
  %v202 = vld [vmem:[%s0 + $0xc0] sm:$0xf]
  %v203 = vld [vmem:[%s0 + $0xc4] sm:$0xf]
  %v204 = vld [vmem:[%s0 + $0xc8] sm:$0xf]
  %v205 = vld [vmem:[%s0 + $0xcc] sm:$0xf]
  %v206 = vld [vmem:[%s0 + $0xd0] sm:$0xf]
  %v207 = vld [vmem:[%s0 + $0xd4] sm:$0xf]
  %v208 = vld [vmem:[%s0 + $0xd8] sm:$0xf]
  %v209 = vld [vmem:[%s0 + $0xdc] sm:$0xf]
  %v210 = vld [vmem:[%s0 + $0xe0] sm:$0xf]
  %v211 = vld [vmem:[%s0 + $0xe4] sm:$0xf]
  %v212 = vld [vmem:[%s0 + $0xe8] sm:$0xf]
  %v213 = vld [vmem:[%s0 + $0xec] sm:$0xf]
  %v214 = vld [vmem:[%s0 + $0xf0] sm:$0xf]
  %v215 = vld [vmem:[%s0 + $0xf4] sm:$0xf]
  %v216 = vld [vmem:[%s0 + $0xf8] sm:$0xf]
  %v217 = vld [vmem:[%s0 + $0xfc] sm:$0xf]
  %v218 = vld [vmem:[%s1] sm:$0xf]
  %v219 = vld [vmem:[%s1 + $0x4] sm:$0xf]
  %v220 = vld [vmem:[%s1 + $0x8] sm:$0xf]
  %v221 = vld [vmem:[%s1 + $0xc] sm:$0xf]
  %v222 = vld [vmem:[%s1 + $0x10] sm:$0xf]
  %v223 = vld [vmem:[%s1 + $0x14] sm:$0xf]
  %v224 = vld [vmem:[%s1 + $0x18] sm:$0xf]
  %v225 = vld [vmem:[%s1 + $0x1c] sm:$0xf]
  %v226 = vld [vmem:[%s1 + $0x20] sm:$0xf]
  %v227 = vld [vmem:[%s1 + $0x24] sm:$0xf]
  %v228 = vld [vmem:[%s1 + $0x28] sm:$0xf]
  %v229 = vld [vmem:[%s1 + $0x2c] sm:$0xf]
  %v230 = vld [vmem:[%s1 + $0x30] sm:$0xf]
  %v231 = vld [vmem:[%s1 + $0x34] sm:$0xf]
  %v232 = vld [vmem:[%s1 + $0x38] sm:$0xf]
  %v233 = vld [vmem:[%s1 + $0x3c] sm:$0xf]
  %v298 = vunpack.c.l.b16 %v154
  %v299 = vunpack.c.l.b16 %v155
  %v300 = vunpack.c.l.b16 %v156
  %v301 = vunpack.c.l.b16 %v157
  %v302 = vunpack.c.l.b16 %v158
  %v303 = vunpack.c.l.b16 %v159
  %v304 = vunpack.c.l.b16 %v160
  %v305 = vunpack.c.l.b16 %v161
  %v306 = vunpack.c.l.b16 %v162
  %v307 = vunpack.c.l.b16 %v163
  %v308 = vunpack.c.l.b16 %v164
  %v309 = vunpack.c.l.b16 %v165
  %v310 = vunpack.c.l.b16 %v166
  %v311 = vunpack.c.l.b16 %v167
  %v312 = vunpack.c.l.b16 %v168
  %v313 = vunpack.c.l.b16 %v169
  %v314 = vunpack.c.l.b16 %v170
  %v315 = vunpack.c.l.b16 %v171
  %v316 = vunpack.c.l.b16 %v172
  %v317 = vunpack.c.l.b16 %v173
  %v318 = vunpack.c.l.b16 %v174
  %v319 = vunpack.c.l.b16 %v175
  %v320 = vunpack.c.l.b16 %v176
  %v321 = vunpack.c.l.b16 %v177
  %v322 = vunpack.c.l.b16 %v178
  %v323 = vunpack.c.l.b16 %v179
  %v324 = vunpack.c.l.b16 %v180
  %v325 = vunpack.c.l.b16 %v181
  %v326 = vunpack.c.l.b16 %v182
  %v327 = vunpack.c.l.b16 %v183
  %v328 = vunpack.c.l.b16 %v184
  %v329 = vunpack.c.l.b16 %v185
  %v330 = vunpack.c.l.b16 %v186
  %v331 = vunpack.c.l.b16 %v187
  %v332 = vunpack.c.l.b16 %v188
  %v333 = vunpack.c.l.b16 %v189
  %v334 = vunpack.c.l.b16 %v190
  %v335 = vunpack.c.l.b16 %v191
  %v336 = vunpack.c.l.b16 %v192
  %v337 = vunpack.c.l.b16 %v193
  %v338 = vunpack.c.l.b16 %v194
  %v339 = vunpack.c.l.b16 %v195
  %v340 = vunpack.c.l.b16 %v196
  %v341 = vunpack.c.l.b16 %v197
  %v342 = vunpack.c.l.b16 %v198
  %v343 = vunpack.c.l.b16 %v199
  %v344 = vunpack.c.l.b16 %v200
  %v345 = vunpack.c.l.b16 %v201
  %v346 = vunpack.c.l.b16 %v202
  %v347 = vunpack.c.l.b16 %v203
  %v348 = vunpack.c.l.b16 %v204
  %v349 = vunpack.c.l.b16 %v205
  %v350 = vunpack.c.l.b16 %v206
  %v351 = vunpack.c.l.b16 %v207
  %v352 = vunpack.c.l.b16 %v208
  %v353 = vunpack.c.l.b16 %v209
  %v354 = vunpack.c.l.b16 %v210
  %v355 = vunpack.c.l.b16 %v211
  %v356 = vunpack.c.l.b16 %v212
  %v357 = vunpack.c.l.b16 %v213
  %v358 = vunpack.c.l.b16 %v214
  %v359 = vunpack.c.l.b16 %v215
  %v360 = vunpack.c.l.b16 %v216
  %v361 = vunpack.c.l.b16 %v217
  %v362 = vpack.c.b16 %v299, %v298
  %v363 = vpack.c.b16 %v301, %v300
  %v364 = vpack.c.b16 %v303, %v302
  %v365 = vpack.c.b16 %v305, %v304
  %v366 = vpack.c.b16 %v307, %v306
  %v367 = vpack.c.b16 %v309, %v308
  %v368 = vpack.c.b16 %v311, %v310
  %v369 = vpack.c.b16 %v313, %v312
  %v370 = vpack.c.b16 %v315, %v314
  %v371 = vpack.c.b16 %v317, %v316
  %v372 = vpack.c.b16 %v319, %v318
  %v373 = vpack.c.b16 %v321, %v320
  %v374 = vpack.c.b16 %v323, %v322
  %v375 = vpack.c.b16 %v325, %v324
  %v376 = vpack.c.b16 %v327, %v326
  %v377 = vpack.c.b16 %v329, %v328
  %v378 = vpack.c.b16 %v331, %v330
  %v379 = vpack.c.b16 %v333, %v332
  %v380 = vpack.c.b16 %v335, %v334
  %v381 = vpack.c.b16 %v337, %v336
  %v382 = vpack.c.b16 %v339, %v338
  %v383 = vpack.c.b16 %v341, %v340
  %v384 = vpack.c.b16 %v343, %v342
  %v385 = vpack.c.b16 %v345, %v344
  %v386 = vpack.c.b16 %v347, %v346
  %v387 = vpack.c.b16 %v349, %v348
  %v388 = vpack.c.b16 %v351, %v350
  %v389 = vpack.c.b16 %v353, %v352
  %v390 = vpack.c.b16 %v355, %v354
  %v391 = vpack.c.b16 %v357, %v356
  %v392 = vpack.c.b16 %v359, %v358
  %v393 = vpack.c.b16 %v361, %v360
  %v442 = vunpack.c.l.b16 %v218
  %v443 = vunpack.c.l.b16 %v219
  %v444 = vunpack.c.l.b16 %v220
  %v445 = vunpack.c.l.b16 %v221
  %v446 = vunpack.c.l.b16 %v222
  %v447 = vunpack.c.l.b16 %v223
  %v448 = vunpack.c.l.b16 %v224
  %v449 = vunpack.c.l.b16 %v225
  %v450 = vunpack.c.l.b16 %v226
  %v451 = vunpack.c.l.b16 %v227
  %v452 = vunpack.c.l.b16 %v228
  %v453 = vunpack.c.l.b16 %v229
  %v454 = vunpack.c.l.b16 %v230
  %v455 = vunpack.c.l.b16 %v231
  %v456 = vunpack.c.l.b16 %v232
  %v457 = vunpack.c.l.b16 %v233
  %v458 = vpack.c.b16 %v443, %v442
  %v459 = vpack.c.b16 %v445, %v444
  %v460 = vpack.c.b16 %v447, %v446
  %v461 = vpack.c.b16 %v449, %v448
  %v462 = vpack.c.b16 %v451, %v450
  %v463 = vpack.c.b16 %v453, %v452
  %v464 = vpack.c.b16 %v455, %v454
  %v465 = vpack.c.b16 %v457, %v456
  %474 = vmatprep.subr.bf16.mxu0 0
  %475 = vmatpush1.bf16.msra.mxu0 %v458
  %476 = vmatprep.subr.bf16.mxu0 0
  %477 = vmatpush1.bf16.msra.mxu0 %v459
  %478 = vmatprep.subr.bf16.mxu0 0
  %479 = vmatpush1.bf16.msra.mxu0 %v460
  %480 = vmatprep.subr.bf16.mxu0 0
  %481 = vmatpush1.bf16.msra.mxu0 %v461
  %482 = vmatprep.subr.bf16.mxu0 0
  %483 = vmatpush1.bf16.msra.mxu0 %v462
  %484 = vmatprep.subr.bf16.mxu0 0
  %485 = vmatpush1.bf16.msra.mxu0 %v463
  %486 = vmatprep.subr.bf16.mxu0 0
  %487 = vmatpush1.bf16.msra.mxu0 %v464
  %488 = vmatprep.subr.bf16.mxu0 0
  %489 = vmatpush1.bf16.msra.mxu0 %v465
  %490 = vmatprep.subr.bf16.mxu0 0
  %491 = vmatpush1.bf16.msra.mxu0 0
  %492 = vmatprep.subr.bf16.mxu0 0
  %493 = vmatpush1.bf16.msra.mxu0 0
  %494 = vmatprep.subr.bf16.mxu0 0
  %495 = vmatpush1.bf16.msra.mxu0 0
  %496 = vmatprep.subr.bf16.mxu0 0
  %497 = vmatpush1.bf16.msra.mxu0 0
  %498 = vmatprep.subr.bf16.mxu0 0
  %499 = vmatpush1.bf16.msra.mxu0 0
  %500 = vmatprep.subr.bf16.mxu0 0
  %501 = vmatpush1.bf16.msra.mxu0 0
  %502 = vmatprep.subr.bf16.mxu0 0
  %503 = vmatpush1.bf16.msra.mxu0 0
  %504 = vmatprep.subr.bf16.mxu0 0
  %505 = vmatpush1.bf16.msra.mxu0 0
  %506 = vmatprep.mubr.bf16.mxu0 0
  %507 = vmatmul.mubr.bf16.gmra.mrb[0].mxu0 %v362
  %v508 = vpop.f32.mrb[0].mxu0
  %v509 = vadd.f32 0.0, %v508
  %v510 = vpop.f32.mrb[0].mxu0
  %v511 = vpop.f32.mrb[0].mxu0
  %v512 = vadd.f32 0.0, %v511
  %v513 = vpop.f32.mrb[0].mxu0
  %514 = vmatprep.mubr.bf16.mxu0 0
  %515 = vmatmul.mubr.bf16.gmra.mrb[0].mxu0 %v363
  %v516 = vpop.f32.mrb[0].mxu0
  %v517 = vadd.f32 0.0, %v516
  %v518 = vpop.f32.mrb[0].mxu0
  %v519 = vpop.f32.mrb[0].mxu0
  %v520 = vadd.f32 0.0, %v519
  %v521 = vpop.f32.mrb[0].mxu0
  %522 = vmatprep.mubr.bf16.mxu0 0
  %523 = vmatmul.mubr.bf16.gmra.mrb[0].mxu0 %v364
  %v524 = vpop.f32.mrb[0].mxu0
  %v525 = vadd.f32 0.0, %v524
  %v526 = vpop.f32.mrb[0].mxu0
  %v527 = vpop.f32.mrb[0].mxu0
  %v528 = vadd.f32 0.0, %v527
  %v529 = vpop.f32.mrb[0].mxu0
  %530 = vmatprep.mubr.bf16.mxu0 0
  %531 = vmatmul.mubr.bf16.gmra.mrb[0].mxu0 %v365
  %v532 = vpop.f32.mrb[0].mxu0
  %v533 = vadd.f32 0.0, %v532
  %v534 = vpop.f32.mrb[0].mxu0
  %v535 = vpop.f32.mrb[0].mxu0
  %v536 = vadd.f32 0.0, %v535
  %v537 = vpop.f32.mrb[0].mxu0
  %538 = vmatprep.mubr.bf16.mxu0 0
  %539 = vmatmul.mubr.bf16.gmra.mrb[0].mxu0 %v366
  %v540 = vpop.f32.mrb[0].mxu0
  %v541 = vadd.f32 0.0, %v540
  %v542 = vpop.f32.mrb[0].mxu0
  %v543 = vpop.f32.mrb[0].mxu0
  %v544 = vadd.f32 0.0, %v543
  %v545 = vpop.f32.mrb[0].mxu0
  %546 = vmatprep.mubr.bf16.mxu0 0
  %547 = vmatmul.mubr.bf16.gmra.mrb[0].mxu0 %v367
  %v548 = vpop.f32.mrb[0].mxu0
  %v549 = vadd.f32 0.0, %v548
  %v550 = vpop.f32.mrb[0].mxu0
  %v551 = vpop.f32.mrb[0].mxu0
  %v552 = vadd.f32 0.0, %v551
  %v553 = vpop.f32.mrb[0].mxu0
  %554 = vmatprep.mubr.bf16.mxu0 0
  %555 = vmatmul.mubr.bf16.gmra.mrb[0].mxu0 %v368
  %v556 = vpop.f32.mrb[0].mxu0
  %v557 = vadd.f32 0.0, %v556
  %v558 = vpop.f32.mrb[0].mxu0
  %v559 = vpop.f32.mrb[0].mxu0
  %v560 = vadd.f32 0.0, %v559
  %v561 = vpop.f32.mrb[0].mxu0
  %562 = vmatprep.mubr.bf16.mxu0 0
  %563 = vmatmul.mubr.bf16.gmra.mrb[0].mxu0 %v369
  %v564 = vpop.f32.mrb[0].mxu0
  %v565 = vadd.f32 0.0, %v564
  %v566 = vpop.f32.mrb[0].mxu0
  %v567 = vpop.f32.mrb[0].mxu0
  %v568 = vadd.f32 0.0, %v567
  %v569 = vpop.f32.mrb[0].mxu0
  %570 = vmatprep.mubr.bf16.mxu0 0
  %571 = vmatmul.mubr.bf16.gmra.mrb[0].mxu0 %v370
  %v572 = vpop.f32.mrb[0].mxu0
  %v573 = vadd.f32 0.0, %v572
  %v574 = vpop.f32.mrb[0].mxu0
  %v575 = vpop.f32.mrb[0].mxu0
  %v576 = vadd.f32 0.0, %v575
  %v577 = vpop.f32.mrb[0].mxu0
  %578 = vmatprep.mubr.bf16.mxu0 0
  %579 = vmatmul.mubr.bf16.gmra.mrb[0].mxu0 %v371
  %v580 = vpop.f32.mrb[0].mxu0
  %v581 = vadd.f32 0.0, %v580
  %v582 = vpop.f32.mrb[0].mxu0
  %v583 = vpop.f32.mrb[0].mxu0
  %v584 = vadd.f32 0.0, %v583
  %v585 = vpop.f32.mrb[0].mxu0
  %586 = vmatprep.mubr.bf16.mxu0 0
  %587 = vmatmul.mubr.bf16.gmra.mrb[0].mxu0 %v372
  %v588 = vpop.f32.mrb[0].mxu0
  %v589 = vadd.f32 0.0, %v588
  %v590 = vpop.f32.mrb[0].mxu0
  %v591 = vpop.f32.mrb[0].mxu0
  %v592 = vadd.f32 0.0, %v591
  %v593 = vpop.f32.mrb[0].mxu0
  %594 = vmatprep.mubr.bf16.mxu0 0
  %595 = vmatmul.mubr.bf16.gmra.mrb[0].mxu0 %v373
  %v596 = vpop.f32.mrb[0].mxu0
  %v597 = vadd.f32 0.0, %v596
  %v598 = vpop.f32.mrb[0].mxu0
  %v599 = vpop.f32.mrb[0].mxu0
  %v600 = vadd.f32 0.0, %v599
  %v601 = vpop.f32.mrb[0].mxu0
  %602 = vmatprep.mubr.bf16.mxu0 0
  %603 = vmatmul.mubr.bf16.gmra.mrb[0].mxu0 %v374
  %v604 = vpop.f32.mrb[0].mxu0
  %v605 = vadd.f32 0.0, %v604
  %v606 = vpop.f32.mrb[0].mxu0
  %v607 = vpop.f32.mrb[0].mxu0
  %v608 = vadd.f32 0.0, %v607
  %v609 = vpop.f32.mrb[0].mxu0
  %610 = vmatprep.mubr.bf16.mxu0 0
  %611 = vmatmul.mubr.bf16.gmra.mrb[0].mxu0 %v375
  %v612 = vpop.f32.mrb[0].mxu0
  %v613 = vadd.f32 0.0, %v612
  %v614 = vpop.f32.mrb[0].mxu0
  %v615 = vpop.f32.mrb[0].mxu0
  %v616 = vadd.f32 0.0, %v615
  %v617 = vpop.f32.mrb[0].mxu0
  %618 = vmatprep.mubr.bf16.mxu0 0
  %619 = vmatmul.mubr.bf16.gmra.mrb[0].mxu0 %v376
  %v620 = vpop.f32.mrb[0].mxu0
  %v621 = vadd.f32 0.0, %v620
  %v622 = vpop.f32.mrb[0].mxu0
  %v623 = vpop.f32.mrb[0].mxu0
  %v624 = vadd.f32 0.0, %v623
  %v625 = vpop.f32.mrb[0].mxu0
  %626 = vmatprep.mubr.bf16.mxu0 0
  %627 = vmatmul.mubr.bf16.gmra.mrb[0].mxu0 %v377
  %v628 = vpop.f32.mrb[0].mxu0
  %v629 = vadd.f32 0.0, %v628
  %v630 = vpop.f32.mrb[0].mxu0
  %v631 = vpop.f32.mrb[0].mxu0
  %v632 = vadd.f32 0.0, %v631
  %v633 = vpop.f32.mrb[0].mxu0
  %634 = vmatprep.mubr.bf16.mxu0 0
  %635 = vmatmul.mubr.bf16.gmra.mrb[0].mxu0 %v378
  %v636 = vpop.f32.mrb[0].mxu0
  %v637 = vadd.f32 0.0, %v636
  %v638 = vpop.f32.mrb[0].mxu0
  %v639 = vpop.f32.mrb[0].mxu0
  %v640 = vadd.f32 0.0, %v639
  %v641 = vpop.f32.mrb[0].mxu0
  %642 = vmatprep.mubr.bf16.mxu0 0
  %643 = vmatmul.mubr.bf16.gmra.mrb[0].mxu0 %v379
  %v644 = vpop.f32.mrb[0].mxu0
  %v645 = vadd.f32 0.0, %v644
  %v646 = vpop.f32.mrb[0].mxu0
  %v647 = vpop.f32.mrb[0].mxu0
  %v648 = vadd.f32 0.0, %v647
  %v649 = vpop.f32.mrb[0].mxu0
  %650 = vmatprep.mubr.bf16.mxu0 0
  %651 = vmatmul.mubr.bf16.gmra.mrb[0].mxu0 %v380
  %v652 = vpop.f32.mrb[0].mxu0
  %v653 = vadd.f32 0.0, %v652
  %v654 = vpop.f32.mrb[0].mxu0
  %v655 = vpop.f32.mrb[0].mxu0
  %v656 = vadd.f32 0.0, %v655
  %v657 = vpop.f32.mrb[0].mxu0
  %658 = vmatprep.mubr.bf16.mxu0 0
  %659 = vmatmul.mubr.bf16.gmra.mrb[0].mxu0 %v381
  %v660 = vpop.f32.mrb[0].mxu0
  %v661 = vadd.f32 0.0, %v660
  %v662 = vpop.f32.mrb[0].mxu0
  %v663 = vpop.f32.mrb[0].mxu0
  %v664 = vadd.f32 0.0, %v663
  %v665 = vpop.f32.mrb[0].mxu0
  %666 = vmatprep.mubr.bf16.mxu0 0
  %667 = vmatmul.mubr.bf16.gmra.mrb[0].mxu0 %v382
  %v668 = vpop.f32.mrb[0].mxu0
  %v669 = vadd.f32 0.0, %v668
  %v670 = vpop.f32.mrb[0].mxu0
  %v671 = vpop.f32.mrb[0].mxu0
  %v672 = vadd.f32 0.0, %v671
  %v673 = vpop.f32.mrb[0].mxu0
  %674 = vmatprep.mubr.bf16.mxu0 0
  %675 = vmatmul.mubr.bf16.gmra.mrb[0].mxu0 %v383
  %v676 = vpop.f32.mrb[0].mxu0
  %v677 = vadd.f32 0.0, %v676
  %v678 = vpop.f32.mrb[0].mxu0
  %v679 = vpop.f32.mrb[0].mxu0
  %v680 = vadd.f32 0.0, %v679
  %v681 = vpop.f32.mrb[0].mxu0
  %682 = vmatprep.mubr.bf16.mxu0 0
  %683 = vmatmul.mubr.bf16.gmra.mrb[0].mxu0 %v384
  %v684 = vpop.f32.mrb[0].mxu0
  %v685 = vadd.f32 0.0, %v684
  %v686 = vpop.f32.mrb[0].mxu0
  %v687 = vpop.f32.mrb[0].mxu0
  %v688 = vadd.f32 0.0, %v687
  %v689 = vpop.f32.mrb[0].mxu0
  %690 = vmatprep.mubr.bf16.mxu0 0
  %691 = vmatmul.mubr.bf16.gmra.mrb[0].mxu0 %v385
  %v692 = vpop.f32.mrb[0].mxu0
  %v693 = vadd.f32 0.0, %v692
  %v694 = vpop.f32.mrb[0].mxu0
  %v695 = vpop.f32.mrb[0].mxu0
  %v696 = vadd.f32 0.0, %v695
  %v697 = vpop.f32.mrb[0].mxu0
  %698 = vmatprep.mubr.bf16.mxu0 0
  %699 = vmatmul.mubr.bf16.gmra.mrb[0].mxu0 %v386
  %v700 = vpop.f32.mrb[0].mxu0
  %v701 = vadd.f32 0.0, %v700
  %v702 = vpop.f32.mrb[0].mxu0
  %v703 = vpop.f32.mrb[0].mxu0
  %v704 = vadd.f32 0.0, %v703
  %v705 = vpop.f32.mrb[0].mxu0
  %706 = vmatprep.mubr.bf16.mxu0 0
  %707 = vmatmul.mubr.bf16.gmra.mrb[0].mxu0 %v387
  %v708 = vpop.f32.mrb[0].mxu0
  %v709 = vadd.f32 0.0, %v708
  %v710 = vpop.f32.mrb[0].mxu0
  %v711 = vpop.f32.mrb[0].mxu0
  %v712 = vadd.f32 0.0, %v711
  %v713 = vpop.f32.mrb[0].mxu0
  %714 = vmatprep.mubr.bf16.mxu0 0
  %715 = vmatmul.mubr.bf16.gmra.mrb[0].mxu0 %v388
  %v716 = vpop.f32.mrb[0].mxu0
  %v717 = vadd.f32 0.0, %v716
  %v718 = vpop.f32.mrb[0].mxu0
  %v719 = vpop.f32.mrb[0].mxu0
  %v720 = vadd.f32 0.0, %v719
  %v721 = vpop.f32.mrb[0].mxu0
  %722 = vmatprep.mubr.bf16.mxu0 0
  %723 = vmatmul.mubr.bf16.gmra.mrb[0].mxu0 %v389
  %v724 = vpop.f32.mrb[0].mxu0
  %v725 = vadd.f32 0.0, %v724
  %v726 = vpop.f32.mrb[0].mxu0
  %v727 = vpop.f32.mrb[0].mxu0
  %v728 = vadd.f32 0.0, %v727
  %v729 = vpop.f32.mrb[0].mxu0
  %730 = vmatprep.mubr.bf16.mxu0 0
  %731 = vmatmul.mubr.bf16.gmra.mrb[0].mxu0 %v390
  %v732 = vpop.f32.mrb[0].mxu0
  %v733 = vadd.f32 0.0, %v732
  %v734 = vpop.f32.mrb[0].mxu0
  %v735 = vpop.f32.mrb[0].mxu0
  %v736 = vadd.f32 0.0, %v735
  %v737 = vpop.f32.mrb[0].mxu0
  %738 = vmatprep.mubr.bf16.mxu0 0
  %739 = vmatmul.mubr.bf16.gmra.mrb[0].mxu0 %v391
  %v740 = vpop.f32.mrb[0].mxu0
  %v741 = vadd.f32 0.0, %v740
  %v742 = vpop.f32.mrb[0].mxu0
  %v743 = vpop.f32.mrb[0].mxu0
  %v744 = vadd.f32 0.0, %v743
  %v745 = vpop.f32.mrb[0].mxu0
  %746 = vmatprep.mubr.bf16.mxu0 0
  %747 = vmatmul.mubr.bf16.gmra.mrb[0].mxu0 %v392
  %v748 = vpop.f32.mrb[0].mxu0
  %v749 = vadd.f32 0.0, %v748
  %v750 = vpop.f32.mrb[0].mxu0
  %v751 = vpop.f32.mrb[0].mxu0
  %v752 = vadd.f32 0.0, %v751
  %v753 = vpop.f32.mrb[0].mxu0
  %754 = vmatprep.mubr.bf16.mxu0 0
  %755 = vmatmul.mubr.bf16.gmra.mrb[0].mxu0 %v393
  %v756 = vpop.f32.mrb[0].mxu0
  %v757 = vadd.f32 0.0, %v756
  %v758 = vpop.f32.mrb[0].mxu0
  %v759 = vpop.f32.mrb[0].mxu0
  %v760 = vadd.f32 0.0, %v759
  %v761 = vpop.f32.mrb[0].mxu0
  %762 = vdwg.mxu0
  %v763 = vadd.f32 %v90, %v509
  %v764 = vadd.f32 %v91, %v512
  %v765 = vadd.f32 %v92, %v517
  %v766 = vadd.f32 %v93, %v520
  %v767 = vadd.f32 %v94, %v525
  %v768 = vadd.f32 %v95, %v528
  %v769 = vadd.f32 %v96, %v533
  %v770 = vadd.f32 %v97, %v536
  %v771 = vadd.f32 %v98, %v541
  %v772 = vadd.f32 %v99, %v544
  %v773 = vadd.f32 %v100, %v549
  %v774 = vadd.f32 %v101, %v552
  %v775 = vadd.f32 %v102, %v557
  %v776 = vadd.f32 %v103, %v560
  %v777 = vadd.f32 %v104, %v565
  %v778 = vadd.f32 %v105, %v568
  %v779 = vadd.f32 %v106, %v573
  %v780 = vadd.f32 %v107, %v576
  %v781 = vadd.f32 %v108, %v581
  %v782 = vadd.f32 %v109, %v584
  %v783 = vadd.f32 %v110, %v589
  %v784 = vadd.f32 %v111, %v592
  %v785 = vadd.f32 %v112, %v597
  %v786 = vadd.f32 %v113, %v600
  %v787 = vadd.f32 %v114, %v605
  %v788 = vadd.f32 %v115, %v608
  %v789 = vadd.f32 %v116, %v613
  %v790 = vadd.f32 %v117, %v616
  %v791 = vadd.f32 %v118, %v621
  %v792 = vadd.f32 %v119, %v624
  %v793 = vadd.f32 %v120, %v629
  %v794 = vadd.f32 %v121, %v632
  %v795 = vadd.f32 %v122, %v637
  %v796 = vadd.f32 %v123, %v640
  %v797 = vadd.f32 %v124, %v645
  %v798 = vadd.f32 %v125, %v648
  %v799 = vadd.f32 %v126, %v653
  %v800 = vadd.f32 %v127, %v656
  %v801 = vadd.f32 %v128, %v661
  %v802 = vadd.f32 %v129, %v664
  %v803 = vadd.f32 %v130, %v669
  %v804 = vadd.f32 %v131, %v672
  %v805 = vadd.f32 %v132, %v677
  %v806 = vadd.f32 %v133, %v680
  %v807 = vadd.f32 %v134, %v685
  %v808 = vadd.f32 %v135, %v688
  %v809 = vadd.f32 %v136, %v693
  %v810 = vadd.f32 %v137, %v696
  %v811 = vadd.f32 %v138, %v701
  %v812 = vadd.f32 %v139, %v704
  %v813 = vadd.f32 %v140, %v709
  %v814 = vadd.f32 %v141, %v712
  %v815 = vadd.f32 %v142, %v717
  %v816 = vadd.f32 %v143, %v720
  %v817 = vadd.f32 %v144, %v725
  %v818 = vadd.f32 %v145, %v728
  %v819 = vadd.f32 %v146, %v733
  %v820 = vadd.f32 %v147, %v736
  %v821 = vadd.f32 %v148, %v741
  %v822 = vadd.f32 %v149, %v744
  %v823 = vadd.f32 %v150, %v749
  %v824 = vadd.f32 %v151, %v752
  %v825 = vadd.f32 %v152, %v757
  %v826 = vadd.f32 %v153, %v760
  %827 = vst [vmem:[#allocation2] sm:$0xff] %v763
  %828 = vst [vmem:[#allocation2 + $0x8] sm:$0xff] %v764
  %829 = vst [vmem:[#allocation2 + $0x10] sm:$0xff] %v765
  %830 = vst [vmem:[#allocation2 + $0x18] sm:$0xff] %v766
  %831 = vst [vmem:[#allocation2 + $0x20] sm:$0xff] %v767
  %832 = vst [vmem:[#allocation2 + $0x28] sm:$0xff] %v768
  %833 = vst [vmem:[#allocation2 + $0x30] sm:$0xff] %v769
  %834 = vst [vmem:[#allocation2 + $0x38] sm:$0xff] %v770
  %835 = vst [vmem:[#allocation2 + $0x40] sm:$0xff] %v771
  %836 = vst [vmem:[#allocation2 + $0x48] sm:$0xff] %v772
  %837 = vst [vmem:[#allocation2 + $0x50] sm:$0xff] %v773
  %838 = vst [vmem:[#allocation2 + $0x58] sm:$0xff] %v774
  %839 = vst [vmem:[#allocation2 + $0x60] sm:$0xff] %v775
  %840 = vst [vmem:[#allocation2 + $0x68] sm:$0xff] %v776
  %841 = vst [vmem:[#allocation2 + $0x70] sm:$0xff] %v777
  %842 = vst [vmem:[#allocation2 + $0x78] sm:$0xff] %v778
  %843 = vst [vmem:[#allocation2 + $0x80] sm:$0xff] %v779
  %844 = vst [vmem:[#allocation2 + $0x88] sm:$0xff] %v780
  %845 = vst [vmem:[#allocation2 + $0x90] sm:$0xff] %v781
  %846 = vst [vmem:[#allocation2 + $0x98] sm:$0xff] %v782
  %847 = vst [vmem:[#allocation2 + $0xa0] sm:$0xff] %v783
  %848 = vst [vmem:[#allocation2 + $0xa8] sm:$0xff] %v784
  %849 = vst [vmem:[#allocation2 + $0xb0] sm:$0xff] %v785
  %850 = vst [vmem:[#allocation2 + $0xb8] sm:$0xff] %v786
  %851 = vst [vmem:[#allocation2 + $0xc0] sm:$0xff] %v787
  %852 = vst [vmem:[#allocation2 + $0xc8] sm:$0xff] %v788
  %853 = vst [vmem:[#allocation2 + $0xd0] sm:$0xff] %v789
  %854 = vst [vmem:[#allocation2 + $0xd8] sm:$0xff] %v790
  %855 = vst [vmem:[#allocation2 + $0xe0] sm:$0xff] %v791
  %856 = vst [vmem:[#allocation2 + $0xe8] sm:$0xff] %v792
  %857 = vst [vmem:[#allocation2 + $0xf0] sm:$0xff] %v793
  %858 = vst [vmem:[#allocation2 + $0xf8] sm:$0xff] %v794
  %859 = vst [vmem:[#allocation2 + $0x100] sm:$0xff] %v795
  %860 = vst [vmem:[#allocation2 + $0x108] sm:$0xff] %v796
  %861 = vst [vmem:[#allocation2 + $0x110] sm:$0xff] %v797
  %862 = vst [vmem:[#allocation2 + $0x118] sm:$0xff] %v798
  %863 = vst [vmem:[#allocation2 + $0x120] sm:$0xff] %v799
  %864 = vst [vmem:[#allocation2 + $0x128] sm:$0xff] %v800
  %865 = vst [vmem:[#allocation2 + $0x130] sm:$0xff] %v801
  %866 = vst [vmem:[#allocation2 + $0x138] sm:$0xff] %v802
  %867 = vst [vmem:[#allocation2 + $0x140] sm:$0xff] %v803
  %868 = vst [vmem:[#allocation2 + $0x148] sm:$0xff] %v804
  %869 = vst [vmem:[#allocation2 + $0x150] sm:$0xff] %v805
  %870 = vst [vmem:[#allocation2 + $0x158] sm:$0xff] %v806
  %871 = vst [vmem:[#allocation2 + $0x160] sm:$0xff] %v807
  %872 = vst [vmem:[#allocation2 + $0x168] sm:$0xff] %v808
  %873 = vst [vmem:[#allocation2 + $0x170] sm:$0xff] %v809
  %874 = vst [vmem:[#allocation2 + $0x178] sm:$0xff] %v810
  %875 = vst [vmem:[#allocation2 + $0x180] sm:$0xff] %v811
  %876 = vst [vmem:[#allocation2 + $0x188] sm:$0xff] %v812
  %877 = vst [vmem:[#allocation2 + $0x190] sm:$0xff] %v813
  %878 = vst [vmem:[#allocation2 + $0x198] sm:$0xff] %v814
  %879 = vst [vmem:[#allocation2 + $0x1a0] sm:$0xff] %v815
  %880 = vst [vmem:[#allocation2 + $0x1a8] sm:$0xff] %v816
  %881 = vst [vmem:[#allocation2 + $0x1b0] sm:$0xff] %v817
  %882 = vst [vmem:[#allocation2 + $0x1b8] sm:$0xff] %v818
  %883 = vst [vmem:[#allocation2 + $0x1c0] sm:$0xff] %v819
  %884 = vst [vmem:[#allocation2 + $0x1c8] sm:$0xff] %v820
  %885 = vst [vmem:[#allocation2 + $0x1d0] sm:$0xff] %v821
  %886 = vst [vmem:[#allocation2 + $0x1d8] sm:$0xff] %v822
  %887 = vst [vmem:[#allocation2 + $0x1e0] sm:$0xff] %v823
  %888 = vst [vmem:[#allocation2 + $0x1e8] sm:$0xff] %v824
  %889 = vst [vmem:[#allocation2 + $0x1f0] sm:$0xff] %v825
  %890 = vst [vmem:[#allocation2 + $0x1f8] sm:$0xff] %v826
  // Predicated region
  $region18: #{basic_block_forward.5} parent=0 // pred_check
    %p891 = pneg %p15
  $region19: #{basic_block_forward.5} parent=0 // pred_check_branch
    %893 = sbr.rel (%p891) target = $region21
  $region20: #{basic_block_forward.5} parent=0 // pred_region
    %v894 = vld [vmem:[#allocation2] sm:$0xff]
    %v895 = vld [vmem:[#allocation2 + $0x8] sm:$0xff]
    %v896 = vld [vmem:[#allocation2 + $0x10] sm:$0xff]
    %v897 = vld [vmem:[#allocation2 + $0x18] sm:$0xff]
    %v898 = vld [vmem:[#allocation2 + $0x20] sm:$0xff]
    %v899 = vld [vmem:[#allocation2 + $0x28] sm:$0xff]
    %v900 = vld [vmem:[#allocation2 + $0x30] sm:$0xff]
    %v901 = vld [vmem:[#allocation2 + $0x38] sm:$0xff]
    %v902 = vld [vmem:[#allocation2 + $0x40] sm:$0xff]
    %v903 = vld [vmem:[#allocation2 + $0x48] sm:$0xff]
    %v904 = vld [vmem:[#allocation2 + $0x50] sm:$0xff]
    %v905 = vld [vmem:[#allocation2 + $0x58] sm:$0xff]
    %v906 = vld [vmem:[#allocation2 + $0x60] sm:$0xff]
    %v907 = vld [vmem:[#allocation2 + $0x68] sm:$0xff]
    %v908 = vld [vmem:[#allocation2 + $0x70] sm:$0xff]
    %v909 = vld [vmem:[#allocation2 + $0x78] sm:$0xff]
    %v910 = vld [vmem:[#allocation2 + $0x80] sm:$0xff]
    %v911 = vld [vmem:[#allocation2 + $0x88] sm:$0xff]
    %v912 = vld [vmem:[#allocation2 + $0x90] sm:$0xff]
    %v913 = vld [vmem:[#allocation2 + $0x98] sm:$0xff]
    %v914 = vld [vmem:[#allocation2 + $0xa0] sm:$0xff]
    %v915 = vld [vmem:[#allocation2 + $0xa8] sm:$0xff]
    %v916 = vld [vmem:[#allocation2 + $0xb0] sm:$0xff]
    %v917 = vld [vmem:[#allocation2 + $0xb8] sm:$0xff]
    %v918 = vld [vmem:[#allocation2 + $0xc0] sm:$0xff]
    %v919 = vld [vmem:[#allocation2 + $0xc8] sm:$0xff]
    %v920 = vld [vmem:[#allocation2 + $0xd0] sm:$0xff]
    %v921 = vld [vmem:[#allocation2 + $0xd8] sm:$0xff]
    %v922 = vld [vmem:[#allocation2 + $0xe0] sm:$0xff]
    %v923 = vld [vmem:[#allocation2 + $0xe8] sm:$0xff]
    %v924 = vld [vmem:[#allocation2 + $0xf0] sm:$0xff]
    %v925 = vld [vmem:[#allocation2 + $0xf8] sm:$0xff]
    %v926 = vld [vmem:[#allocation2 + $0x100] sm:$0xff]
    %v927 = vld [vmem:[#allocation2 + $0x108] sm:$0xff]
    %v928 = vld [vmem:[#allocation2 + $0x110] sm:$0xff]
    %v929 = vld [vmem:[#allocation2 + $0x118] sm:$0xff]
    %v930 = vld [vmem:[#allocation2 + $0x120] sm:$0xff]
    %v931 = vld [vmem:[#allocation2 + $0x128] sm:$0xff]
    %v932 = vld [vmem:[#allocation2 + $0x130] sm:$0xff]
    %v933 = vld [vmem:[#allocation2 + $0x138] sm:$0xff]
    %v934 = vld [vmem:[#allocation2 + $0x140] sm:$0xff]
    %v935 = vld [vmem:[#allocation2 + $0x148] sm:$0xff]
    %v936 = vld [vmem:[#allocation2 + $0x150] sm:$0xff]
    %v937 = vld [vmem:[#allocation2 + $0x158] sm:$0xff]
    %v938 = vld [vmem:[#allocation2 + $0x160] sm:$0xff]
    %v939 = vld [vmem:[#allocation2 + $0x168] sm:$0xff]
    %v940 = vld [vmem:[#allocation2 + $0x170] sm:$0xff]
    %v941 = vld [vmem:[#allocation2 + $0x178] sm:$0xff]
    %v942 = vld [vmem:[#allocation2 + $0x180] sm:$0xff]
    %v943 = vld [vmem:[#allocation2 + $0x188] sm:$0xff]
    %v944 = vld [vmem:[#allocation2 + $0x190] sm:$0xff]
    %v945 = vld [vmem:[#allocation2 + $0x198] sm:$0xff]
    %v946 = vld [vmem:[#allocation2 + $0x1a0] sm:$0xff]
    %v947 = vld [vmem:[#allocation2 + $0x1a8] sm:$0xff]
    %v948 = vld [vmem:[#allocation2 + $0x1b0] sm:$0xff]
    %v949 = vld [vmem:[#allocation2 + $0x1b8] sm:$0xff]
    %v950 = vld [vmem:[#allocation2 + $0x1c0] sm:$0xff]
    %v951 = vld [vmem:[#allocation2 + $0x1c8] sm:$0xff]
    %v952 = vld [vmem:[#allocation2 + $0x1d0] sm:$0xff]
    %v953 = vld [vmem:[#allocation2 + $0x1d8] sm:$0xff]
    %v954 = vld [vmem:[#allocation2 + $0x1e0] sm:$0xff]
    %v955 = vld [vmem:[#allocation2 + $0x1e8] sm:$0xff]
    %v956 = vld [vmem:[#allocation2 + $0x1f0] sm:$0xff]
    %v957 = vld [vmem:[#allocation2 + $0x1f8] sm:$0xff]
    %958 = vst [vmem:[%s2] sm:$0xff] %v894
    %959 = vst [vmem:[%s2 + $0x8] sm:$0xff] %v895
    %960 = vst [vmem:[%s2 + $0x10] sm:$0xff] %v896
    %961 = vst [vmem:[%s2 + $0x18] sm:$0xff] %v897
    %962 = vst [vmem:[%s2 + $0x20] sm:$0xff] %v898
    %963 = vst [vmem:[%s2 + $0x28] sm:$0xff] %v899
    %964 = vst [vmem:[%s2 + $0x30] sm:$0xff] %v900
    %965 = vst [vmem:[%s2 + $0x38] sm:$0xff] %v901
    %966 = vst [vmem:[%s2 + $0x40] sm:$0xff] %v902
    %967 = vst [vmem:[%s2 + $0x48] sm:$0xff] %v903
    %968 = vst [vmem:[%s2 + $0x50] sm:$0xff] %v904
    %969 = vst [vmem:[%s2 + $0x58] sm:$0xff] %v905
    %970 = vst [vmem:[%s2 + $0x60] sm:$0xff] %v906
    %971 = vst [vmem:[%s2 + $0x68] sm:$0xff] %v907
    %972 = vst [vmem:[%s2 + $0x70] sm:$0xff] %v908
    %973 = vst [vmem:[%s2 + $0x78] sm:$0xff] %v909
    %974 = vst [vmem:[%s2 + $0x80] sm:$0xff] %v910
    %975 = vst [vmem:[%s2 + $0x88] sm:$0xff] %v911
    %976 = vst [vmem:[%s2 + $0x90] sm:$0xff] %v912
    %977 = vst [vmem:[%s2 + $0x98] sm:$0xff] %v913
    %978 = vst [vmem:[%s2 + $0xa0] sm:$0xff] %v914
    %979 = vst [vmem:[%s2 + $0xa8] sm:$0xff] %v915
    %980 = vst [vmem:[%s2 + $0xb0] sm:$0xff] %v916
    %981 = vst [vmem:[%s2 + $0xb8] sm:$0xff] %v917
    %982 = vst [vmem:[%s2 + $0xc0] sm:$0xff] %v918
    %983 = vst [vmem:[%s2 + $0xc8] sm:$0xff] %v919
    %984 = vst [vmem:[%s2 + $0xd0] sm:$0xff] %v920
    %985 = vst [vmem:[%s2 + $0xd8] sm:$0xff] %v921
    %986 = vst [vmem:[%s2 + $0xe0] sm:$0xff] %v922
    %987 = vst [vmem:[%s2 + $0xe8] sm:$0xff] %v923
    %988 = vst [vmem:[%s2 + $0xf0] sm:$0xff] %v924
    %989 = vst [vmem:[%s2 + $0xf8] sm:$0xff] %v925
    %990 = vst [vmem:[%s2 + $0x100] sm:$0xff] %v926
    %991 = vst [vmem:[%s2 + $0x108] sm:$0xff] %v927
    %992 = vst [vmem:[%s2 + $0x110] sm:$0xff] %v928
    %993 = vst [vmem:[%s2 + $0x118] sm:$0xff] %v929
    %994 = vst [vmem:[%s2 + $0x120] sm:$0xff] %v930
    %995 = vst [vmem:[%s2 + $0x128] sm:$0xff] %v931
    %996 = vst [vmem:[%s2 + $0x130] sm:$0xff] %v932
    %997 = vst [vmem:[%s2 + $0x138] sm:$0xff] %v933
    %998 = vst [vmem:[%s2 + $0x140] sm:$0xff] %v934
    %999 = vst [vmem:[%s2 + $0x148] sm:$0xff] %v935
    %1000 = vst [vmem:[%s2 + $0x150] sm:$0xff] %v936
    %1001 = vst [vmem:[%s2 + $0x158] sm:$0xff] %v937
    %1002 = vst [vmem:[%s2 + $0x160] sm:$0xff] %v938
    %1003 = vst [vmem:[%s2 + $0x168] sm:$0xff] %v939
    %1004 = vst [vmem:[%s2 + $0x170] sm:$0xff] %v940
    %1005 = vst [vmem:[%s2 + $0x178] sm:$0xff] %v941
    %1006 = vst [vmem:[%s2 + $0x180] sm:$0xff] %v942
    %1007 = vst [vmem:[%s2 + $0x188] sm:$0xff] %v943
    %1008 = vst [vmem:[%s2 + $0x190] sm:$0xff] %v944
    %1009 = vst [vmem:[%s2 + $0x198] sm:$0xff] %v945
    %1010 = vst [vmem:[%s2 + $0x1a0] sm:$0xff] %v946
    %1011 = vst [vmem:[%s2 + $0x1a8] sm:$0xff] %v947
    %1012 = vst [vmem:[%s2 + $0x1b0] sm:$0xff] %v948
    %1013 = vst [vmem:[%s2 + $0x1b8] sm:$0xff] %v949
    %1014 = vst [vmem:[%s2 + $0x1c0] sm:$0xff] %v950
    %1015 = vst [vmem:[%s2 + $0x1c8] sm:$0xff] %v951
    %1016 = vst [vmem:[%s2 + $0x1d0] sm:$0xff] %v952
    %1017 = vst [vmem:[%s2 + $0x1d8] sm:$0xff] %v953
    %1018 = vst [vmem:[%s2 + $0x1e0] sm:$0xff] %v954
    %1019 = vst [vmem:[%s2 + $0x1e8] sm:$0xff] %v955
    %1020 = vst [vmem:[%s2 + $0x1f0] sm:$0xff] %v956
    %1021 = vst [vmem:[%s2 + $0x1f8] sm:$0xff] %v957
    %v1022 = vld [vmem:[%s3] sm:$0x1]
    %v1023 = vadd.f32 %v894, %v895
    %v1024 = vadd.f32 %v1023, %v896
    %v1025 = vadd.f32 %v1024, %v897
    %v1026 = vadd.f32 %v1025, %v898
    %v1027 = vadd.f32 %v1026, %v899
    %v1028 = vadd.f32 %v1027, %v900
    %v1029 = vadd.f32 %v1028, %v901
    %v1030 = vadd.f32 %v1029, %v902
    %v1031 = vadd.f32 %v1030, %v903
    %v1032 = vadd.f32 %v1031, %v904
    %v1033 = vadd.f32 %v1032, %v905
    %v1034 = vadd.f32 %v1033, %v906
    %v1035 = vadd.f32 %v1034, %v907
    %v1036 = vadd.f32 %v1035, %v908
    %v1037 = vadd.f32 %v1036, %v909
    %v1038 = vadd.f32 %v1037, %v910
    %v1039 = vadd.f32 %v1038, %v911
    %v1040 = vadd.f32 %v1039, %v912
    %v1041 = vadd.f32 %v1040, %v913
    %v1042 = vadd.f32 %v1041, %v914
    %v1043 = vadd.f32 %v1042, %v915
    %v1044 = vadd.f32 %v1043, %v916
    %v1045 = vadd.f32 %v1044, %v917
    %v1046 = vadd.f32 %v1045, %v918
    %v1047 = vadd.f32 %v1046, %v919
    %v1048 = vadd.f32 %v1047, %v920
    %v1049 = vadd.f32 %v1048, %v921
    %v1050 = vadd.f32 %v1049, %v922
    %v1051 = vadd.f32 %v1050, %v923
    %v1052 = vadd.f32 %v1051, %v924
    %v1053 = vadd.f32 %v1052, %v925
    %v1054 = vadd.f32 %v1053, %v926
    %v1055 = vadd.f32 %v1054, %v927
    %v1056 = vadd.f32 %v1055, %v928
    %v1057 = vadd.f32 %v1056, %v929
    %v1058 = vadd.f32 %v1057, %v930
    %v1059 = vadd.f32 %v1058, %v931
    %v1060 = vadd.f32 %v1059, %v932
    %v1061 = vadd.f32 %v1060, %v933
    %v1062 = vadd.f32 %v1061, %v934
    %v1063 = vadd.f32 %v1062, %v935
    %v1064 = vadd.f32 %v1063, %v936
    %v1065 = vadd.f32 %v1064, %v937
    %v1066 = vadd.f32 %v1065, %v938
    %v1067 = vadd.f32 %v1066, %v939
    %v1068 = vadd.f32 %v1067, %v940
    %v1069 = vadd.f32 %v1068, %v941
    %v1070 = vadd.f32 %v1069, %v942
    %v1071 = vadd.f32 %v1070, %v943
    %v1072 = vadd.f32 %v1071, %v944
    %v1073 = vadd.f32 %v1072, %v945
    %v1074 = vadd.f32 %v1073, %v946
    %v1075 = vadd.f32 %v1074, %v947
    %v1076 = vadd.f32 %v1075, %v948
    %v1077 = vadd.f32 %v1076, %v949
    %v1078 = vadd.f32 %v1077, %v950
    %v1079 = vadd.f32 %v1078, %v951
    %v1080 = vadd.f32 %v1079, %v952
    %v1081 = vadd.f32 %v1080, %v953
    %v1082 = vadd.f32 %v1081, %v954
    %v1083 = vadd.f32 %v1082, %v955
    %v1084 = vadd.f32 %v1083, %v956
    %v1085 = vadd.f32 %v1084, %v957
    %v1086 = vrot.slane %v1085, 4
    %v1087 = vadd.f32 %v1085, %v1086
    %v1088 = vrot.slane %v1087, 2
    %v1089 = vadd.f32 %v1087, %v1088
    %v1090 = vrot.slane %v1089, 1
    %v1091 = vadd.f32 %v1089, %v1090
    %v1092 = vadd.f32 %v1022, %v1091
    %1093 = vst [vmem:[%s3] sm:$0x1] %v1092
    %v1094 = vld [vmem:[%s4] sm:$0x1]
    %v1095 = vmul.f32 %v894, %v894
    %v1096 = vmul.f32 %v895, %v895
    %v1097 = vmul.f32 %v896, %v896
    %v1098 = vmul.f32 %v897, %v897
    %v1099 = vmul.f32 %v898, %v898
    %v1100 = vmul.f32 %v899, %v899
    %v1101 = vmul.f32 %v900, %v900
    %v1102 = vmul.f32 %v901, %v901
    %v1103 = vmul.f32 %v902, %v902
    %v1104 = vmul.f32 %v903, %v903
    %v1105 = vmul.f32 %v904, %v904
    %v1106 = vmul.f32 %v905, %v905
    %v1107 = vmul.f32 %v906, %v906
    %v1108 = vmul.f32 %v907, %v907
    %v1109 = vmul.f32 %v908, %v908
    %v1110 = vmul.f32 %v909, %v909
    %v1111 = vmul.f32 %v910, %v910
    %v1112 = vmul.f32 %v911, %v911
    %v1113 = vmul.f32 %v912, %v912
    %v1114 = vmul.f32 %v913, %v913
    %v1115 = vmul.f32 %v914, %v914
    %v1116 = vmul.f32 %v915, %v915
    %v1117 = vmul.f32 %v916, %v916
    %v1118 = vmul.f32 %v917, %v917
    %v1119 = vmul.f32 %v918, %v918
    %v1120 = vmul.f32 %v919, %v919
    %v1121 = vmul.f32 %v920, %v920
    %v1122 = vmul.f32 %v921, %v921
    %v1123 = vmul.f32 %v922, %v922
    %v1124 = vmul.f32 %v923, %v923
    %v1125 = vmul.f32 %v924, %v924
    %v1126 = vmul.f32 %v925, %v925
    %v1127 = vmul.f32 %v926, %v926
    %v1128 = vmul.f32 %v927, %v927
    %v1129 = vmul.f32 %v928, %v928
    %v1130 = vmul.f32 %v929, %v929
    %v1131 = vmul.f32 %v930, %v930
    %v1132 = vmul.f32 %v931, %v931
    %v1133 = vmul.f32 %v932, %v932
    %v1134 = vmul.f32 %v933, %v933
    %v1135 = vmul.f32 %v934, %v934
    %v1136 = vmul.f32 %v935, %v935
    %v1137 = vmul.f32 %v936, %v936
    %v1138 = vmul.f32 %v937, %v937
    %v1139 = vmul.f32 %v938, %v938
    %v1140 = vmul.f32 %v939, %v939
    %v1141 = vmul.f32 %v940, %v940
    %v1142 = vmul.f32 %v941, %v941
    %v1143 = vmul.f32 %v942, %v942
    %v1144 = vmul.f32 %v943, %v943
    %v1145 = vmul.f32 %v944, %v944
    %v1146 = vmul.f32 %v945, %v945
    %v1147 = vmul.f32 %v946, %v946
    %v1148 = vmul.f32 %v947, %v947
    %v1149 = vmul.f32 %v948, %v948
    %v1150 = vmul.f32 %v949, %v949
    %v1151 = vmul.f32 %v950, %v950
    %v1152 = vmul.f32 %v951, %v951
    %v1153 = vmul.f32 %v952, %v952
    %v1154 = vmul.f32 %v953, %v953
    %v1155 = vmul.f32 %v954, %v954
    %v1156 = vmul.f32 %v955, %v955
    %v1157 = vmul.f32 %v956, %v956
    %v1158 = vmul.f32 %v957, %v957
    %v1159 = vadd.f32 %v1095, %v1096
    %v1160 = vadd.f32 %v1159, %v1097
    %v1161 = vadd.f32 %v1160, %v1098
    %v1162 = vadd.f32 %v1161, %v1099
    %v1163 = vadd.f32 %v1162, %v1100
    %v1164 = vadd.f32 %v1163, %v1101
    %v1165 = vadd.f32 %v1164, %v1102
    %v1166 = vadd.f32 %v1165, %v1103
    %v1167 = vadd.f32 %v1166, %v1104
    %v1168 = vadd.f32 %v1167, %v1105
    %v1169 = vadd.f32 %v1168, %v1106
    %v1170 = vadd.f32 %v1169, %v1107
    %v1171 = vadd.f32 %v1170, %v1108
    %v1172 = vadd.f32 %v1171, %v1109
    %v1173 = vadd.f32 %v1172, %v1110
    %v1174 = vadd.f32 %v1173, %v1111
    %v1175 = vadd.f32 %v1174, %v1112
    %v1176 = vadd.f32 %v1175, %v1113
    %v1177 = vadd.f32 %v1176, %v1114
    %v1178 = vadd.f32 %v1177, %v1115
    %v1179 = vadd.f32 %v1178, %v1116
    %v1180 = vadd.f32 %v1179, %v1117
    %v1181 = vadd.f32 %v1180, %v1118
    %v1182 = vadd.f32 %v1181, %v1119
    %v1183 = vadd.f32 %v1182, %v1120
    %v1184 = vadd.f32 %v1183, %v1121
    %v1185 = vadd.f32 %v1184, %v1122
    %v1186 = vadd.f32 %v1185, %v1123
    %v1187 = vadd.f32 %v1186, %v1124
    %v1188 = vadd.f32 %v1187, %v1125
    %v1189 = vadd.f32 %v1188, %v1126
    %v1190 = vadd.f32 %v1189, %v1127
    %v1191 = vadd.f32 %v1190, %v1128
    %v1192 = vadd.f32 %v1191, %v1129
    %v1193 = vadd.f32 %v1192, %v1130
    %v1194 = vadd.f32 %v1193, %v1131
    %v1195 = vadd.f32 %v1194, %v1132
    %v1196 = vadd.f32 %v1195, %v1133
    %v1197 = vadd.f32 %v1196, %v1134
    %v1198 = vadd.f32 %v1197, %v1135
    %v1199 = vadd.f32 %v1198, %v1136
    %v1200 = vadd.f32 %v1199, %v1137
    %v1201 = vadd.f32 %v1200, %v1138
    %v1202 = vadd.f32 %v1201, %v1139
    %v1203 = vadd.f32 %v1202, %v1140
    %v1204 = vadd.f32 %v1203, %v1141
    %v1205 = vadd.f32 %v1204, %v1142
    %v1206 = vadd.f32 %v1205, %v1143
    %v1207 = vadd.f32 %v1206, %v1144
    %v1208 = vadd.f32 %v1207, %v1145
    %v1209 = vadd.f32 %v1208, %v1146
    %v1210 = vadd.f32 %v1209, %v1147
    %v1211 = vadd.f32 %v1210, %v1148
    %v1212 = vadd.f32 %v1211, %v1149
    %v1213 = vadd.f32 %v1212, %v1150
    %v1214 = vadd.f32 %v1213, %v1151
    %v1215 = vadd.f32 %v1214, %v1152
    %v1216 = vadd.f32 %v1215, %v1153
    %v1217 = vadd.f32 %v1216, %v1154
    %v1218 = vadd.f32 %v1217, %v1155
    %v1219 = vadd.f32 %v1218, %v1156
    %v1220 = vadd.f32 %v1219, %v1157
    %v1221 = vadd.f32 %v1220, %v1158
    %v1222 = vrot.slane %v1221, 4
    %v1223 = vadd.f32 %v1221, %v1222
    %v1224 = vrot.slane %v1223, 2
    %v1225 = vadd.f32 %v1223, %v1224
    %v1226 = vrot.slane %v1225, 1
    %v1227 = vadd.f32 %v1225, %v1226
    %v1228 = vadd.f32 %v1094, %v1227
    %1229 = vst [vmem:[%s4] sm:$0x1] %v1228
  $region21: #{basic_block_forward.5} parent=0 // pred_fallthru
    _
  // Predicated region
  $region22: #{basic_block_forward.5} parent=0 // pred_check
    _
  $region23: #{basic_block_forward.5} parent=0 // pred_check_branch
    %1231 = sbr.rel (0) target = $region25
  $region24: #{basic_block_forward.5} parent=0 // pred_region
    _
  $region25: #{basic_block_forward.5} parent=0 // pred_fallthru
    _
  // Predicated region
  $region26: #{basic_block_forward.5} parent=0 // pred_check
    _
  $region27: #{basic_block_forward.5} parent=0 // pred_check_branch
    %1233 = sbr.rel (0) target = $region29
  $region28: #{basic_block_forward.5} parent=0 // pred_region
    _
  $region29: #{basic_block_forward.5} parent=0 // pred_fallthru
    _
  // Predicated region
  $region30: #{basic_block_forward.5} parent=0 // pred_check
    _
  $region31: #{basic_block_forward.5} parent=0 // pred_check_branch
    %1235 = sbr.rel (0) target = $region33
  $region32: #{basic_block_forward.5} parent=0 // pred_region
    _
  $region33: #{basic_block_forward.5} parent=0 // pred_fallthru
    _
  // Predicated region
  $region34: #{basic_block_forward.5} parent=0 // pred_check
    _
  $region35: #{basic_block_forward.5} parent=0 // pred_check_branch
    %1237 = sbr.rel (0) target = $region37
  $region36: #{basic_block_forward.5} parent=0 // pred_region
    _
  $region37: #{basic_block_forward.5} parent=0 // pred_fallthru
    _
  // Predicated region
  $region38: #{basic_block_forward.5} parent=0 // pred_check
    _
  $region39: #{basic_block_forward.5} parent=0 // pred_check_branch
    %1239 = sbr.rel (0) target = $region41
  $region40: #{basic_block_forward.5} parent=0 // pred_region
    _
  $region41: #{basic_block_forward.5} parent=0 // pred_fallthru
    _
  // Predicated region
  $region42: #{basic_block_forward.5} parent=0 // pred_check
    _
  $region43: #{basic_block_forward.5} parent=0 // pred_check_branch
    %1241 = sbr.rel (0) target = $region45
  $region44: #{basic_block_forward.5} parent=0 // pred_region
    _
  $region45: #{basic_block_forward.5} parent=0 // pred_fallthru
    _

// kernel: basic_block_forward.7
$region0: #{basic_block_forward.7}
  #allocation0 [shape = 'u32[]', space=smem, size = 0x4, offset = 0x4, fixed_abs, tag = 'smem constant byte address 0x4 - core index']
  #allocation1 [shape = 'u32[144,128]{1,0:T(1,128)}', space=vmem, size = 0x12000, scoped, tag = 'internal scratch']
  #allocation2 [shape = 'f32[128,128]{1,0:T(8,128)}', space=vmem, size = 0x10000, scoped, tag = 'scratch operand']
  %s0 = inlined_call_operand.vmem [shape: bf16[128,128], index: 0, kind: input, shape index: {}]
  %s1 = inlined_call_operand.vmem [shape: bf16[128,128], index: 1, kind: input, shape index: {}]
  %s2 = inlined_call_operand.vmem [shape: f32[128,128], index: 2, kind: output, shape index: {0}]
  %s3 = inlined_call_operand.vmem [shape: f32[1,128], index: 3, kind: output, shape index: {1}]
  %s4 = inlined_call_operand.vmem [shape: f32[1,128], index: 4, kind: output, shape index: {2}]
  %5 = xla_tuple %s2, %s3, %s4
  %s6 = sld [smem:[#allocation0]]
  $region46: #{basic_block_forward.7} parent=0
    _
  %s8 = ssub.s32 1, %s6
  %s9 = scalar_select 0, %s8, %s6
  // Predicated region
  $region2: #{basic_block_forward.7} parent=0 // pred_check
    _
  $region3: #{basic_block_forward.7} parent=0 // pred_check_branch
    %11 = sbr.rel (0) target = $region5
  $region4: #{basic_block_forward.7} parent=0 // pred_region
    _
  $region5: #{basic_block_forward.7} parent=0 // pred_fallthru
    _
  // Predicated region
  $region6: #{basic_block_forward.7} parent=0 // pred_check
    _
  $region7: #{basic_block_forward.7} parent=0 // pred_check_branch
    %13 = sbr.rel (0) target = $region9
  $region8: #{basic_block_forward.7} parent=0 // pred_region
    _
  $region9: #{basic_block_forward.7} parent=0 // pred_fallthru
    _
  %p15 = scmp.eq.s32.totalorder 0, 0
  // Predicated region
  $region10: #{basic_block_forward.7} parent=0 // pred_check
    %p16 = pneg %p15
  $region11: #{basic_block_forward.7} parent=0 // pred_check_branch
    %18 = sbr.rel (%p16) target = $region13
  $region12: #{basic_block_forward.7} parent=0 // pred_region
    %19 = vst [vmem:[#allocation2] sm:$0xff] 0.0
    %20 = vst [vmem:[#allocation2 + $0x8] sm:$0xff] 0.0
    %21 = vst [vmem:[#allocation2 + $0x10] sm:$0xff] 0.0
    %22 = vst [vmem:[#allocation2 + $0x18] sm:$0xff] 0.0
    %23 = vst [vmem:[#allocation2 + $0x20] sm:$0xff] 0.0
    %24 = vst [vmem:[#allocation2 + $0x28] sm:$0xff] 0.0
    %25 = vst [vmem:[#allocation2 + $0x30] sm:$0xff] 0.0
    %26 = vst [vmem:[#allocation2 + $0x38] sm:$0xff] 0.0
    %27 = vst [vmem:[#allocation2 + $0x40] sm:$0xff] 0.0
    %28 = vst [vmem:[#allocation2 + $0x48] sm:$0xff] 0.0
    %29 = vst [vmem:[#allocation2 + $0x50] sm:$0xff] 0.0
    %30 = vst [vmem:[#allocation2 + $0x58] sm:$0xff] 0.0
    %31 = vst [vmem:[#allocation2 + $0x60] sm:$0xff] 0.0
    %32 = vst [vmem:[#allocation2 + $0x68] sm:$0xff] 0.0
    %33 = vst [vmem:[#allocation2 + $0x70] sm:$0xff] 0.0
    %34 = vst [vmem:[#allocation2 + $0x78] sm:$0xff] 0.0
  $region13: #{basic_block_forward.7} parent=0 // pred_fallthru
    _
  %p35 = scmp.eq.s32.totalorder 0, 0
  %p36 = pnand %p35, %p15
  %p37 = pneg %p36
  // Predicated region
  $region14: #{basic_block_forward.7} parent=0 // pred_check
    _
  $region15: #{basic_block_forward.7} parent=0 // pred_check_branch
    %39 = sbr.rel (%p36) target = $region17
  $region16: #{basic_block_forward.7} parent=0 // pred_region
    %40 = vst [vmem:[%s3] sm:$0x1] 0.0
    %41 = vst [vmem:[%s4] sm:$0x1] 0.0
  $region17: #{basic_block_forward.7} parent=0 // pred_fallthru
    _
  %v42 = vld [vmem:[#allocation2] sm:$0xff]
  %v43 = vld [vmem:[#allocation2 + $0x8] sm:$0xff]
  %v44 = vld [vmem:[#allocation2 + $0x10] sm:$0xff]
  %v45 = vld [vmem:[#allocation2 + $0x18] sm:$0xff]
  %v46 = vld [vmem:[#allocation2 + $0x20] sm:$0xff]
  %v47 = vld [vmem:[#allocation2 + $0x28] sm:$0xff]
  %v48 = vld [vmem:[#allocation2 + $0x30] sm:$0xff]
  %v49 = vld [vmem:[#allocation2 + $0x38] sm:$0xff]
  %v50 = vld [vmem:[#allocation2 + $0x40] sm:$0xff]
  %v51 = vld [vmem:[#allocation2 + $0x48] sm:$0xff]
  %v52 = vld [vmem:[#allocation2 + $0x50] sm:$0xff]
  %v53 = vld [vmem:[#allocation2 + $0x58] sm:$0xff]
  %v54 = vld [vmem:[#allocation2 + $0x60] sm:$0xff]
  %v55 = vld [vmem:[#allocation2 + $0x68] sm:$0xff]
  %v56 = vld [vmem:[#allocation2 + $0x70] sm:$0xff]
  %v57 = vld [vmem:[#allocation2 + $0x78] sm:$0xff]
  %v58 = vld [vmem:[%s0] sm:$0xf]
  %v59 = vld [vmem:[%s0 + $0x4] sm:$0xf]
  %v60 = vld [vmem:[%s0 + $0x8] sm:$0xf]
  %v61 = vld [vmem:[%s0 + $0xc] sm:$0xf]
  %v62 = vld [vmem:[%s0 + $0x10] sm:$0xf]
  %v63 = vld [vmem:[%s0 + $0x14] sm:$0xf]
  %v64 = vld [vmem:[%s0 + $0x18] sm:$0xf]
  %v65 = vld [vmem:[%s0 + $0x1c] sm:$0xf]
  %v66 = vld [vmem:[%s0 + $0x20] sm:$0xf]
  %v67 = vld [vmem:[%s0 + $0x24] sm:$0xf]
  %v68 = vld [vmem:[%s0 + $0x28] sm:$0xf]
  %v69 = vld [vmem:[%s0 + $0x2c] sm:$0xf]
  %v70 = vld [vmem:[%s0 + $0x30] sm:$0xf]
  %v71 = vld [vmem:[%s0 + $0x34] sm:$0xf]
  %v72 = vld [vmem:[%s0 + $0x38] sm:$0xf]
  %v73 = vld [vmem:[%s0 + $0x3c] sm:$0xf]
  %v74 = vld [vmem:[%s1] sm:$0xf]
  %v75 = vld [vmem:[%s1 + $0x4] sm:$0xf]
  %v76 = vld [vmem:[%s1 + $0x8] sm:$0xf]
  %v77 = vld [vmem:[%s1 + $0xc] sm:$0xf]
  %v78 = vld [vmem:[%s1 + $0x10] sm:$0xf]
  %v79 = vld [vmem:[%s1 + $0x14] sm:$0xf]
  %v80 = vld [vmem:[%s1 + $0x18] sm:$0xf]
  %v81 = vld [vmem:[%s1 + $0x1c] sm:$0xf]
  %v82 = vld [vmem:[%s1 + $0x20] sm:$0xf]
  %v83 = vld [vmem:[%s1 + $0x24] sm:$0xf]
  %v84 = vld [vmem:[%s1 + $0x28] sm:$0xf]
  %v85 = vld [vmem:[%s1 + $0x2c] sm:$0xf]
  %v86 = vld [vmem:[%s1 + $0x30] sm:$0xf]
  %v87 = vld [vmem:[%s1 + $0x34] sm:$0xf]
  %v88 = vld [vmem:[%s1 + $0x38] sm:$0xf]
  %v89 = vld [vmem:[%s1 + $0x3c] sm:$0xf]
  %v106 = vunpack.c.l.b16 %v58
  %v107 = vunpack.c.l.b16 %v59
  %v108 = vunpack.c.l.b16 %v60
  %v109 = vunpack.c.l.b16 %v61
  %v110 = vunpack.c.l.b16 %v62
  %v111 = vunpack.c.l.b16 %v63
  %v112 = vunpack.c.l.b16 %v64
  %v113 = vunpack.c.l.b16 %v65
  %v114 = vunpack.c.l.b16 %v66
  %v115 = vunpack.c.l.b16 %v67
  %v116 = vunpack.c.l.b16 %v68
  %v117 = vunpack.c.l.b16 %v69
  %v118 = vunpack.c.l.b16 %v70
  %v119 = vunpack.c.l.b16 %v71
  %v120 = vunpack.c.l.b16 %v72
  %v121 = vunpack.c.l.b16 %v73
  %v122 = vpack.c.b16 %v107, %v106
  %v123 = vpack.c.b16 %v109, %v108
  %v124 = vpack.c.b16 %v111, %v110
  %v125 = vpack.c.b16 %v113, %v112
  %v126 = vpack.c.b16 %v115, %v114
  %v127 = vpack.c.b16 %v117, %v116
  %v128 = vpack.c.b16 %v119, %v118
  %v129 = vpack.c.b16 %v121, %v120
  %v154 = vunpack.c.l.b16 %v74
  %v155 = vunpack.c.l.b16 %v75
  %v156 = vunpack.c.l.b16 %v76
  %v157 = vunpack.c.l.b16 %v77
  %v158 = vunpack.c.l.b16 %v78
  %v159 = vunpack.c.l.b16 %v79
  %v160 = vunpack.c.l.b16 %v80
  %v161 = vunpack.c.l.b16 %v81
  %v162 = vunpack.c.l.b16 %v82
  %v163 = vunpack.c.l.b16 %v83
  %v164 = vunpack.c.l.b16 %v84
  %v165 = vunpack.c.l.b16 %v85
  %v166 = vunpack.c.l.b16 %v86
  %v167 = vunpack.c.l.b16 %v87
  %v168 = vunpack.c.l.b16 %v88
  %v169 = vunpack.c.l.b16 %v89
  %v170 = vpack.c.b16 %v155, %v154
  %v171 = vpack.c.b16 %v157, %v156
  %v172 = vpack.c.b16 %v159, %v158
  %v173 = vpack.c.b16 %v161, %v160
  %v174 = vpack.c.b16 %v163, %v162
  %v175 = vpack.c.b16 %v165, %v164
  %v176 = vpack.c.b16 %v167, %v166
  %v177 = vpack.c.b16 %v169, %v168
  %186 = vmatprep.subr.bf16.mxu0 0
  %187 = vmatpush1.bf16.msra.mxu0 %v170
  %188 = vmatprep.subr.bf16.mxu0 0
  %189 = vmatpush1.bf16.msra.mxu0 %v171
  %190 = vmatprep.subr.bf16.mxu0 0
  %191 = vmatpush1.bf16.msra.mxu0 %v172
  %192 = vmatprep.subr.bf16.mxu0 0
  %193 = vmatpush1.bf16.msra.mxu0 %v173
  %194 = vmatprep.subr.bf16.mxu0 0
  %195 = vmatpush1.bf16.msra.mxu0 %v174
  %196 = vmatprep.subr.bf16.mxu0 0
  %197 = vmatpush1.bf16.msra.mxu0 %v175
  %198 = vmatprep.subr.bf16.mxu0 0
  %199 = vmatpush1.bf16.msra.mxu0 %v176
  %200 = vmatprep.subr.bf16.mxu0 0
  %201 = vmatpush1.bf16.msra.mxu0 %v177
  %202 = vmatprep.subr.bf16.mxu0 0
  %203 = vmatpush1.bf16.msra.mxu0 0
  %204 = vmatprep.subr.bf16.mxu0 0
  %205 = vmatpush1.bf16.msra.mxu0 0
  %206 = vmatprep.subr.bf16.mxu0 0
  %207 = vmatpush1.bf16.msra.mxu0 0
  %208 = vmatprep.subr.bf16.mxu0 0
  %209 = vmatpush1.bf16.msra.mxu0 0
  %210 = vmatprep.subr.bf16.mxu0 0
  %211 = vmatpush1.bf16.msra.mxu0 0
  %212 = vmatprep.subr.bf16.mxu0 0
  %213 = vmatpush1.bf16.msra.mxu0 0
  %214 = vmatprep.subr.bf16.mxu0 0
  %215 = vmatpush1.bf16.msra.mxu0 0
  %216 = vmatprep.subr.bf16.mxu0 0
  %217 = vmatpush1.bf16.msra.mxu0 0
  %218 = vmatprep.mubr.bf16.mxu0 0
  %219 = vmatmul.mubr.bf16.gmra.mrb[0].mxu0 %v122
  %v220 = vpop.f32.mrb[0].mxu0
  %v221 = vadd.f32 0.0, %v220
  %v222 = vpop.f32.mrb[0].mxu0
  %v223 = vpop.f32.mrb[0].mxu0
  %v224 = vadd.f32 0.0, %v223
  %v225 = vpop.f32.mrb[0].mxu0
  %226 = vmatprep.mubr.bf16.mxu0 0
  %227 = vmatmul.mubr.bf16.gmra.mrb[0].mxu0 %v123
  %v228 = vpop.f32.mrb[0].mxu0
  %v229 = vadd.f32 0.0, %v228
  %v230 = vpop.f32.mrb[0].mxu0
  %v231 = vpop.f32.mrb[0].mxu0
  %v232 = vadd.f32 0.0, %v231
  %v233 = vpop.f32.mrb[0].mxu0
  %234 = vmatprep.mubr.bf16.mxu0 0
  %235 = vmatmul.mubr.bf16.gmra.mrb[0].mxu0 %v124
  %v236 = vpop.f32.mrb[0].mxu0
  %v237 = vadd.f32 0.0, %v236
  %v238 = vpop.f32.mrb[0].mxu0
  %v239 = vpop.f32.mrb[0].mxu0
  %v240 = vadd.f32 0.0, %v239
  %v241 = vpop.f32.mrb[0].mxu0
  %242 = vmatprep.mubr.bf16.mxu0 0
  %243 = vmatmul.mubr.bf16.gmra.mrb[0].mxu0 %v125
  %v244 = vpop.f32.mrb[0].mxu0
  %v245 = vadd.f32 0.0, %v244
  %v246 = vpop.f32.mrb[0].mxu0
  %v247 = vpop.f32.mrb[0].mxu0
  %v248 = vadd.f32 0.0, %v247
  %v249 = vpop.f32.mrb[0].mxu0
  %250 = vmatprep.mubr.bf16.mxu0 0
  %251 = vmatmul.mubr.bf16.gmra.mrb[0].mxu0 %v126
  %v252 = vpop.f32.mrb[0].mxu0
  %v253 = vadd.f32 0.0, %v252
  %v254 = vpop.f32.mrb[0].mxu0
  %v255 = vpop.f32.mrb[0].mxu0
  %v256 = vadd.f32 0.0, %v255
  %v257 = vpop.f32.mrb[0].mxu0
  %258 = vmatprep.mubr.bf16.mxu0 0
  %259 = vmatmul.mubr.bf16.gmra.mrb[0].mxu0 %v127
  %v260 = vpop.f32.mrb[0].mxu0
  %v261 = vadd.f32 0.0, %v260
  %v262 = vpop.f32.mrb[0].mxu0
  %v263 = vpop.f32.mrb[0].mxu0
  %v264 = vadd.f32 0.0, %v263
  %v265 = vpop.f32.mrb[0].mxu0
  %266 = vmatprep.mubr.bf16.mxu0 0
  %267 = vmatmul.mubr.bf16.gmra.mrb[0].mxu0 %v128
  %v268 = vpop.f32.mrb[0].mxu0
  %v269 = vadd.f32 0.0, %v268
  %v270 = vpop.f32.mrb[0].mxu0
  %v271 = vpop.f32.mrb[0].mxu0
  %v272 = vadd.f32 0.0, %v271
  %v273 = vpop.f32.mrb[0].mxu0
  %274 = vmatprep.mubr.bf16.mxu0 0
  %275 = vmatmul.mubr.bf16.gmra.mrb[0].mxu0 %v129
  %v276 = vpop.f32.mrb[0].mxu0
  %v277 = vadd.f32 0.0, %v276
  %v278 = vpop.f32.mrb[0].mxu0
  %v279 = vpop.f32.mrb[0].mxu0
  %v280 = vadd.f32 0.0, %v279
  %v281 = vpop.f32.mrb[0].mxu0
  %282 = vdwg.mxu0
  %v283 = vadd.f32 %v42, %v221
  %v284 = vadd.f32 %v43, %v224
  %v285 = vadd.f32 %v44, %v229
  %v286 = vadd.f32 %v45, %v232
  %v287 = vadd.f32 %v46, %v237
  %v288 = vadd.f32 %v47, %v240
  %v289 = vadd.f32 %v48, %v245
  %v290 = vadd.f32 %v49, %v248
  %v291 = vadd.f32 %v50, %v253
  %v292 = vadd.f32 %v51, %v256
  %v293 = vadd.f32 %v52, %v261
  %v294 = vadd.f32 %v53, %v264
  %v295 = vadd.f32 %v54, %v269
  %v296 = vadd.f32 %v55, %v272
  %v297 = vadd.f32 %v56, %v277
  %v298 = vadd.f32 %v57, %v280
  %299 = vst [vmem:[#allocation2] sm:$0xff] %v283
  %300 = vst [vmem:[#allocation2 + $0x8] sm:$0xff] %v284
  %301 = vst [vmem:[#allocation2 + $0x10] sm:$0xff] %v285
  %302 = vst [vmem:[#allocation2 + $0x18] sm:$0xff] %v286
  %303 = vst [vmem:[#allocation2 + $0x20] sm:$0xff] %v287
  %304 = vst [vmem:[#allocation2 + $0x28] sm:$0xff] %v288
  %305 = vst [vmem:[#allocation2 + $0x30] sm:$0xff] %v289
  %306 = vst [vmem:[#allocation2 + $0x38] sm:$0xff] %v290
  %307 = vst [vmem:[#allocation2 + $0x40] sm:$0xff] %v291
  %308 = vst [vmem:[#allocation2 + $0x48] sm:$0xff] %v292
  %309 = vst [vmem:[#allocation2 + $0x50] sm:$0xff] %v293
  %310 = vst [vmem:[#allocation2 + $0x58] sm:$0xff] %v294
  %311 = vst [vmem:[#allocation2 + $0x60] sm:$0xff] %v295
  %312 = vst [vmem:[#allocation2 + $0x68] sm:$0xff] %v296
  %313 = vst [vmem:[#allocation2 + $0x70] sm:$0xff] %v297
  %314 = vst [vmem:[#allocation2 + $0x78] sm:$0xff] %v298
  // Predicated region
  $region18: #{basic_block_forward.7} parent=0 // pred_check
    %p315 = pneg %p15
  $region19: #{basic_block_forward.7} parent=0 // pred_check_branch
    %317 = sbr.rel (%p315) target = $region21
  $region20: #{basic_block_forward.7} parent=0 // pred_region
    %v318 = vld [vmem:[#allocation2] sm:$0xff]
    %v319 = vld [vmem:[#allocation2 + $0x8] sm:$0xff]
    %v320 = vld [vmem:[#allocation2 + $0x10] sm:$0xff]
    %v321 = vld [vmem:[#allocation2 + $0x18] sm:$0xff]
    %v322 = vld [vmem:[#allocation2 + $0x20] sm:$0xff]
    %v323 = vld [vmem:[#allocation2 + $0x28] sm:$0xff]
    %v324 = vld [vmem:[#allocation2 + $0x30] sm:$0xff]
    %v325 = vld [vmem:[#allocation2 + $0x38] sm:$0xff]
    %v326 = vld [vmem:[#allocation2 + $0x40] sm:$0xff]
    %v327 = vld [vmem:[#allocation2 + $0x48] sm:$0xff]
    %v328 = vld [vmem:[#allocation2 + $0x50] sm:$0xff]
    %v329 = vld [vmem:[#allocation2 + $0x58] sm:$0xff]
    %v330 = vld [vmem:[#allocation2 + $0x60] sm:$0xff]
    %v331 = vld [vmem:[#allocation2 + $0x68] sm:$0xff]
    %v332 = vld [vmem:[#allocation2 + $0x70] sm:$0xff]
    %v333 = vld [vmem:[#allocation2 + $0x78] sm:$0xff]
    %334 = vst [vmem:[%s2] sm:$0xff] %v318
    %335 = vst [vmem:[%s2 + $0x8] sm:$0xff] %v319
    %336 = vst [vmem:[%s2 + $0x10] sm:$0xff] %v320
    %337 = vst [vmem:[%s2 + $0x18] sm:$0xff] %v321
    %338 = vst [vmem:[%s2 + $0x20] sm:$0xff] %v322
    %339 = vst [vmem:[%s2 + $0x28] sm:$0xff] %v323
    %340 = vst [vmem:[%s2 + $0x30] sm:$0xff] %v324
    %341 = vst [vmem:[%s2 + $0x38] sm:$0xff] %v325
    %342 = vst [vmem:[%s2 + $0x40] sm:$0xff] %v326
    %343 = vst [vmem:[%s2 + $0x48] sm:$0xff] %v327
    %344 = vst [vmem:[%s2 + $0x50] sm:$0xff] %v328
    %345 = vst [vmem:[%s2 + $0x58] sm:$0xff] %v329
    %346 = vst [vmem:[%s2 + $0x60] sm:$0xff] %v330
    %347 = vst [vmem:[%s2 + $0x68] sm:$0xff] %v331
    %348 = vst [vmem:[%s2 + $0x70] sm:$0xff] %v332
    %349 = vst [vmem:[%s2 + $0x78] sm:$0xff] %v333
    %v350 = vld [vmem:[%s3] sm:$0x1]
    %v351 = vadd.f32 %v318, %v319
    %v352 = vadd.f32 %v351, %v320
    %v353 = vadd.f32 %v352, %v321
    %v354 = vadd.f32 %v353, %v322
    %v355 = vadd.f32 %v354, %v323
    %v356 = vadd.f32 %v355, %v324
    %v357 = vadd.f32 %v356, %v325
    %v358 = vadd.f32 %v357, %v326
    %v359 = vadd.f32 %v358, %v327
    %v360 = vadd.f32 %v359, %v328
    %v361 = vadd.f32 %v360, %v329
    %v362 = vadd.f32 %v361, %v330
    %v363 = vadd.f32 %v362, %v331
    %v364 = vadd.f32 %v363, %v332
    %v365 = vadd.f32 %v364, %v333
    %v366 = vrot.slane %v365, 4
    %v367 = vadd.f32 %v365, %v366
    %v368 = vrot.slane %v367, 2
    %v369 = vadd.f32 %v367, %v368
    %v370 = vrot.slane %v369, 1
    %v371 = vadd.f32 %v369, %v370
    %v372 = vadd.f32 %v350, %v371
    %373 = vst [vmem:[%s3] sm:$0x1] %v372
    %v374 = vld [vmem:[%s4] sm:$0x1]
    %v375 = vmul.f32 %v318, %v318
    %v376 = vmul.f32 %v319, %v319
    %v377 = vmul.f32 %v320, %v320
    %v378 = vmul.f32 %v321, %v321
    %v379 = vmul.f32 %v322, %v322
    %v380 = vmul.f32 %v323, %v323
    %v381 = vmul.f32 %v324, %v324
    %v382 = vmul.f32 %v325, %v325
    %v383 = vmul.f32 %v326, %v326
    %v384 = vmul.f32 %v327, %v327
    %v385 = vmul.f32 %v328, %v328
    %v386 = vmul.f32 %v329, %v329
    %v387 = vmul.f32 %v330, %v330
    %v388 = vmul.f32 %v331, %v331
    %v389 = vmul.f32 %v332, %v332
    %v390 = vmul.f32 %v333, %v333
    %v391 = vadd.f32 %v375, %v376
    %v392 = vadd.f32 %v391, %v377
    %v393 = vadd.f32 %v392, %v378
    %v394 = vadd.f32 %v393, %v379
    %v395 = vadd.f32 %v394, %v380
    %v396 = vadd.f32 %v395, %v381
    %v397 = vadd.f32 %v396, %v382
    %v398 = vadd.f32 %v397, %v383
    %v399 = vadd.f32 %v398, %v384
    %v400 = vadd.f32 %v399, %v385
    %v401 = vadd.f32 %v400, %v386
    %v402 = vadd.f32 %v401, %v387
    %v403 = vadd.f32 %v402, %v388
    %v404 = vadd.f32 %v403, %v389
    %v405 = vadd.f32 %v404, %v390
    %v406 = vrot.slane %v405, 4
    %v407 = vadd.f32 %v405, %v406
    %v408 = vrot.slane %v407, 2
    %v409 = vadd.f32 %v407, %v408
    %v410 = vrot.slane %v409, 1
    %v411 = vadd.f32 %v409, %v410
    %v412 = vadd.f32 %v374, %v411
    %413 = vst [vmem:[%s4] sm:$0x1] %v412
  $region21: #{basic_block_forward.7} parent=0 // pred_fallthru
    _
  // Predicated region
  $region22: #{basic_block_forward.7} parent=0 // pred_check
    _
  $region23: #{basic_block_forward.7} parent=0 // pred_check_branch
    %415 = sbr.rel (0) target = $region25
  $region24: #{basic_block_forward.7} parent=0 // pred_region
    _
  $region25: #{basic_block_forward.7} parent=0 // pred_fallthru
    _
  // Predicated region
  $region26: #{basic_block_forward.7} parent=0 // pred_check
    _
  $region27: #{basic_block_forward.7} parent=0 // pred_check_branch
    %417 = sbr.rel (0) target = $region29
  $region28: #{basic_block_forward.7} parent=0 // pred_region
    _
  $region29: #{basic_block_forward.7} parent=0 // pred_fallthru
    _
  // Predicated region
  $region30: #{basic_block_forward.7} parent=0 // pred_check
    _
  $region31: #{basic_block_forward.7} parent=0 // pred_check_branch
    %419 = sbr.rel (0) target = $region33
  $region32: #{basic_block_forward.7} parent=0 // pred_region
    _
  $region33: #{basic_block_forward.7} parent=0 // pred_fallthru
    _
  // Predicated region
  $region34: #{basic_block_forward.7} parent=0 // pred_check
    _
  $region35: #{basic_block_forward.7} parent=0 // pred_check_branch
    %421 = sbr.rel (0) target = $region37
  $region36: #{basic_block_forward.7} parent=0 // pred_region
    _
  $region37: #{basic_block_forward.7} parent=0 // pred_fallthru
    _
  // Predicated region
  $region38: #{basic_block_forward.7} parent=0 // pred_check
    _
  $region39: #{basic_block_forward.7} parent=0 // pred_check_branch
    %423 = sbr.rel (0) target = $region41
  $region40: #{basic_block_forward.7} parent=0 // pred_region
    _
  $region41: #{basic_block_forward.7} parent=0 // pred_fallthru
    _
  // Predicated region
  $region42: #{basic_block_forward.7} parent=0 // pred_check
    _
  $region43: #{basic_block_forward.7} parent=0 // pred_check_branch
    %425 = sbr.rel (0) target = $region45
  $region44: #{basic_block_forward.7} parent=0 // pred_region
    _
  $region45: #{basic_block_forward.7} parent=0 // pred_fallthru
    _

// kernel: basic_block_forward.9
$region0: #{basic_block_forward.9}
  #allocation0 [shape = 'u32[]', space=smem, size = 0x4, offset = 0x4, fixed_abs, tag = 'smem constant byte address 0x4 - core index']
  #allocation1 [shape = 'u32[144,128]{1,0:T(1,128)}', space=vmem, size = 0x12000, scoped, tag = 'internal scratch']
  %s0 = inlined_call_operand.vmem [shape: f32[128,128], index: 0, kind: input, shape index: {}]
  %s1 = inlined_call_operand.vmem [shape: f32[1,128], index: 1, kind: input, shape index: {}]
  %s2 = inlined_call_operand.vmem [shape: f32[1,128], index: 2, kind: input, shape index: {}]
  %s3 = inlined_call_operand.vmem [shape: f32[1,128], index: 3, kind: input, shape index: {}]
  %s4 = inlined_call_operand.vmem [shape: f32[1,128], index: 4, kind: input, shape index: {}]
  %s5 = inlined_call_operand.vmem [shape: f32[128,128], index: 5, kind: input, shape index: {}]
  %s6 = inlined_call_operand.vmem [shape: f32[1,128], index: 6, kind: input, shape index: {}]
  %s7 = inlined_call_operand.vmem [shape: f32[1,128], index: 7, kind: input, shape index: {}]
  %s8 = inlined_call_operand.vmem [shape: f32[1,128], index: 8, kind: input, shape index: {}]
  %s9 = inlined_call_operand.vmem [shape: f32[1,128], index: 9, kind: input, shape index: {}]
  %s10 = inlined_call_operand.vmem [shape: f32[128,128], index: 10, kind: output, shape index: {}]
  %s11 = sld [smem:[#allocation0]]
  $region50: #{basic_block_forward.9} parent=0
    _
  %s13 = ssub.s32 1, %s11
  %s14 = scalar_select 0, %s13, %s11
  // Predicated region
  $region2: #{basic_block_forward.9} parent=0 // pred_check
    _
  $region3: #{basic_block_forward.9} parent=0 // pred_check_branch
    %16 = sbr.rel (0) target = $region5
  $region4: #{basic_block_forward.9} parent=0 // pred_region
    _
  $region5: #{basic_block_forward.9} parent=0 // pred_fallthru
    _
  // Predicated region
  $region6: #{basic_block_forward.9} parent=0 // pred_check
    _
  $region7: #{basic_block_forward.9} parent=0 // pred_check_branch
    %18 = sbr.rel (0) target = $region9
  $region8: #{basic_block_forward.9} parent=0 // pred_region
    _
  $region9: #{basic_block_forward.9} parent=0 // pred_fallthru
    _
  // Predicated region
  $region10: #{basic_block_forward.9} parent=0 // pred_check
    _
  $region11: #{basic_block_forward.9} parent=0 // pred_check_branch
    %20 = sbr.rel (0) target = $region13
  $region12: #{basic_block_forward.9} parent=0 // pred_region
    _
  $region13: #{basic_block_forward.9} parent=0 // pred_fallthru
    _
  // Predicated region
  $region14: #{basic_block_forward.9} parent=0 // pred_check
    _
  $region15: #{basic_block_forward.9} parent=0 // pred_check_branch
    %22 = sbr.rel (0) target = $region17
  $region16: #{basic_block_forward.9} parent=0 // pred_region
    _
  $region17: #{basic_block_forward.9} parent=0 // pred_fallthru
    _
  // Predicated region
  $region18: #{basic_block_forward.9} parent=0 // pred_check
    _
  $region19: #{basic_block_forward.9} parent=0 // pred_check_branch
    %24 = sbr.rel (0) target = $region21
  $region20: #{basic_block_forward.9} parent=0 // pred_region
    _
  $region21: #{basic_block_forward.9} parent=0 // pred_fallthru
    _
  // Predicated region
  $region22: #{basic_block_forward.9} parent=0 // pred_check
    _
  $region23: #{basic_block_forward.9} parent=0 // pred_check_branch
    %26 = sbr.rel (0) target = $region25
  $region24: #{basic_block_forward.9} parent=0 // pred_region
    _
  $region25: #{basic_block_forward.9} parent=0 // pred_fallthru
    _
  // Predicated region
  $region26: #{basic_block_forward.9} parent=0 // pred_check
    _
  $region27: #{basic_block_forward.9} parent=0 // pred_check_branch
    %28 = sbr.rel (0) target = $region29
  $region28: #{basic_block_forward.9} parent=0 // pred_region
    _
  $region29: #{basic_block_forward.9} parent=0 // pred_fallthru
    _
  // Predicated region
  $region30: #{basic_block_forward.9} parent=0 // pred_check
    _
  $region31: #{basic_block_forward.9} parent=0 // pred_check_branch
    %30 = sbr.rel (0) target = $region33
  $region32: #{basic_block_forward.9} parent=0 // pred_region
    _
  $region33: #{basic_block_forward.9} parent=0 // pred_fallthru
    _
  // Predicated region
  $region34: #{basic_block_forward.9} parent=0 // pred_check
    _
  $region35: #{basic_block_forward.9} parent=0 // pred_check_branch
    %32 = sbr.rel (0) target = $region37
  $region36: #{basic_block_forward.9} parent=0 // pred_region
    _
  $region37: #{basic_block_forward.9} parent=0 // pred_fallthru
    _
  // Predicated region
  $region38: #{basic_block_forward.9} parent=0 // pred_check
    _
  $region39: #{basic_block_forward.9} parent=0 // pred_check_branch
    %34 = sbr.rel (0) target = $region41
  $region40: #{basic_block_forward.9} parent=0 // pred_region
    _
  $region41: #{basic_block_forward.9} parent=0 // pred_fallthru
    _
  %v35 = vld [vmem:[%s0] sm:$0xff]
  %v36 = vld [vmem:[%s0 + $0x8] sm:$0xff]
  %v37 = vld [vmem:[%s0 + $0x10] sm:$0xff]
  %v38 = vld [vmem:[%s0 + $0x18] sm:$0xff]
  %v39 = vld [vmem:[%s0 + $0x20] sm:$0xff]
  %v40 = vld [vmem:[%s0 + $0x28] sm:$0xff]
  %v41 = vld [vmem:[%s0 + $0x30] sm:$0xff]
  %v42 = vld [vmem:[%s0 + $0x38] sm:$0xff]
  %v43 = vld [vmem:[%s0 + $0x40] sm:$0xff]
  %v44 = vld [vmem:[%s0 + $0x48] sm:$0xff]
  %v45 = vld [vmem:[%s0 + $0x50] sm:$0xff]
  %v46 = vld [vmem:[%s0 + $0x58] sm:$0xff]
  %v47 = vld [vmem:[%s0 + $0x60] sm:$0xff]
  %v48 = vld [vmem:[%s0 + $0x68] sm:$0xff]
  %v49 = vld [vmem:[%s0 + $0x70] sm:$0xff]
  %v50 = vld [vmem:[%s0 + $0x78] sm:$0xff]
  %v51 = vld [vmem:[%s1] sm:$0x1]
  %v52 = vmul.f32 %v51, 0.0078125
  %v53 = vld [vmem:[%s2] sm:$0x1]
  %v54 = vmul.f32 %v53, 0.0078125
  %v55 = vmul.f32 %v52, %v52
  %v56 = vsub.f32 %v54, %v55
  %v58 = vlaneseq
  %v59 = vshrl.u32 %v58, 7
  %v60 = vsub.s32 0, %v59
  %v61 = vrot.slane %v52, %v60
  %v63 = vsub.f32 %v35, %v61
  %v64 = vsub.f32 %v36, %v61
  %v65 = vsub.f32 %v37, %v61
  %v66 = vsub.f32 %v38, %v61
  %v67 = vsub.f32 %v39, %v61
  %v68 = vsub.f32 %v40, %v61
  %v69 = vsub.f32 %v41, %v61
  %v70 = vsub.f32 %v42, %v61
  %v71 = vsub.f32 %v43, %v61
  %v72 = vsub.f32 %v44, %v61
  %v73 = vsub.f32 %v45, %v61
  %v74 = vsub.f32 %v46, %v61
  %v75 = vsub.f32 %v47, %v61
  %v76 = vsub.f32 %v48, %v61
  %v77 = vsub.f32 %v49, %v61
  %v78 = vsub.f32 %v50, %v61
  %v79 = vadd.f32 %v56, 1e-05
  %v80 = vrsqrt.pop %v79
  %v82 = vlaneseq
  %v83 = vshrl.u32 %v82, 7
  %v84 = vsub.s32 0, %v83
  %v85 = vrot.slane %v80, %v84
  %v87 = vmul.f32 %v63, %v85
  %v88 = vmul.f32 %v64, %v85
  %v89 = vmul.f32 %v65, %v85
  %v90 = vmul.f32 %v66, %v85
  %v91 = vmul.f32 %v67, %v85
  %v92 = vmul.f32 %v68, %v85
  %v93 = vmul.f32 %v69, %v85
  %v94 = vmul.f32 %v70, %v85
  %v95 = vmul.f32 %v71, %v85
  %v96 = vmul.f32 %v72, %v85
  %v97 = vmul.f32 %v73, %v85
  %v98 = vmul.f32 %v74, %v85
  %v99 = vmul.f32 %v75, %v85
  %v100 = vmul.f32 %v76, %v85
  %v101 = vmul.f32 %v77, %v85
  %v102 = vmul.f32 %v78, %v85
  %v103 = vld [vmem:[%s3] sm:$0x1]
  %v105 = vlaneseq
  %v106 = vshrl.u32 %v105, 7
  %v107 = vsub.s32 0, %v106
  %v108 = vrot.slane %v103, %v107
  %v110 = vmul.f32 %v87, %v108
  %v111 = vmul.f32 %v88, %v108
  %v112 = vmul.f32 %v89, %v108
  %v113 = vmul.f32 %v90, %v108
  %v114 = vmul.f32 %v91, %v108
  %v115 = vmul.f32 %v92, %v108
  %v116 = vmul.f32 %v93, %v108
  %v117 = vmul.f32 %v94, %v108
  %v118 = vmul.f32 %v95, %v108
  %v119 = vmul.f32 %v96, %v108
  %v120 = vmul.f32 %v97, %v108
  %v121 = vmul.f32 %v98, %v108
  %v122 = vmul.f32 %v99, %v108
  %v123 = vmul.f32 %v100, %v108
  %v124 = vmul.f32 %v101, %v108
  %v125 = vmul.f32 %v102, %v108
  %v126 = vld [vmem:[%s4] sm:$0x1]
  %v128 = vlaneseq
  %v129 = vshrl.u32 %v128, 7
  %v130 = vsub.s32 0, %v129
  %v131 = vrot.slane %v126, %v130
  %v133 = vadd.f32 %v110, %v131
  %v134 = vadd.f32 %v111, %v131
  %v135 = vadd.f32 %v112, %v131
  %v136 = vadd.f32 %v113, %v131
  %v137 = vadd.f32 %v114, %v131
  %v138 = vadd.f32 %v115, %v131
  %v139 = vadd.f32 %v116, %v131
  %v140 = vadd.f32 %v117, %v131
  %v141 = vadd.f32 %v118, %v131
  %v142 = vadd.f32 %v119, %v131
  %v143 = vadd.f32 %v120, %v131
  %v144 = vadd.f32 %v121, %v131
  %v145 = vadd.f32 %v122, %v131
  %v146 = vadd.f32 %v123, %v131
  %v147 = vadd.f32 %v124, %v131
  %v148 = vadd.f32 %v125, %v131
  %v149 = vld [vmem:[%s5] sm:$0xff]
  %v150 = vld [vmem:[%s5 + $0x8] sm:$0xff]
  %v151 = vld [vmem:[%s5 + $0x10] sm:$0xff]
  %v152 = vld [vmem:[%s5 + $0x18] sm:$0xff]
  %v153 = vld [vmem:[%s5 + $0x20] sm:$0xff]
  %v154 = vld [vmem:[%s5 + $0x28] sm:$0xff]
  %v155 = vld [vmem:[%s5 + $0x30] sm:$0xff]
  %v156 = vld [vmem:[%s5 + $0x38] sm:$0xff]
  %v157 = vld [vmem:[%s5 + $0x40] sm:$0xff]
  %v158 = vld [vmem:[%s5 + $0x48] sm:$0xff]
  %v159 = vld [vmem:[%s5 + $0x50] sm:$0xff]
  %v160 = vld [vmem:[%s5 + $0x58] sm:$0xff]
  %v161 = vld [vmem:[%s5 + $0x60] sm:$0xff]
  %v162 = vld [vmem:[%s5 + $0x68] sm:$0xff]
  %v163 = vld [vmem:[%s5 + $0x70] sm:$0xff]
  %v164 = vld [vmem:[%s5 + $0x78] sm:$0xff]
  %v165 = vld [vmem:[%s6] sm:$0x1]
  %v166 = vmul.f32 %v165, 0.0078125
  %v167 = vld [vmem:[%s7] sm:$0x1]
  %v168 = vmul.f32 %v167, 0.0078125
  %v169 = vmul.f32 %v166, %v166
  %v170 = vsub.f32 %v168, %v169
  %v172 = vlaneseq
  %v173 = vshrl.u32 %v172, 7
  %v174 = vsub.s32 0, %v173
  %v175 = vrot.slane %v166, %v174
  %v177 = vsub.f32 %v149, %v175
  %v178 = vsub.f32 %v150, %v175
  %v179 = vsub.f32 %v151, %v175
  %v180 = vsub.f32 %v152, %v175
  %v181 = vsub.f32 %v153, %v175
  %v182 = vsub.f32 %v154, %v175
  %v183 = vsub.f32 %v155, %v175
  %v184 = vsub.f32 %v156, %v175
  %v185 = vsub.f32 %v157, %v175
  %v186 = vsub.f32 %v158, %v175
  %v187 = vsub.f32 %v159, %v175
  %v188 = vsub.f32 %v160, %v175
  %v189 = vsub.f32 %v161, %v175
  %v190 = vsub.f32 %v162, %v175
  %v191 = vsub.f32 %v163, %v175
  %v192 = vsub.f32 %v164, %v175
  %v193 = vadd.f32 %v170, 1e-05
  %v194 = vrsqrt.pop %v193
  %v196 = vlaneseq
  %v197 = vshrl.u32 %v196, 7
  %v198 = vsub.s32 0, %v197
  %v199 = vrot.slane %v194, %v198
  %v201 = vmul.f32 %v177, %v199
  %v202 = vmul.f32 %v178, %v199
  %v203 = vmul.f32 %v179, %v199
  %v204 = vmul.f32 %v180, %v199
  %v205 = vmul.f32 %v181, %v199
  %v206 = vmul.f32 %v182, %v199
  %v207 = vmul.f32 %v183, %v199
  %v208 = vmul.f32 %v184, %v199
  %v209 = vmul.f32 %v185, %v199
  %v210 = vmul.f32 %v186, %v199
  %v211 = vmul.f32 %v187, %v199
  %v212 = vmul.f32 %v188, %v199
  %v213 = vmul.f32 %v189, %v199
  %v214 = vmul.f32 %v190, %v199
  %v215 = vmul.f32 %v191, %v199
  %v216 = vmul.f32 %v192, %v199
  %v217 = vld [vmem:[%s8] sm:$0x1]
  %v219 = vlaneseq
  %v220 = vshrl.u32 %v219, 7
  %v221 = vsub.s32 0, %v220
  %v222 = vrot.slane %v217, %v221
  %v224 = vmul.f32 %v201, %v222
  %v225 = vmul.f32 %v202, %v222
  %v226 = vmul.f32 %v203, %v222
  %v227 = vmul.f32 %v204, %v222
  %v228 = vmul.f32 %v205, %v222
  %v229 = vmul.f32 %v206, %v222
  %v230 = vmul.f32 %v207, %v222
  %v231 = vmul.f32 %v208, %v222
  %v232 = vmul.f32 %v209, %v222
  %v233 = vmul.f32 %v210, %v222
  %v234 = vmul.f32 %v211, %v222
  %v235 = vmul.f32 %v212, %v222
  %v236 = vmul.f32 %v213, %v222
  %v237 = vmul.f32 %v214, %v222
  %v238 = vmul.f32 %v215, %v222
  %v239 = vmul.f32 %v216, %v222
  %v240 = vld [vmem:[%s9] sm:$0x1]
  %v242 = vlaneseq
  %v243 = vshrl.u32 %v242, 7
  %v244 = vsub.s32 0, %v243
  %v245 = vrot.slane %v240, %v244
  %v247 = vadd.f32 %v224, %v245
  %v248 = vadd.f32 %v225, %v245
  %v249 = vadd.f32 %v226, %v245
  %v250 = vadd.f32 %v227, %v245
  %v251 = vadd.f32 %v228, %v245
  %v252 = vadd.f32 %v229, %v245
  %v253 = vadd.f32 %v230, %v245
  %v254 = vadd.f32 %v231, %v245
  %v255 = vadd.f32 %v232, %v245
  %v256 = vadd.f32 %v233, %v245
  %v257 = vadd.f32 %v234, %v245
  %v258 = vadd.f32 %v235, %v245
  %v259 = vadd.f32 %v236, %v245
  %v260 = vadd.f32 %v237, %v245
  %v261 = vadd.f32 %v238, %v245
  %v262 = vadd.f32 %v239, %v245
  %v263 = vadd.f32 %v133, %v247
  %v264 = vadd.f32 %v134, %v248
  %v265 = vadd.f32 %v135, %v249
  %v266 = vadd.f32 %v136, %v250
  %v267 = vadd.f32 %v137, %v251
  %v268 = vadd.f32 %v138, %v252
  %v269 = vadd.f32 %v139, %v253
  %v270 = vadd.f32 %v140, %v254
  %v271 = vadd.f32 %v141, %v255
  %v272 = vadd.f32 %v142, %v256
  %v273 = vadd.f32 %v143, %v257
  %v274 = vadd.f32 %v144, %v258
  %v275 = vadd.f32 %v145, %v259
  %v276 = vadd.f32 %v146, %v260
  %v277 = vadd.f32 %v147, %v261
  %v278 = vadd.f32 %v148, %v262
  %v279 = vmax.f32 %v263, 0.0
  %v280 = vmax.f32 %v264, 0.0
  %v281 = vmax.f32 %v265, 0.0
  %v282 = vmax.f32 %v266, 0.0
  %v283 = vmax.f32 %v267, 0.0
  %v284 = vmax.f32 %v268, 0.0
  %v285 = vmax.f32 %v269, 0.0
  %v286 = vmax.f32 %v270, 0.0
  %v287 = vmax.f32 %v271, 0.0
  %v288 = vmax.f32 %v272, 0.0
  %v289 = vmax.f32 %v273, 0.0
  %v290 = vmax.f32 %v274, 0.0
  %v291 = vmax.f32 %v275, 0.0
  %v292 = vmax.f32 %v276, 0.0
  %v293 = vmax.f32 %v277, 0.0
  %v294 = vmax.f32 %v278, 0.0
  %295 = vst [vmem:[%s10] sm:$0xff] %v279
  %296 = vst [vmem:[%s10 + $0x8] sm:$0xff] %v280
  %297 = vst [vmem:[%s10 + $0x10] sm:$0xff] %v281
  %298 = vst [vmem:[%s10 + $0x18] sm:$0xff] %v282
  %299 = vst [vmem:[%s10 + $0x20] sm:$0xff] %v283
  %300 = vst [vmem:[%s10 + $0x28] sm:$0xff] %v284
  %301 = vst [vmem:[%s10 + $0x30] sm:$0xff] %v285
  %302 = vst [vmem:[%s10 + $0x38] sm:$0xff] %v286
  %303 = vst [vmem:[%s10 + $0x40] sm:$0xff] %v287
  %304 = vst [vmem:[%s10 + $0x48] sm:$0xff] %v288
  %305 = vst [vmem:[%s10 + $0x50] sm:$0xff] %v289
  %306 = vst [vmem:[%s10 + $0x58] sm:$0xff] %v290
  %307 = vst [vmem:[%s10 + $0x60] sm:$0xff] %v291
  %308 = vst [vmem:[%s10 + $0x68] sm:$0xff] %v292
  %309 = vst [vmem:[%s10 + $0x70] sm:$0xff] %v293
  %310 = vst [vmem:[%s10 + $0x78] sm:$0xff] %v294
  // Predicated region
  $region42: #{basic_block_forward.9} parent=0 // pred_check
    _
  $region43: #{basic_block_forward.9} parent=0 // pred_check_branch
    %312 = sbr.rel (0) target = $region45
  $region44: #{basic_block_forward.9} parent=0 // pred_region
    _
  $region45: #{basic_block_forward.9} parent=0 // pred_fallthru
    _
  // Predicated region
  $region46: #{basic_block_forward.9} parent=0 // pred_check
    _
  $region47: #{basic_block_forward.9} parent=0 // pred_check_branch
    %314 = sbr.rel (0) target = $region49
  $region48: #{basic_block_forward.9} parent=0 // pred_region
    _
  $region49: #{basic_block_forward.9} parent=0 // pred_fallthru
    _

</llo_original>
